<compile_context>
chip_gen: v5e
topology: v5e:2x2
jax: 0.10.0
libtpu: 0.0.40
codegen_flags: <defaults>
</compile_context>

<pallas_src>
import functools

import jax
import jax.numpy as jnp
from jax.experimental import pallas as pl
from jax.experimental.pallas import tpu as pltpu


def _appnp_kernel(adj_ref, norm_ref, inv_norm_ref, feat_ref, out_ref, *, k, alpha):
    adj = adj_ref[...]                                  # (N, N) bf16, fed straight to MXU
    norm = norm_ref[...]                                # (N, 1) f32, deg^-1/2
    inv_norm = inv_norm_ref[...]                        # (N, 1) f32, deg^+1/2 (= 1/norm)
    feat0 = feat_ref[...].astype(jnp.float32)           # (N, TF)

    # Scaled-space recurrence on g = norm * feat:
    #   g_{t+1} = c * (A @ g_t) + b,  c = (1-alpha)*norm^2,  b = alpha*norm*feat0
    # Broadcasts hoisted out of the unrolled loop (JAX does not CSE broadcast_in_dim).
    c = jnp.broadcast_to((1.0 - alpha) * norm * norm, feat0.shape)
    b = (alpha * norm) * feat0
    g = norm * feat0

    for _ in range(k):                                  # k: small static int -> unrolled
        # hi/lo bf16 split of the RHS keeps ~f32 accuracy on the native bf16 MXU
        # path; the adjacency is exact 0/1 in bf16 so the LHS needs no split.
        g_hi = g.astype(jnp.bfloat16)
        g_lo = (g - g_hi.astype(jnp.float32)).astype(jnp.bfloat16)
        ag = jnp.dot(adj, g_hi, preferred_element_type=jnp.float32)
        ag = ag + jnp.dot(adj, g_lo, preferred_element_type=jnp.float32)
        g = c * ag + b                                  # single VPU FMA per step

    out_ref[...] = (g * inv_norm).astype(out_ref.dtype)


def propagation(adj, feat, *, k=3, alpha=0.1, feat_tile=None):
    """Pallas TPU implementation of Propagation.forward on a dense graph."""
    N, F = feat.shape
    assert adj.shape == (N, N)

    # Precompute in-degree normalization once (matches torch clamp(1e-12).pow(-0.5)).
    # NOTE: like the torch module, both pre/post scalings use in-degrees; this equals
    # DGL's symmetric norm only for undirected/symmetric adjacencies.
    deg = jnp.sum(adj.astype(jnp.float32), axis=1, keepdims=True)        # (N, 1)
    deg_c = jnp.maximum(deg, 1e-12)
    norm = jnp.power(deg_c, -0.5).astype(jnp.float32)                    # deg^-1/2
    inv_norm = jnp.sqrt(deg_c).astype(jnp.float32)                       # exact 1/norm

    # 0/1 adjacency is exact in bf16 -> halves HBM traffic + VMEM residency of the
    # dominant N^2 operand.  TODO(synk): int8/fp8 adjacency storage for the
    # HBM-bound small-F regime (upcast to bf16 in-kernel).
    adj_bf16 = adj.astype(jnp.bfloat16)

    # Lane-dense feature tiles: 256 fills the 256-wide v6e/v7x MXU, 128 matches the
    # v5e MXU and avoids over-padding small feature dims.  Zero pad columns stay
    # identically zero through the propagation.
    tf = feat_tile if feat_tile is not None else (256 if F > 128 else 128)
    assert tf % 128 == 0
    Fp = ((F + tf - 1) // tf) * tf
    feat_p = feat if Fp == F else jnp.pad(feat, ((0, 0), (0, Fp - F)))

    # Per-generation VMEM budget (v7x has only 64 MiB physical); leave headroom.
    try:
        vmem_cap = int(pltpu.get_tpu_info().vmem_capacity_bytes)
    except Exception:
        vmem_cap = 64 * 1024 * 1024                      # conservative (v7x physical)
    vmem_limit = min(vmem_cap - 16 * 1024 * 1024, 100 * 1024 * 1024)

    # Residency estimate: single-buffered bf16 adj + double-buffered f32 in/out
    # feature tiles + ~6 live (N, tf) f32 temporaries in the unrolled k-loop.
    # (If the Buffered(1) spec falls back to double buffering, add another 2*N*N.)
    vmem_est = 2 * N * N + 2 * (2 * 4 * N * tf) + 6 * 4 * N * tf
    # TODO(synk): contraction-tiled accumulator fallback (feature axis "parallel",
    # reduction axis last/"arbitrary", f32 VMEM accumulator finalized via pl.when)
    # for graphs whose adjacency exceeds this budget.
    assert vmem_est <= vmem_limit, "graph too large for adjacency-resident kernel"

    kernel = functools.partial(_appnp_kernel, k=k, alpha=alpha)
    out_shape = jax.ShapeDtypeStruct((N, Fp), feat.dtype)
    cost = pl.CostEstimate(
        flops=2 * 2 * k * N * N * Fp,                   # two bf16 MXU passes / step
        transcendentals=0,
        bytes_accessed=2 * N * N + 8 * N * Fp + 8 * N,
    )
    cparams = pltpu.CompilerParams(
        dimension_semantics=("parallel",),              # independent feature tiles
        vmem_limit_bytes=vmem_limit,
    )

    def build(adj_spec):
        return pl.pallas_call(
            kernel,
            out_shape=out_shape,
            grid=(Fp // tf,),
            in_specs=[
                adj_spec,                                # adj: same block every step
                pl.BlockSpec((N, 1), lambda j: (0, 0)),  # norm
                pl.BlockSpec((N, 1), lambda j: (0, 0)),  # inv_norm
                pl.BlockSpec((N, tf), lambda j: (0, j)), # feature tile (lane dense)
            ],
            out_specs=pl.BlockSpec((N, tf), lambda j: (0, j)),
            compiler_params=cparams,
            cost_estimate=cost,
        )

    try:
        # Constant block index -> single-buffer the adjacency (halves its VMEM use).
        adj_spec = pl.BlockSpec((N, N), lambda j: (0, 0),
                                pipeline_mode=pl.Buffered(1))
        out_p = build(adj_spec)(adj_bf16, norm, inv_norm, feat_p)
    except Exception:
        # Fallback: default (double-buffered) spec if Buffered(1) is unsupported.
        out_p = build(pl.BlockSpec((N, N), lambda j: (0, 0)))(
            adj_bf16, norm, inv_norm, feat_p)

    return out_p[:, :F] if Fp != F else out_p


def propagation_ref(adj, feat, *, k=3, alpha=0.1):
    """Pure-JAX reference for correctness checking (mirrors the torch module)."""
    deg = jnp.sum(adj, axis=1, keepdims=True)
    norm = jnp.power(jnp.maximum(deg, 1e-12), -0.5)
    feat0 = feat
    for _ in range(k):
        feat = feat * norm
        feat = adj @ feat
        feat = feat * norm
        feat = (1.0 - alpha) * feat + alpha * feat0
    return feat


if __name__ == "__main__":
    key = jax.random.PRNGKey(0)
    k_adj, k_feat = jax.random.split(key)

    N, F = 256, 64      # small graph: 256 nodes, 64-dim node features
    K, ALPHA = 3, 0.1   # propagation steps / teleport probability

    # deterministic random sparse-ish adjacency (as a dense 0/1 matrix)
    adj = jax.random.bernoulli(k_adj, p=0.05, shape=(N, N)).astype(jnp.float32)
    feat = jax.random.normal(k_feat, (N, F), dtype=jnp.float32)

    out = jax.block_until_ready(propagation(adj, feat, k=K, alpha=ALPHA))

    ref = propagation_ref(adj, feat, k=K, alpha=ALPHA)
    assert out.shape == (N, F)
    assert jnp.allclose(out, ref, atol=1e-4, rtol=1e-4), "mismatch vs reference"

    print("KERNEL_OK")
</pallas_src>

<mosaic_0001>
module attributes {stable_mosaic.version = 11 : i64} {
  func.func @_appnp_kernel(%arg0: i32, %arg1: memref<256x256xbf16, #tpu.memory_space<vmem>>, %arg2: memref<256x1xf32, #tpu.memory_space<vmem>>, %arg3: memref<256x1xf32, #tpu.memory_space<vmem>>, %arg4: memref<256x128xf32, #tpu.memory_space<vmem>>, %arg5: memref<256x128xf32, #tpu.memory_space<vmem>>) attributes {dimension_semantics = [#tpu.dimension_semantics<parallel>], iteration_bounds = array<i64: 1>, scalar_prefetch = 0 : i64, scratch_operands = 0 : i64, tpu.core_type = #tpu.core_type<tc>, window_params = [{pipeline_mode = #tpu.pipeline_mode<synchronous>, transform_indices = @transform_0, window_bounds = array<i64: 256, 256>}, {pipeline_mode = #tpu.pipeline_mode<synchronous>, transform_indices = @transform_1, window_bounds = array<i64: 256, 1>}, {pipeline_mode = #tpu.pipeline_mode<synchronous>, transform_indices = @transform_2, window_bounds = array<i64: 256, 1>}, {transform_indices = @transform_3, window_bounds = array<i64: 256, 128>}, {transform_indices = @transform_4, window_bounds = array<i64: 256, 128>}]} {
    %c0 = arith.constant 0 : index
    %c0_0 = arith.constant 0 : index
    %0 = vector.load %arg1[%c0, %c0_0] : memref<256x256xbf16, #tpu.memory_space<vmem>>, vector<256x256xbf16>
    %c0_1 = arith.constant 0 : index
    %c0_2 = arith.constant 0 : index
    %1 = vector.load %arg2[%c0_1, %c0_2] : memref<256x1xf32, #tpu.memory_space<vmem>>, vector<256x1xf32>
    %c0_3 = arith.constant 0 : index
    %c0_4 = arith.constant 0 : index
    %2 = vector.load %arg3[%c0_3, %c0_4] : memref<256x1xf32, #tpu.memory_space<vmem>>, vector<256x1xf32>
    %c0_5 = arith.constant 0 : index
    %c0_6 = arith.constant 0 : index
    %3 = vector.load %arg4[%c0_5, %c0_6] : memref<256x128xf32, #tpu.memory_space<vmem>>, vector<256x128xf32>
    %cst = arith.constant 0.899999976 : f32
    %4 = vector.broadcast %cst : f32 to vector<256x1xf32>
    %5 = arith.mulf %4, %1 : vector<256x1xf32>
    %6 = arith.mulf %5, %1 : vector<256x1xf32>
    %7 = vector.shape_cast %6 : vector<256x1xf32> to vector<256x1xf32>
    %8 = vector.broadcast %7 : vector<256x1xf32> to vector<256x128xf32>
    %cst_7 = arith.constant 1.000000e-01 : f32
    %9 = vector.broadcast %cst_7 : f32 to vector<256x1xf32>
    %10 = arith.mulf %9, %1 : vector<256x1xf32>
    %11 = vector.broadcast %10 : vector<256x1xf32> to vector<256x128xf32>
    %12 = arith.mulf %11, %3 : vector<256x128xf32>
    %13 = vector.broadcast %1 : vector<256x1xf32> to vector<256x128xf32>
    %14 = arith.mulf %13, %3 : vector<256x128xf32>
    %15 = arith.truncf %14 : vector<256x128xf32> to vector<256x128xbf16>
    %16 = arith.extf %15 : vector<256x128xbf16> to vector<256x128xf32>
    %17 = arith.subf %14, %16 : vector<256x128xf32>
    %18 = arith.truncf %17 : vector<256x128xf32> to vector<256x128xbf16>
    %cst_8 = arith.constant dense<0.000000e+00> : vector<256x128xf32>
    %19 = tpu.matmul %0, %15, %cst_8 {dimension_numbers = #tpu.dot_dimension_numbers<[1], [0], [0], [1], [0, 0, 1, 1], [], []>} : vector<256x256xbf16>, vector<256x128xbf16>, vector<256x128xf32> -> vector<256x128xf32>
    %cst_9 = arith.constant dense<0.000000e+00> : vector<256x128xf32>
    %20 = tpu.matmul %0, %18, %cst_9 {dimension_numbers = #tpu.dot_dimension_numbers<[1], [0], [0], [1], [0, 0, 1, 1], [], []>} : vector<256x256xbf16>, vector<256x128xbf16>, vector<256x128xf32> -> vector<256x128xf32>
    %21 = arith.addf %19, %20 : vector<256x128xf32>
    %22 = arith.mulf %8, %21 : vector<256x128xf32>
    %23 = arith.addf %22, %12 : vector<256x128xf32>
    %24 = arith.truncf %23 : vector<256x128xf32> to vector<256x128xbf16>
    %25 = arith.extf %24 : vector<256x128xbf16> to vector<256x128xf32>
    %26 = arith.subf %23, %25 : vector<256x128xf32>
    %27 = arith.truncf %26 : vector<256x128xf32> to vector<256x128xbf16>
    %cst_10 = arith.constant dense<0.000000e+00> : vector<256x128xf32>
    %28 = tpu.matmul %0, %24, %cst_10 {dimension_numbers = #tpu.dot_dimension_numbers<[1], [0], [0], [1], [0, 0, 1, 1], [], []>} : vector<256x256xbf16>, vector<256x128xbf16>, vector<256x128xf32> -> vector<256x128xf32>
    %cst_11 = arith.constant dense<0.000000e+00> : vector<256x128xf32>
    %29 = tpu.matmul %0, %27, %cst_11 {dimension_numbers = #tpu.dot_dimension_numbers<[1], [0], [0], [1], [0, 0, 1, 1], [], []>} : vector<256x256xbf16>, vector<256x128xbf16>, vector<256x128xf32> -> vector<256x128xf32>
    %30 = arith.addf %28, %29 : vector<256x128xf32>
    %31 = arith.mulf %8, %30 : vector<256x128xf32>
    %32 = arith.addf %31, %12 : vector<256x128xf32>
    %33 = arith.truncf %32 : vector<256x128xf32> to vector<256x128xbf16>
    %34 = arith.extf %33 : vector<256x128xbf16> to vector<256x128xf32>
    %35 = arith.subf %32, %34 : vector<256x128xf32>
    %36 = arith.truncf %35 : vector<256x128xf32> to vector<256x128xbf16>
    %cst_12 = arith.constant dense<0.000000e+00> : vector<256x128xf32>
    %37 = tpu.matmul %0, %33, %cst_12 {dimension_numbers = #tpu.dot_dimension_numbers<[1], [0], [0], [1], [0, 0, 1, 1], [], []>} : vector<256x256xbf16>, vector<256x128xbf16>, vector<256x128xf32> -> vector<256x128xf32>
    %cst_13 = arith.constant dense<0.000000e+00> : vector<256x128xf32>
    %38 = tpu.matmul %0, %36, %cst_13 {dimension_numbers = #tpu.dot_dimension_numbers<[1], [0], [0], [1], [0, 0, 1, 1], [], []>} : vector<256x256xbf16>, vector<256x128xbf16>, vector<256x128xf32> -> vector<256x128xf32>
    %39 = arith.addf %37, %38 : vector<256x128xf32>
    %40 = arith.mulf %8, %39 : vector<256x128xf32>
    %41 = arith.addf %40, %12 : vector<256x128xf32>
    %42 = vector.broadcast %2 : vector<256x1xf32> to vector<256x128xf32>
    %43 = arith.mulf %41, %42 : vector<256x128xf32>
    %c0_14 = arith.constant 0 : index
    %c0_15 = arith.constant 0 : index
    %44 = vector.load %arg5[%c0_14, %c0_15] : memref<256x128xf32, #tpu.memory_space<vmem>>, vector<256x128xf32>
    tpu.vector_store %arg5[%c0_14, %c0_15], %43 {strides = array<i32>} : memref<256x128xf32, #tpu.memory_space<vmem>>, vector<256x128xf32>,
    return
  }
  func.func @transform_0(%arg0: i32) -> (i32, i32) {
    %c0_i32 = arith.constant 0 : i32
    %c0_i32_0 = arith.constant 0 : i32
    %c0_i32_1 = arith.constant 0 : i32
    return %c0_i32, %c0_i32_0 : i32, i32
  }
  func.func @transform_1(%arg0: i32) -> (i32, i32) {
    %c0_i32 = arith.constant 0 : i32
    %c0_i32_0 = arith.constant 0 : i32
    %c0_i32_1 = arith.constant 0 : i32
    return %c0_i32, %c0_i32_0 : i32, i32
  }
  func.func @transform_2(%arg0: i32) -> (i32, i32) {
    %c0_i32 = arith.constant 0 : i32
    %c0_i32_0 = arith.constant 0 : i32
    %c0_i32_1 = arith.constant 0 : i32
    return %c0_i32, %c0_i32_0 : i32, i32
  }
  func.func @transform_3(%arg0: i32) -> (i32, i32) {
    %c0_i32 = arith.constant 0 : i32
    %c0_i32_0 = arith.constant 0 : i32
    return %c0_i32, %arg0 : i32, i32
  }
  func.func @transform_4(%arg0: i32) -> (i32, i32) {
    %c0_i32 = arith.constant 0 : i32
    %c0_i32_0 = arith.constant 0 : i32
    return %c0_i32, %arg0 : i32, i32
  }
}

module attributes {stable_mosaic.version = 11 : i64} {
  func.func @_appnp_kernel(%arg0: i32, %arg1: memref<256x256xbf16, #tpu.memory_space<vmem>>, %arg2: memref<256x1xf32, #tpu.memory_space<vmem>>, %arg3: memref<256x1xf32, #tpu.memory_space<vmem>>, %arg4: memref<256x128xf32, #tpu.memory_space<vmem>>, %arg5: memref<256x128xf32, #tpu.memory_space<vmem>>) attributes {dimension_semantics = [#tpu.dimension_semantics<parallel>], iteration_bounds = array<i64: 1>, scalar_prefetch = 0 : i64, scratch_operands = 0 : i64, tpu.core_type = #tpu.core_type<tc>, window_params = [{pipeline_mode = #tpu.pipeline_mode<synchronous>, transform_indices = @transform_0, window_bounds = array<i64: 256, 256>}, {pipeline_mode = #tpu.pipeline_mode<synchronous>, transform_indices = @transform_1, window_bounds = array<i64: 256, 1>}, {pipeline_mode = #tpu.pipeline_mode<synchronous>, transform_indices = @transform_2, window_bounds = array<i64: 256, 1>}, {transform_indices = @transform_3, window_bounds = array<i64: 256, 128>}, {transform_indices = @transform_4, window_bounds = array<i64: 256, 128>}]} {
    %c0 = arith.constant 0 : index
    %c0_0 = arith.constant 0 : index
    %0 = vector.load %arg1[%c0, %c0_0] : memref<256x256xbf16, #tpu.memory_space<vmem>>, vector<256x256xbf16>
    %c0_1 = arith.constant 0 : index
    %c0_2 = arith.constant 0 : index
    %1 = vector.load %arg2[%c0_1, %c0_2] : memref<256x1xf32, #tpu.memory_space<vmem>>, vector<256x1xf32>
    %c0_3 = arith.constant 0 : index
    %c0_4 = arith.constant 0 : index
    %2 = vector.load %arg3[%c0_3, %c0_4] : memref<256x1xf32, #tpu.memory_space<vmem>>, vector<256x1xf32>
    %c0_5 = arith.constant 0 : index
    %c0_6 = arith.constant 0 : index
    %3 = vector.load %arg4[%c0_5, %c0_6] : memref<256x128xf32, #tpu.memory_space<vmem>>, vector<256x128xf32>
    %cst = arith.constant 0.899999976 : f32
    %4 = vector.broadcast %cst : f32 to vector<256x1xf32>
    %5 = arith.mulf %4, %1 : vector<256x1xf32>
    %6 = arith.mulf %5, %1 : vector<256x1xf32>
    %7 = vector.shape_cast %6 : vector<256x1xf32> to vector<256x1xf32>
    %8 = vector.broadcast %7 : vector<256x1xf32> to vector<256x128xf32>
    %cst_7 = arith.constant 1.000000e-01 : f32
    %9 = vector.broadcast %cst_7 : f32 to vector<256x1xf32>
    %10 = arith.mulf %9, %1 : vector<256x1xf32>
    %11 = vector.broadcast %10 : vector<256x1xf32> to vector<256x128xf32>
    %12 = arith.mulf %11, %3 : vector<256x128xf32>
    %13 = vector.broadcast %1 : vector<256x1xf32> to vector<256x128xf32>
    %14 = arith.mulf %13, %3 : vector<256x128xf32>
    %15 = arith.truncf %14 : vector<256x128xf32> to vector<256x128xbf16>
    %16 = arith.extf %15 : vector<256x128xbf16> to vector<256x128xf32>
    %17 = arith.subf %14, %16 : vector<256x128xf32>
    %18 = arith.truncf %17 : vector<256x128xf32> to vector<256x128xbf16>
    %cst_8 = arith.constant dense<0.000000e+00> : vector<256x128xf32>
    %19 = tpu.matmul %0, %15, %cst_8 {dimension_numbers = #tpu.dot_dimension_numbers<[1], [0], [0], [1], [0, 0, 1, 1], [], []>} : vector<256x256xbf16>, vector<256x128xbf16>, vector<256x128xf32> -> vector<256x128xf32>
    %cst_9 = arith.constant dense<0.000000e+00> : vector<256x128xf32>
    %20 = tpu.matmul %0, %18, %cst_9 {dimension_numbers = #tpu.dot_dimension_numbers<[1], [0], [0], [1], [0, 0, 1, 1], [], []>} : vector<256x256xbf16>, vector<256x128xbf16>, vector<256x128xf32> -> vector<256x128xf32>
    %21 = arith.addf %19, %20 : vector<256x128xf32>
    %22 = arith.mulf %8, %21 : vector<256x128xf32>
    %23 = arith.addf %22, %12 : vector<256x128xf32>
    %24 = arith.truncf %23 : vector<256x128xf32> to vector<256x128xbf16>
    %25 = arith.extf %24 : vector<256x128xbf16> to vector<256x128xf32>
    %26 = arith.subf %23, %25 : vector<256x128xf32>
    %27 = arith.truncf %26 : vector<256x128xf32> to vector<256x128xbf16>
    %cst_10 = arith.constant dense<0.000000e+00> : vector<256x128xf32>
    %28 = tpu.matmul %0, %24, %cst_10 {dimension_numbers = #tpu.dot_dimension_numbers<[1], [0], [0], [1], [0, 0, 1, 1], [], []>} : vector<256x256xbf16>, vector<256x128xbf16>, vector<256x128xf32> -> vector<256x128xf32>
    %cst_11 = arith.constant dense<0.000000e+00> : vector<256x128xf32>
    %29 = tpu.matmul %0, %27, %cst_11 {dimension_numbers = #tpu.dot_dimension_numbers<[1], [0], [0], [1], [0, 0, 1, 1], [], []>} : vector<256x256xbf16>, vector<256x128xbf16>, vector<256x128xf32> -> vector<256x128xf32>
    %30 = arith.addf %28, %29 : vector<256x128xf32>
    %31 = arith.mulf %8, %30 : vector<256x128xf32>
    %32 = arith.addf %31, %12 : vector<256x128xf32>
    %33 = arith.truncf %32 : vector<256x128xf32> to vector<256x128xbf16>
    %34 = arith.extf %33 : vector<256x128xbf16> to vector<256x128xf32>
    %35 = arith.subf %32, %34 : vector<256x128xf32>
    %36 = arith.truncf %35 : vector<256x128xf32> to vector<256x128xbf16>
    %cst_12 = arith.constant dense<0.000000e+00> : vector<256x128xf32>
    %37 = tpu.matmul %0, %33, %cst_12 {dimension_numbers = #tpu.dot_dimension_numbers<[1], [0], [0], [1], [0, 0, 1, 1], [], []>} : vector<256x256xbf16>, vector<256x128xbf16>, vector<256x128xf32> -> vector<256x128xf32>
    %cst_13 = arith.constant dense<0.000000e+00> : vector<256x128xf32>
    %38 = tpu.matmul %0, %36, %cst_13 {dimension_numbers = #tpu.dot_dimension_numbers<[1], [0], [0], [1], [0, 0, 1, 1], [], []>} : vector<256x256xbf16>, vector<256x128xbf16>, vector<256x128xf32> -> vector<256x128xf32>
    %39 = arith.addf %37, %38 : vector<256x128xf32>
    %40 = arith.mulf %8, %39 : vector<256x128xf32>
    %41 = arith.addf %40, %12 : vector<256x128xf32>
    %42 = vector.broadcast %2 : vector<256x1xf32> to vector<256x128xf32>
    %43 = arith.mulf %41, %42 : vector<256x128xf32>
    %c0_14 = arith.constant 0 : index
    %c0_15 = arith.constant 0 : index
    %44 = vector.load %arg5[%c0_14, %c0_15] : memref<256x128xf32, #tpu.memory_space<vmem>>, vector<256x128xf32>
    tpu.vector_store %arg5[%c0_14, %c0_15], %43 {strides = array<i32>} : memref<256x128xf32, #tpu.memory_space<vmem>>, vector<256x128xf32>,
    return
  }
  func.func @transform_0(%arg0: i32) -> (i32, i32) {
    %c0_i32 = arith.constant 0 : i32
    %c0_i32_0 = arith.constant 0 : i32
    %c0_i32_1 = arith.constant 0 : i32
    return %c0_i32, %c0_i32_0 : i32, i32
  }
  func.func @transform_1(%arg0: i32) -> (i32, i32) {
    %c0_i32 = arith.constant 0 : i32
    %c0_i32_0 = arith.constant 0 : i32
    %c0_i32_1 = arith.constant 0 : i32
    return %c0_i32, %c0_i32_0 : i32, i32
  }
  func.func @transform_2(%arg0: i32) -> (i32, i32) {
    %c0_i32 = arith.constant 0 : i32
    %c0_i32_0 = arith.constant 0 : i32
    %c0_i32_1 = arith.constant 0 : i32
    return %c0_i32, %c0_i32_0 : i32, i32
  }
  func.func @transform_3(%arg0: i32) -> (i32, i32) {
    %c0_i32 = arith.constant 0 : i32
    %c0_i32_0 = arith.constant 0 : i32
    return %c0_i32, %arg0 : i32, i32
  }
  func.func @transform_4(%arg0: i32) -> (i32, i32) {
    %c0_i32 = arith.constant 0 : i32
    %c0_i32_0 = arith.constant 0 : i32
    return %c0_i32, %arg0 : i32, i32
  }
}

</mosaic_0001>

<llo_original>
// kernel: tpu_custom_call.1
$region0: #{tpu_custom_call.1}
  #allocation0 [shape = 'u32[]', space=smem, size = 0x4, offset = 0x4, fixed_abs, tag = 'smem constant byte address 0x4 - core index']
  #allocation1 [shape = 'u32[72,128]{1,0:T(1,128)}', space=vmem, size = 0x9000, scoped, tag = 'internal scratch']
  %s0 = inlined_call_operand.vmem [shape: bf16[256,256], index: 0, kind: input, shape index: {}]
  %s1 = inlined_call_operand.vmem [shape: f32[256,1], index: 1, kind: input, shape index: {}]
  %s2 = inlined_call_operand.vmem [shape: f32[256,1], index: 2, kind: input, shape index: {}]
  %s3 = inlined_call_operand.vmem [shape: f32[256,128], index: 3, kind: input, shape index: {}]
  %s4 = inlined_call_operand.hbm [shape: f32[256,128], index: 4, kind: output, shape index: {}]
  %s5 = sld [smem:[#allocation0]]
  $region26: #{tpu_custom_call.1} parent=0
    _
  %s7 = ssub.s32 1, %s5
  %s8 = scalar_select 0, %s7, %s5
  $region1: #{tpu_custom_call.1} parent=0
    #allocation2 [shape = 'u8[131072]{0}', space=vmem, size = 0x20000, scoped, tag = 'output window, operand 0, single buffered']
    #allocation3 [shape = 's32[1]{0}', space=sflag, size = 0x4, scoped, tag = 'scoped memory for tpu_custom_call.1']
    %9 = vsyncpa [#allocation3], 0
    // Predicated region
    $region2: #{tpu_custom_call.1} parent=1 // pred_check
      _
    $region3: #{tpu_custom_call.1} parent=1 // pred_check_branch
      %11 = sbr.rel (0) target = $region5
    $region4: #{tpu_custom_call.1} parent=1 // pred_region
      _
    $region5: #{tpu_custom_call.1} parent=1 // pred_fallthru
      _
    // Predicated region
    $region6: #{tpu_custom_call.1} parent=1 // pred_check
      _
    $region7: #{tpu_custom_call.1} parent=1 // pred_check_branch
      %13 = sbr.rel (0) target = $region9
    $region8: #{tpu_custom_call.1} parent=1 // pred_region
      _
    $region9: #{tpu_custom_call.1} parent=1 // pred_fallthru
      _
    // Predicated region
    $region10: #{tpu_custom_call.1} parent=1 // pred_check
      _
    $region11: #{tpu_custom_call.1} parent=1 // pred_check_branch
      %15 = sbr.rel (0) target = $region13
    $region12: #{tpu_custom_call.1} parent=1 // pred_region
      _
    $region13: #{tpu_custom_call.1} parent=1 // pred_fallthru
      _
    // Predicated region
    $region14: #{tpu_custom_call.1} parent=1 // pred_check
      _
    $region15: #{tpu_custom_call.1} parent=1 // pred_check_branch
      %17 = sbr.rel (0) target = $region17
    $region16: #{tpu_custom_call.1} parent=1 // pred_region
      _
    $region17: #{tpu_custom_call.1} parent=1 // pred_fallthru
      _
    %v18 = vld [vmem:[%s0] sm:$0xff]
    %v19 = vld [vmem:[%s0 + $0x8] sm:$0xff]
    %v20 = vld [vmem:[%s0 + $0x10] sm:$0xff]
    %v21 = vld [vmem:[%s0 + $0x18] sm:$0xff]
    %v22 = vld [vmem:[%s0 + $0x20] sm:$0xff]
    %v23 = vld [vmem:[%s0 + $0x28] sm:$0xff]
    %v24 = vld [vmem:[%s0 + $0x30] sm:$0xff]
    %v25 = vld [vmem:[%s0 + $0x38] sm:$0xff]
    %v26 = vld [vmem:[%s0 + $0x40] sm:$0xff]
    %v27 = vld [vmem:[%s0 + $0x48] sm:$0xff]
    %v28 = vld [vmem:[%s0 + $0x50] sm:$0xff]
    %v29 = vld [vmem:[%s0 + $0x58] sm:$0xff]
    %v30 = vld [vmem:[%s0 + $0x60] sm:$0xff]
    %v31 = vld [vmem:[%s0 + $0x68] sm:$0xff]
    %v32 = vld [vmem:[%s0 + $0x70] sm:$0xff]
    %v33 = vld [vmem:[%s0 + $0x78] sm:$0xff]
    %v34 = vld [vmem:[%s0 + $0x80] sm:$0xff]
    %v35 = vld [vmem:[%s0 + $0x88] sm:$0xff]
    %v36 = vld [vmem:[%s0 + $0x90] sm:$0xff]
    %v37 = vld [vmem:[%s0 + $0x98] sm:$0xff]
    %v38 = vld [vmem:[%s0 + $0xa0] sm:$0xff]
    %v39 = vld [vmem:[%s0 + $0xa8] sm:$0xff]
    %v40 = vld [vmem:[%s0 + $0xb0] sm:$0xff]
    %v41 = vld [vmem:[%s0 + $0xb8] sm:$0xff]
    %v42 = vld [vmem:[%s0 + $0xc0] sm:$0xff]
    %v43 = vld [vmem:[%s0 + $0xc8] sm:$0xff]
    %v44 = vld [vmem:[%s0 + $0xd0] sm:$0xff]
    %v45 = vld [vmem:[%s0 + $0xd8] sm:$0xff]
    %v46 = vld [vmem:[%s0 + $0xe0] sm:$0xff]
    %v47 = vld [vmem:[%s0 + $0xe8] sm:$0xff]
    %v48 = vld [vmem:[%s0 + $0xf0] sm:$0xff]
    %v49 = vld [vmem:[%s0 + $0xf8] sm:$0xff]
    %v50 = vld [vmem:[%s1] sm:$0xff]
    %v51 = vld [vmem:[%s1 + $0x8] sm:$0xff]
    %v52 = vld [vmem:[%s1 + $0x10] sm:$0xff]
    %v53 = vld [vmem:[%s1 + $0x18] sm:$0xff]
    %v54 = vld [vmem:[%s1 + $0x20] sm:$0xff]
    %v55 = vld [vmem:[%s1 + $0x28] sm:$0xff]
    %v56 = vld [vmem:[%s1 + $0x30] sm:$0xff]
    %v57 = vld [vmem:[%s1 + $0x38] sm:$0xff]
    %v58 = vld [vmem:[%s1 + $0x40] sm:$0xff]
    %v59 = vld [vmem:[%s1 + $0x48] sm:$0xff]
    %v60 = vld [vmem:[%s1 + $0x50] sm:$0xff]
    %v61 = vld [vmem:[%s1 + $0x58] sm:$0xff]
    %v62 = vld [vmem:[%s1 + $0x60] sm:$0xff]
    %v63 = vld [vmem:[%s1 + $0x68] sm:$0xff]
    %v64 = vld [vmem:[%s1 + $0x70] sm:$0xff]
    %v65 = vld [vmem:[%s1 + $0x78] sm:$0xff]
    %v66 = vld [vmem:[%s1 + $0x80] sm:$0xff]
    %v67 = vld [vmem:[%s1 + $0x88] sm:$0xff]
    %v68 = vld [vmem:[%s1 + $0x90] sm:$0xff]
    %v69 = vld [vmem:[%s1 + $0x98] sm:$0xff]
    %v70 = vld [vmem:[%s1 + $0xa0] sm:$0xff]
    %v71 = vld [vmem:[%s1 + $0xa8] sm:$0xff]
    %v72 = vld [vmem:[%s1 + $0xb0] sm:$0xff]
    %v73 = vld [vmem:[%s1 + $0xb8] sm:$0xff]
    %v74 = vld [vmem:[%s1 + $0xc0] sm:$0xff]
    %v75 = vld [vmem:[%s1 + $0xc8] sm:$0xff]
    %v76 = vld [vmem:[%s1 + $0xd0] sm:$0xff]
    %v77 = vld [vmem:[%s1 + $0xd8] sm:$0xff]
    %v78 = vld [vmem:[%s1 + $0xe0] sm:$0xff]
    %v79 = vld [vmem:[%s1 + $0xe8] sm:$0xff]
    %v80 = vld [vmem:[%s1 + $0xf0] sm:$0xff]
    %v81 = vld [vmem:[%s1 + $0xf8] sm:$0xff]
    %v82 = vld [vmem:[%s2] sm:$0xff]
    %v83 = vld [vmem:[%s2 + $0x8] sm:$0xff]
    %v84 = vld [vmem:[%s2 + $0x10] sm:$0xff]
    %v85 = vld [vmem:[%s2 + $0x18] sm:$0xff]
    %v86 = vld [vmem:[%s2 + $0x20] sm:$0xff]
    %v87 = vld [vmem:[%s2 + $0x28] sm:$0xff]
    %v88 = vld [vmem:[%s2 + $0x30] sm:$0xff]
    %v89 = vld [vmem:[%s2 + $0x38] sm:$0xff]
    %v90 = vld [vmem:[%s2 + $0x40] sm:$0xff]
    %v91 = vld [vmem:[%s2 + $0x48] sm:$0xff]
    %v92 = vld [vmem:[%s2 + $0x50] sm:$0xff]
    %v93 = vld [vmem:[%s2 + $0x58] sm:$0xff]
    %v94 = vld [vmem:[%s2 + $0x60] sm:$0xff]
    %v95 = vld [vmem:[%s2 + $0x68] sm:$0xff]
    %v96 = vld [vmem:[%s2 + $0x70] sm:$0xff]
    %v97 = vld [vmem:[%s2 + $0x78] sm:$0xff]
    %v98 = vld [vmem:[%s2 + $0x80] sm:$0xff]
    %v99 = vld [vmem:[%s2 + $0x88] sm:$0xff]
    %v100 = vld [vmem:[%s2 + $0x90] sm:$0xff]
    %v101 = vld [vmem:[%s2 + $0x98] sm:$0xff]
    %v102 = vld [vmem:[%s2 + $0xa0] sm:$0xff]
    %v103 = vld [vmem:[%s2 + $0xa8] sm:$0xff]
    %v104 = vld [vmem:[%s2 + $0xb0] sm:$0xff]
    %v105 = vld [vmem:[%s2 + $0xb8] sm:$0xff]
    %v106 = vld [vmem:[%s2 + $0xc0] sm:$0xff]
    %v107 = vld [vmem:[%s2 + $0xc8] sm:$0xff]
    %v108 = vld [vmem:[%s2 + $0xd0] sm:$0xff]
    %v109 = vld [vmem:[%s2 + $0xd8] sm:$0xff]
    %v110 = vld [vmem:[%s2 + $0xe0] sm:$0xff]
    %v111 = vld [vmem:[%s2 + $0xe8] sm:$0xff]
    %v112 = vld [vmem:[%s2 + $0xf0] sm:$0xff]
    %v113 = vld [vmem:[%s2 + $0xf8] sm:$0xff]
    %v114 = vld [vmem:[%s3] sm:$0xff]
    %v115 = vld [vmem:[%s3 + $0x8] sm:$0xff]
    %v116 = vld [vmem:[%s3 + $0x10] sm:$0xff]
    %v117 = vld [vmem:[%s3 + $0x18] sm:$0xff]
    %v118 = vld [vmem:[%s3 + $0x20] sm:$0xff]
    %v119 = vld [vmem:[%s3 + $0x28] sm:$0xff]
    %v120 = vld [vmem:[%s3 + $0x30] sm:$0xff]
    %v121 = vld [vmem:[%s3 + $0x38] sm:$0xff]
    %v122 = vld [vmem:[%s3 + $0x40] sm:$0xff]
    %v123 = vld [vmem:[%s3 + $0x48] sm:$0xff]
    %v124 = vld [vmem:[%s3 + $0x50] sm:$0xff]
    %v125 = vld [vmem:[%s3 + $0x58] sm:$0xff]
    %v126 = vld [vmem:[%s3 + $0x60] sm:$0xff]
    %v127 = vld [vmem:[%s3 + $0x68] sm:$0xff]
    %v128 = vld [vmem:[%s3 + $0x70] sm:$0xff]
    %v129 = vld [vmem:[%s3 + $0x78] sm:$0xff]
    %v130 = vld [vmem:[%s3 + $0x80] sm:$0xff]
    %v131 = vld [vmem:[%s3 + $0x88] sm:$0xff]
    %v132 = vld [vmem:[%s3 + $0x90] sm:$0xff]
    %v133 = vld [vmem:[%s3 + $0x98] sm:$0xff]
    %v134 = vld [vmem:[%s3 + $0xa0] sm:$0xff]
    %v135 = vld [vmem:[%s3 + $0xa8] sm:$0xff]
    %v136 = vld [vmem:[%s3 + $0xb0] sm:$0xff]
    %v137 = vld [vmem:[%s3 + $0xb8] sm:$0xff]
    %v138 = vld [vmem:[%s3 + $0xc0] sm:$0xff]
    %v139 = vld [vmem:[%s3 + $0xc8] sm:$0xff]
    %v140 = vld [vmem:[%s3 + $0xd0] sm:$0xff]
    %v141 = vld [vmem:[%s3 + $0xd8] sm:$0xff]
    %v142 = vld [vmem:[%s3 + $0xe0] sm:$0xff]
    %v143 = vld [vmem:[%s3 + $0xe8] sm:$0xff]
    %v144 = vld [vmem:[%s3 + $0xf0] sm:$0xff]
    %v145 = vld [vmem:[%s3 + $0xf8] sm:$0xff]
    %v146 = vmul.f32 %v50, 0.9
    %v147 = vmul.f32 %v51, 0.9
    %v148 = vmul.f32 %v52, 0.9
    %v149 = vmul.f32 %v53, 0.9
    %v150 = vmul.f32 %v54, 0.9
    %v151 = vmul.f32 %v55, 0.9
    %v152 = vmul.f32 %v56, 0.9
    %v153 = vmul.f32 %v57, 0.9
    %v154 = vmul.f32 %v58, 0.9
    %v155 = vmul.f32 %v59, 0.9
    %v156 = vmul.f32 %v60, 0.9
    %v157 = vmul.f32 %v61, 0.9
    %v158 = vmul.f32 %v62, 0.9
    %v159 = vmul.f32 %v63, 0.9
    %v160 = vmul.f32 %v64, 0.9
    %v161 = vmul.f32 %v65, 0.9
    %v162 = vmul.f32 %v66, 0.9
    %v163 = vmul.f32 %v67, 0.9
    %v164 = vmul.f32 %v68, 0.9
    %v165 = vmul.f32 %v69, 0.9
    %v166 = vmul.f32 %v70, 0.9
    %v167 = vmul.f32 %v71, 0.9
    %v168 = vmul.f32 %v72, 0.9
    %v169 = vmul.f32 %v73, 0.9
    %v170 = vmul.f32 %v74, 0.9
    %v171 = vmul.f32 %v75, 0.9
    %v172 = vmul.f32 %v76, 0.9
    %v173 = vmul.f32 %v77, 0.9
    %v174 = vmul.f32 %v78, 0.9
    %v175 = vmul.f32 %v79, 0.9
    %v176 = vmul.f32 %v80, 0.9
    %v177 = vmul.f32 %v81, 0.9
    %v178 = vmul.f32 %v146, %v50
    %v179 = vmul.f32 %v147, %v51
    %v180 = vmul.f32 %v148, %v52
    %v181 = vmul.f32 %v149, %v53
    %v182 = vmul.f32 %v150, %v54
    %v183 = vmul.f32 %v151, %v55
    %v184 = vmul.f32 %v152, %v56
    %v185 = vmul.f32 %v153, %v57
    %v186 = vmul.f32 %v154, %v58
    %v187 = vmul.f32 %v155, %v59
    %v188 = vmul.f32 %v156, %v60
    %v189 = vmul.f32 %v157, %v61
    %v190 = vmul.f32 %v158, %v62
    %v191 = vmul.f32 %v159, %v63
    %v192 = vmul.f32 %v160, %v64
    %v193 = vmul.f32 %v161, %v65
    %v194 = vmul.f32 %v162, %v66
    %v195 = vmul.f32 %v163, %v67
    %v196 = vmul.f32 %v164, %v68
    %v197 = vmul.f32 %v165, %v69
    %v198 = vmul.f32 %v166, %v70
    %v199 = vmul.f32 %v167, %v71
    %v200 = vmul.f32 %v168, %v72
    %v201 = vmul.f32 %v169, %v73
    %v202 = vmul.f32 %v170, %v74
    %v203 = vmul.f32 %v171, %v75
    %v204 = vmul.f32 %v172, %v76
    %v205 = vmul.f32 %v173, %v77
    %v206 = vmul.f32 %v174, %v78
    %v207 = vmul.f32 %v175, %v79
    %v208 = vmul.f32 %v176, %v80
    %v209 = vmul.f32 %v177, %v81
    %211 = vset.pattern.permute.xlu0 0
    %212 = vperm.xlu0 %211, %v178
    %v213 = vpop.permute.xlu0 %212
    %216 = vset.pattern.permute.xlu0 0
    %217 = vperm.xlu0 %216, %v179
    %v218 = vpop.permute.xlu0 %217
    %221 = vset.pattern.permute.xlu0 0
    %222 = vperm.xlu0 %221, %v180
    %v223 = vpop.permute.xlu0 %222
    %226 = vset.pattern.permute.xlu0 0
    %227 = vperm.xlu0 %226, %v181
    %v228 = vpop.permute.xlu0 %227
    %231 = vset.pattern.permute.xlu0 0
    %232 = vperm.xlu0 %231, %v182
    %v233 = vpop.permute.xlu0 %232
    %236 = vset.pattern.permute.xlu0 0
    %237 = vperm.xlu0 %236, %v183
    %v238 = vpop.permute.xlu0 %237
    %241 = vset.pattern.permute.xlu0 0
    %242 = vperm.xlu0 %241, %v184
    %v243 = vpop.permute.xlu0 %242
    %246 = vset.pattern.permute.xlu0 0
    %247 = vperm.xlu0 %246, %v185
    %v248 = vpop.permute.xlu0 %247
    %251 = vset.pattern.permute.xlu0 0
    %252 = vperm.xlu0 %251, %v186
    %v253 = vpop.permute.xlu0 %252
    %256 = vset.pattern.permute.xlu0 0
    %257 = vperm.xlu0 %256, %v187
    %v258 = vpop.permute.xlu0 %257
    %261 = vset.pattern.permute.xlu0 0
    %262 = vperm.xlu0 %261, %v188
    %v263 = vpop.permute.xlu0 %262
    %266 = vset.pattern.permute.xlu0 0
    %267 = vperm.xlu0 %266, %v189
    %v268 = vpop.permute.xlu0 %267
    %271 = vset.pattern.permute.xlu0 0
    %272 = vperm.xlu0 %271, %v190
    %v273 = vpop.permute.xlu0 %272
    %276 = vset.pattern.permute.xlu0 0
    %277 = vperm.xlu0 %276, %v191
    %v278 = vpop.permute.xlu0 %277
    %281 = vset.pattern.permute.xlu0 0
    %282 = vperm.xlu0 %281, %v192
    %v283 = vpop.permute.xlu0 %282
    %286 = vset.pattern.permute.xlu0 0
    %287 = vperm.xlu0 %286, %v193
    %v288 = vpop.permute.xlu0 %287
    %291 = vset.pattern.permute.xlu0 0
    %292 = vperm.xlu0 %291, %v194
    %v293 = vpop.permute.xlu0 %292
    %296 = vset.pattern.permute.xlu0 0
    %297 = vperm.xlu0 %296, %v195
    %v298 = vpop.permute.xlu0 %297
    %301 = vset.pattern.permute.xlu0 0
    %302 = vperm.xlu0 %301, %v196
    %v303 = vpop.permute.xlu0 %302
    %306 = vset.pattern.permute.xlu0 0
    %307 = vperm.xlu0 %306, %v197
    %v308 = vpop.permute.xlu0 %307
    %311 = vset.pattern.permute.xlu0 0
    %312 = vperm.xlu0 %311, %v198
    %v313 = vpop.permute.xlu0 %312
    %316 = vset.pattern.permute.xlu0 0
    %317 = vperm.xlu0 %316, %v199
    %v318 = vpop.permute.xlu0 %317
    %321 = vset.pattern.permute.xlu0 0
    %322 = vperm.xlu0 %321, %v200
    %v323 = vpop.permute.xlu0 %322
    %326 = vset.pattern.permute.xlu0 0
    %327 = vperm.xlu0 %326, %v201
    %v328 = vpop.permute.xlu0 %327
    %331 = vset.pattern.permute.xlu0 0
    %332 = vperm.xlu0 %331, %v202
    %v333 = vpop.permute.xlu0 %332
    %336 = vset.pattern.permute.xlu0 0
    %337 = vperm.xlu0 %336, %v203
    %v338 = vpop.permute.xlu0 %337
    %341 = vset.pattern.permute.xlu0 0
    %342 = vperm.xlu0 %341, %v204
    %v343 = vpop.permute.xlu0 %342
    %346 = vset.pattern.permute.xlu0 0
    %347 = vperm.xlu0 %346, %v205
    %v348 = vpop.permute.xlu0 %347
    %351 = vset.pattern.permute.xlu0 0
    %352 = vperm.xlu0 %351, %v206
    %v353 = vpop.permute.xlu0 %352
    %356 = vset.pattern.permute.xlu0 0
    %357 = vperm.xlu0 %356, %v207
    %v358 = vpop.permute.xlu0 %357
    %361 = vset.pattern.permute.xlu0 0
    %362 = vperm.xlu0 %361, %v208
    %v363 = vpop.permute.xlu0 %362
    %366 = vset.pattern.permute.xlu0 0
    %367 = vperm.xlu0 %366, %v209
    %v368 = vpop.permute.xlu0 %367
    %v370 = vmul.f32 %v50, 0.1
    %v371 = vmul.f32 %v51, 0.1
    %v372 = vmul.f32 %v52, 0.1
    %v373 = vmul.f32 %v53, 0.1
    %v374 = vmul.f32 %v54, 0.1
    %v375 = vmul.f32 %v55, 0.1
    %v376 = vmul.f32 %v56, 0.1
    %v377 = vmul.f32 %v57, 0.1
    %v378 = vmul.f32 %v58, 0.1
    %v379 = vmul.f32 %v59, 0.1
    %v380 = vmul.f32 %v60, 0.1
    %v381 = vmul.f32 %v61, 0.1
    %v382 = vmul.f32 %v62, 0.1
    %v383 = vmul.f32 %v63, 0.1
    %v384 = vmul.f32 %v64, 0.1
    %v385 = vmul.f32 %v65, 0.1
    %v386 = vmul.f32 %v66, 0.1
    %v387 = vmul.f32 %v67, 0.1
    %v388 = vmul.f32 %v68, 0.1
    %v389 = vmul.f32 %v69, 0.1
    %v390 = vmul.f32 %v70, 0.1
    %v391 = vmul.f32 %v71, 0.1
    %v392 = vmul.f32 %v72, 0.1
    %v393 = vmul.f32 %v73, 0.1
    %v394 = vmul.f32 %v74, 0.1
    %v395 = vmul.f32 %v75, 0.1
    %v396 = vmul.f32 %v76, 0.1
    %v397 = vmul.f32 %v77, 0.1
    %v398 = vmul.f32 %v78, 0.1
    %v399 = vmul.f32 %v79, 0.1
    %v400 = vmul.f32 %v80, 0.1
    %v401 = vmul.f32 %v81, 0.1
    %403 = vset.pattern.permute.xlu0 0
    %404 = vperm.xlu0 %403, %v370
    %v405 = vpop.permute.xlu0 %404
    %408 = vset.pattern.permute.xlu0 0
    %409 = vperm.xlu0 %408, %v371
    %v410 = vpop.permute.xlu0 %409
    %413 = vset.pattern.permute.xlu0 0
    %414 = vperm.xlu0 %413, %v372
    %v415 = vpop.permute.xlu0 %414
    %418 = vset.pattern.permute.xlu0 0
    %419 = vperm.xlu0 %418, %v373
    %v420 = vpop.permute.xlu0 %419
    %423 = vset.pattern.permute.xlu0 0
    %424 = vperm.xlu0 %423, %v374
    %v425 = vpop.permute.xlu0 %424
    %428 = vset.pattern.permute.xlu0 0
    %429 = vperm.xlu0 %428, %v375
    %v430 = vpop.permute.xlu0 %429
    %433 = vset.pattern.permute.xlu0 0
    %434 = vperm.xlu0 %433, %v376
    %v435 = vpop.permute.xlu0 %434
    %438 = vset.pattern.permute.xlu0 0
    %439 = vperm.xlu0 %438, %v377
    %v440 = vpop.permute.xlu0 %439
    %443 = vset.pattern.permute.xlu0 0
    %444 = vperm.xlu0 %443, %v378
    %v445 = vpop.permute.xlu0 %444
    %448 = vset.pattern.permute.xlu0 0
    %449 = vperm.xlu0 %448, %v379
    %v450 = vpop.permute.xlu0 %449
    %453 = vset.pattern.permute.xlu0 0
    %454 = vperm.xlu0 %453, %v380
    %v455 = vpop.permute.xlu0 %454
    %458 = vset.pattern.permute.xlu0 0
    %459 = vperm.xlu0 %458, %v381
    %v460 = vpop.permute.xlu0 %459
    %463 = vset.pattern.permute.xlu0 0
    %464 = vperm.xlu0 %463, %v382
    %v465 = vpop.permute.xlu0 %464
    %468 = vset.pattern.permute.xlu0 0
    %469 = vperm.xlu0 %468, %v383
    %v470 = vpop.permute.xlu0 %469
    %473 = vset.pattern.permute.xlu0 0
    %474 = vperm.xlu0 %473, %v384
    %v475 = vpop.permute.xlu0 %474
    %478 = vset.pattern.permute.xlu0 0
    %479 = vperm.xlu0 %478, %v385
    %v480 = vpop.permute.xlu0 %479
    %483 = vset.pattern.permute.xlu0 0
    %484 = vperm.xlu0 %483, %v386
    %v485 = vpop.permute.xlu0 %484
    %488 = vset.pattern.permute.xlu0 0
    %489 = vperm.xlu0 %488, %v387
    %v490 = vpop.permute.xlu0 %489
    %493 = vset.pattern.permute.xlu0 0
    %494 = vperm.xlu0 %493, %v388
    %v495 = vpop.permute.xlu0 %494
    %498 = vset.pattern.permute.xlu0 0
    %499 = vperm.xlu0 %498, %v389
    %v500 = vpop.permute.xlu0 %499
    %503 = vset.pattern.permute.xlu0 0
    %504 = vperm.xlu0 %503, %v390
    %v505 = vpop.permute.xlu0 %504
    %508 = vset.pattern.permute.xlu0 0
    %509 = vperm.xlu0 %508, %v391
    %v510 = vpop.permute.xlu0 %509
    %513 = vset.pattern.permute.xlu0 0
    %514 = vperm.xlu0 %513, %v392
    %v515 = vpop.permute.xlu0 %514
    %518 = vset.pattern.permute.xlu0 0
    %519 = vperm.xlu0 %518, %v393
    %v520 = vpop.permute.xlu0 %519
    %523 = vset.pattern.permute.xlu0 0
    %524 = vperm.xlu0 %523, %v394
    %v525 = vpop.permute.xlu0 %524
    %528 = vset.pattern.permute.xlu0 0
    %529 = vperm.xlu0 %528, %v395
    %v530 = vpop.permute.xlu0 %529
    %533 = vset.pattern.permute.xlu0 0
    %534 = vperm.xlu0 %533, %v396
    %v535 = vpop.permute.xlu0 %534
    %538 = vset.pattern.permute.xlu0 0
    %539 = vperm.xlu0 %538, %v397
    %v540 = vpop.permute.xlu0 %539
    %543 = vset.pattern.permute.xlu0 0
    %544 = vperm.xlu0 %543, %v398
    %v545 = vpop.permute.xlu0 %544
    %548 = vset.pattern.permute.xlu0 0
    %549 = vperm.xlu0 %548, %v399
    %v550 = vpop.permute.xlu0 %549
    %553 = vset.pattern.permute.xlu0 0
    %554 = vperm.xlu0 %553, %v400
    %v555 = vpop.permute.xlu0 %554
    %558 = vset.pattern.permute.xlu0 0
    %559 = vperm.xlu0 %558, %v401
    %v560 = vpop.permute.xlu0 %559
    %v562 = vmul.f32 %v405, %v114
    %v563 = vmul.f32 %v410, %v115
    %v564 = vmul.f32 %v415, %v116
    %v565 = vmul.f32 %v420, %v117
    %v566 = vmul.f32 %v425, %v118
    %v567 = vmul.f32 %v430, %v119
    %v568 = vmul.f32 %v435, %v120
    %v569 = vmul.f32 %v440, %v121
    %v570 = vmul.f32 %v445, %v122
    %v571 = vmul.f32 %v450, %v123
    %v572 = vmul.f32 %v455, %v124
    %v573 = vmul.f32 %v460, %v125
    %v574 = vmul.f32 %v465, %v126
    %v575 = vmul.f32 %v470, %v127
    %v576 = vmul.f32 %v475, %v128
    %v577 = vmul.f32 %v480, %v129
    %v578 = vmul.f32 %v485, %v130
    %v579 = vmul.f32 %v490, %v131
    %v580 = vmul.f32 %v495, %v132
    %v581 = vmul.f32 %v500, %v133
    %v582 = vmul.f32 %v505, %v134
    %v583 = vmul.f32 %v510, %v135
    %v584 = vmul.f32 %v515, %v136
    %v585 = vmul.f32 %v520, %v137
    %v586 = vmul.f32 %v525, %v138
    %v587 = vmul.f32 %v530, %v139
    %v588 = vmul.f32 %v535, %v140
    %v589 = vmul.f32 %v540, %v141
    %v590 = vmul.f32 %v545, %v142
    %v591 = vmul.f32 %v550, %v143
    %v592 = vmul.f32 %v555, %v144
    %v593 = vmul.f32 %v560, %v145
    %595 = vset.pattern.permute.xlu0 0
    %596 = vperm.xlu0 %595, %v50
    %v597 = vpop.permute.xlu0 %596
    %600 = vset.pattern.permute.xlu0 0
    %601 = vperm.xlu0 %600, %v51
    %v602 = vpop.permute.xlu0 %601
    %605 = vset.pattern.permute.xlu0 0
    %606 = vperm.xlu0 %605, %v52
    %v607 = vpop.permute.xlu0 %606
    %610 = vset.pattern.permute.xlu0 0
    %611 = vperm.xlu0 %610, %v53
    %v612 = vpop.permute.xlu0 %611
    %615 = vset.pattern.permute.xlu0 0
    %616 = vperm.xlu0 %615, %v54
    %v617 = vpop.permute.xlu0 %616
    %620 = vset.pattern.permute.xlu0 0
    %621 = vperm.xlu0 %620, %v55
    %v622 = vpop.permute.xlu0 %621
    %625 = vset.pattern.permute.xlu0 0
    %626 = vperm.xlu0 %625, %v56
    %v627 = vpop.permute.xlu0 %626
    %630 = vset.pattern.permute.xlu0 0
    %631 = vperm.xlu0 %630, %v57
    %v632 = vpop.permute.xlu0 %631
    %635 = vset.pattern.permute.xlu0 0
    %636 = vperm.xlu0 %635, %v58
    %v637 = vpop.permute.xlu0 %636
    %640 = vset.pattern.permute.xlu0 0
    %641 = vperm.xlu0 %640, %v59
    %v642 = vpop.permute.xlu0 %641
    %645 = vset.pattern.permute.xlu0 0
    %646 = vperm.xlu0 %645, %v60
    %v647 = vpop.permute.xlu0 %646
    %650 = vset.pattern.permute.xlu0 0
    %651 = vperm.xlu0 %650, %v61
    %v652 = vpop.permute.xlu0 %651
    %655 = vset.pattern.permute.xlu0 0
    %656 = vperm.xlu0 %655, %v62
    %v657 = vpop.permute.xlu0 %656
    %660 = vset.pattern.permute.xlu0 0
    %661 = vperm.xlu0 %660, %v63
    %v662 = vpop.permute.xlu0 %661
    %665 = vset.pattern.permute.xlu0 0
    %666 = vperm.xlu0 %665, %v64
    %v667 = vpop.permute.xlu0 %666
    %670 = vset.pattern.permute.xlu0 0
    %671 = vperm.xlu0 %670, %v65
    %v672 = vpop.permute.xlu0 %671
    %675 = vset.pattern.permute.xlu0 0
    %676 = vperm.xlu0 %675, %v66
    %v677 = vpop.permute.xlu0 %676
    %680 = vset.pattern.permute.xlu0 0
    %681 = vperm.xlu0 %680, %v67
    %v682 = vpop.permute.xlu0 %681
    %685 = vset.pattern.permute.xlu0 0
    %686 = vperm.xlu0 %685, %v68
    %v687 = vpop.permute.xlu0 %686
    %690 = vset.pattern.permute.xlu0 0
    %691 = vperm.xlu0 %690, %v69
    %v692 = vpop.permute.xlu0 %691
    %695 = vset.pattern.permute.xlu0 0
    %696 = vperm.xlu0 %695, %v70
    %v697 = vpop.permute.xlu0 %696
    %700 = vset.pattern.permute.xlu0 0
    %701 = vperm.xlu0 %700, %v71
    %v702 = vpop.permute.xlu0 %701
    %705 = vset.pattern.permute.xlu0 0
    %706 = vperm.xlu0 %705, %v72
    %v707 = vpop.permute.xlu0 %706
    %710 = vset.pattern.permute.xlu0 0
    %711 = vperm.xlu0 %710, %v73
    %v712 = vpop.permute.xlu0 %711
    %715 = vset.pattern.permute.xlu0 0
    %716 = vperm.xlu0 %715, %v74
    %v717 = vpop.permute.xlu0 %716
    %720 = vset.pattern.permute.xlu0 0
    %721 = vperm.xlu0 %720, %v75
    %v722 = vpop.permute.xlu0 %721
    %725 = vset.pattern.permute.xlu0 0
    %726 = vperm.xlu0 %725, %v76
    %v727 = vpop.permute.xlu0 %726
    %730 = vset.pattern.permute.xlu0 0
    %731 = vperm.xlu0 %730, %v77
    %v732 = vpop.permute.xlu0 %731
    %735 = vset.pattern.permute.xlu0 0
    %736 = vperm.xlu0 %735, %v78
    %v737 = vpop.permute.xlu0 %736
    %740 = vset.pattern.permute.xlu0 0
    %741 = vperm.xlu0 %740, %v79
    %v742 = vpop.permute.xlu0 %741
    %745 = vset.pattern.permute.xlu0 0
    %746 = vperm.xlu0 %745, %v80
    %v747 = vpop.permute.xlu0 %746
    %750 = vset.pattern.permute.xlu0 0
    %751 = vperm.xlu0 %750, %v81
    %v752 = vpop.permute.xlu0 %751
    %v754 = vmul.f32 %v597, %v114
    %v755 = vmul.f32 %v602, %v115
    %v756 = vmul.f32 %v607, %v116
    %v757 = vmul.f32 %v612, %v117
    %v758 = vmul.f32 %v617, %v118
    %v759 = vmul.f32 %v622, %v119
    %v760 = vmul.f32 %v627, %v120
    %v761 = vmul.f32 %v632, %v121
    %v762 = vmul.f32 %v637, %v122
    %v763 = vmul.f32 %v642, %v123
    %v764 = vmul.f32 %v647, %v124
    %v765 = vmul.f32 %v652, %v125
    %v766 = vmul.f32 %v657, %v126
    %v767 = vmul.f32 %v662, %v127
    %v768 = vmul.f32 %v667, %v128
    %v769 = vmul.f32 %v672, %v129
    %v770 = vmul.f32 %v677, %v130
    %v771 = vmul.f32 %v682, %v131
    %v772 = vmul.f32 %v687, %v132
    %v773 = vmul.f32 %v692, %v133
    %v774 = vmul.f32 %v697, %v134
    %v775 = vmul.f32 %v702, %v135
    %v776 = vmul.f32 %v707, %v136
    %v777 = vmul.f32 %v712, %v137
    %v778 = vmul.f32 %v717, %v138
    %v779 = vmul.f32 %v722, %v139
    %v780 = vmul.f32 %v727, %v140
    %v781 = vmul.f32 %v732, %v141
    %v782 = vmul.f32 %v737, %v142
    %v783 = vmul.f32 %v742, %v143
    %v784 = vmul.f32 %v747, %v144
    %v785 = vmul.f32 %v752, %v145
    %v786 = vpack.c.bf16 %v754, %v754
    %v787 = vpack.c.bf16 %v755, %v755
    %v788 = vpack.c.bf16 %v756, %v756
    %v789 = vpack.c.bf16 %v757, %v757
    %v790 = vpack.c.bf16 %v758, %v758
    %v791 = vpack.c.bf16 %v759, %v759
    %v792 = vpack.c.bf16 %v760, %v760
    %v793 = vpack.c.bf16 %v761, %v761
    %v794 = vpack.c.bf16 %v762, %v762
    %v795 = vpack.c.bf16 %v763, %v763
    %v796 = vpack.c.bf16 %v764, %v764
    %v797 = vpack.c.bf16 %v765, %v765
    %v798 = vpack.c.bf16 %v766, %v766
    %v799 = vpack.c.bf16 %v767, %v767
    %v800 = vpack.c.bf16 %v768, %v768
    %v801 = vpack.c.bf16 %v769, %v769
    %v802 = vpack.c.bf16 %v770, %v770
    %v803 = vpack.c.bf16 %v771, %v771
    %v804 = vpack.c.bf16 %v772, %v772
    %v805 = vpack.c.bf16 %v773, %v773
    %v806 = vpack.c.bf16 %v774, %v774
    %v807 = vpack.c.bf16 %v775, %v775
    %v808 = vpack.c.bf16 %v776, %v776
    %v809 = vpack.c.bf16 %v777, %v777
    %v810 = vpack.c.bf16 %v778, %v778
    %v811 = vpack.c.bf16 %v779, %v779
    %v812 = vpack.c.bf16 %v780, %v780
    %v813 = vpack.c.bf16 %v781, %v781
    %v814 = vpack.c.bf16 %v782, %v782
    %v815 = vpack.c.bf16 %v783, %v783
    %v816 = vpack.c.bf16 %v784, %v784
    %v817 = vpack.c.bf16 %v785, %v785
    %v818 = vunpack.c.l.bf16 %v786
    %v819 = vunpack.c.l.bf16 %v787
    %v820 = vunpack.c.l.bf16 %v788
    %v821 = vunpack.c.l.bf16 %v789
    %v822 = vunpack.c.l.bf16 %v790
    %v823 = vunpack.c.l.bf16 %v791
    %v824 = vunpack.c.l.bf16 %v792
    %v825 = vunpack.c.l.bf16 %v793
    %v826 = vunpack.c.l.bf16 %v794
    %v827 = vunpack.c.l.bf16 %v795
    %v828 = vunpack.c.l.bf16 %v796
    %v829 = vunpack.c.l.bf16 %v797
    %v830 = vunpack.c.l.bf16 %v798
    %v831 = vunpack.c.l.bf16 %v799
    %v832 = vunpack.c.l.bf16 %v800
    %v833 = vunpack.c.l.bf16 %v801
    %v834 = vunpack.c.l.bf16 %v802
    %v835 = vunpack.c.l.bf16 %v803
    %v836 = vunpack.c.l.bf16 %v804
    %v837 = vunpack.c.l.bf16 %v805
    %v838 = vunpack.c.l.bf16 %v806
    %v839 = vunpack.c.l.bf16 %v807
    %v840 = vunpack.c.l.bf16 %v808
    %v841 = vunpack.c.l.bf16 %v809
    %v842 = vunpack.c.l.bf16 %v810
    %v843 = vunpack.c.l.bf16 %v811
    %v844 = vunpack.c.l.bf16 %v812
    %v845 = vunpack.c.l.bf16 %v813
    %v846 = vunpack.c.l.bf16 %v814
    %v847 = vunpack.c.l.bf16 %v815
    %v848 = vunpack.c.l.bf16 %v816
    %v849 = vunpack.c.l.bf16 %v817
    %v850 = vsub.f32 %v754, %v818
    %v851 = vsub.f32 %v755, %v819
    %v852 = vsub.f32 %v756, %v820
    %v853 = vsub.f32 %v757, %v821
    %v854 = vsub.f32 %v758, %v822
    %v855 = vsub.f32 %v759, %v823
    %v856 = vsub.f32 %v760, %v824
    %v857 = vsub.f32 %v761, %v825
    %v858 = vsub.f32 %v762, %v826
    %v859 = vsub.f32 %v763, %v827
    %v860 = vsub.f32 %v764, %v828
    %v861 = vsub.f32 %v765, %v829
    %v862 = vsub.f32 %v766, %v830
    %v863 = vsub.f32 %v767, %v831
    %v864 = vsub.f32 %v768, %v832
    %v865 = vsub.f32 %v769, %v833
    %v866 = vsub.f32 %v770, %v834
    %v867 = vsub.f32 %v771, %v835
    %v868 = vsub.f32 %v772, %v836
    %v869 = vsub.f32 %v773, %v837
    %v870 = vsub.f32 %v774, %v838
    %v871 = vsub.f32 %v775, %v839
    %v872 = vsub.f32 %v776, %v840
    %v873 = vsub.f32 %v777, %v841
    %v874 = vsub.f32 %v778, %v842
    %v875 = vsub.f32 %v779, %v843
    %v876 = vsub.f32 %v780, %v844
    %v877 = vsub.f32 %v781, %v845
    %v878 = vsub.f32 %v782, %v846
    %v879 = vsub.f32 %v783, %v847
    %v880 = vsub.f32 %v784, %v848
    %v881 = vsub.f32 %v785, %v849
    %v882 = vpack.c.bf16 %v851, %v850
    %v883 = vpack.c.bf16 %v853, %v852
    %v884 = vpack.c.bf16 %v855, %v854
    %v885 = vpack.c.bf16 %v857, %v856
    %v886 = vpack.c.bf16 %v859, %v858
    %v887 = vpack.c.bf16 %v861, %v860
    %v888 = vpack.c.bf16 %v863, %v862
    %v889 = vpack.c.bf16 %v865, %v864
    %v890 = vpack.c.bf16 %v867, %v866
    %v891 = vpack.c.bf16 %v869, %v868
    %v892 = vpack.c.bf16 %v871, %v870
    %v893 = vpack.c.bf16 %v873, %v872
    %v894 = vpack.c.bf16 %v875, %v874
    %v895 = vpack.c.bf16 %v877, %v876
    %v896 = vpack.c.bf16 %v879, %v878
    %v897 = vpack.c.bf16 %v881, %v880
    %v930 = vunpack.c.l.b16 %v18
    %v931 = vunpack.c.h.b16 %v18
    %v932 = vunpack.c.l.b16 %v19
    %v933 = vunpack.c.h.b16 %v19
    %v934 = vunpack.c.l.b16 %v20
    %v935 = vunpack.c.h.b16 %v20
    %v936 = vunpack.c.l.b16 %v21
    %v937 = vunpack.c.h.b16 %v21
    %v938 = vunpack.c.l.b16 %v22
    %v939 = vunpack.c.h.b16 %v22
    %v940 = vunpack.c.l.b16 %v23
    %v941 = vunpack.c.h.b16 %v23
    %v942 = vunpack.c.l.b16 %v24
    %v943 = vunpack.c.h.b16 %v24
    %v944 = vunpack.c.l.b16 %v25
    %v945 = vunpack.c.h.b16 %v25
    %v946 = vunpack.c.l.b16 %v26
    %v947 = vunpack.c.h.b16 %v26
    %v948 = vunpack.c.l.b16 %v27
    %v949 = vunpack.c.h.b16 %v27
    %v950 = vunpack.c.l.b16 %v28
    %v951 = vunpack.c.h.b16 %v28
    %v952 = vunpack.c.l.b16 %v29
    %v953 = vunpack.c.h.b16 %v29
    %v954 = vunpack.c.l.b16 %v30
    %v955 = vunpack.c.h.b16 %v30
    %v956 = vunpack.c.l.b16 %v31
    %v957 = vunpack.c.h.b16 %v31
    %v958 = vunpack.c.l.b16 %v32
    %v959 = vunpack.c.h.b16 %v32
    %v960 = vunpack.c.l.b16 %v33
    %v961 = vunpack.c.h.b16 %v33
    %v962 = vunpack.c.l.b16 %v34
    %v963 = vunpack.c.h.b16 %v34
    %v964 = vunpack.c.l.b16 %v35
    %v965 = vunpack.c.h.b16 %v35
    %v966 = vunpack.c.l.b16 %v36
    %v967 = vunpack.c.h.b16 %v36
    %v968 = vunpack.c.l.b16 %v37
    %v969 = vunpack.c.h.b16 %v37
    %v970 = vunpack.c.l.b16 %v38
    %v971 = vunpack.c.h.b16 %v38
    %v972 = vunpack.c.l.b16 %v39
    %v973 = vunpack.c.h.b16 %v39
    %v974 = vunpack.c.l.b16 %v40
    %v975 = vunpack.c.h.b16 %v40
    %v976 = vunpack.c.l.b16 %v41
    %v977 = vunpack.c.h.b16 %v41
    %v978 = vunpack.c.l.b16 %v42
    %v979 = vunpack.c.h.b16 %v42
    %v980 = vunpack.c.l.b16 %v43
    %v981 = vunpack.c.h.b16 %v43
    %v982 = vunpack.c.l.b16 %v44
    %v983 = vunpack.c.h.b16 %v44
    %v984 = vunpack.c.l.b16 %v45
    %v985 = vunpack.c.h.b16 %v45
    %v986 = vunpack.c.l.b16 %v46
    %v987 = vunpack.c.h.b16 %v46
    %v988 = vunpack.c.l.b16 %v47
    %v989 = vunpack.c.h.b16 %v47
    %v990 = vunpack.c.l.b16 %v48
    %v991 = vunpack.c.h.b16 %v48
    %v992 = vunpack.c.l.b16 %v49
    %v993 = vunpack.c.h.b16 %v49
    %v994 = vpack.c.b16 %v932, %v930
    %v995 = vpack.c.b16 %v933, %v931
    %v996 = vpack.c.b16 %v936, %v934
    %v997 = vpack.c.b16 %v937, %v935
    %v998 = vpack.c.b16 %v940, %v938
    %v999 = vpack.c.b16 %v941, %v939
    %v1000 = vpack.c.b16 %v944, %v942
    %v1001 = vpack.c.b16 %v945, %v943
    %v1002 = vpack.c.b16 %v948, %v946
    %v1003 = vpack.c.b16 %v949, %v947
    %v1004 = vpack.c.b16 %v952, %v950
    %v1005 = vpack.c.b16 %v953, %v951
    %v1006 = vpack.c.b16 %v956, %v954
    %v1007 = vpack.c.b16 %v957, %v955
    %v1008 = vpack.c.b16 %v960, %v958
    %v1009 = vpack.c.b16 %v961, %v959
    %v1010 = vpack.c.b16 %v964, %v962
    %v1011 = vpack.c.b16 %v965, %v963
    %v1012 = vpack.c.b16 %v968, %v966
    %v1013 = vpack.c.b16 %v969, %v967
    %v1014 = vpack.c.b16 %v972, %v970
    %v1015 = vpack.c.b16 %v973, %v971
    %v1016 = vpack.c.b16 %v976, %v974
    %v1017 = vpack.c.b16 %v977, %v975
    %v1018 = vpack.c.b16 %v980, %v978
    %v1019 = vpack.c.b16 %v981, %v979
    %v1020 = vpack.c.b16 %v984, %v982
    %v1021 = vpack.c.b16 %v985, %v983
    %v1022 = vpack.c.b16 %v988, %v986
    %v1023 = vpack.c.b16 %v989, %v987
    %v1024 = vpack.c.b16 %v992, %v990
    %v1025 = vpack.c.b16 %v993, %v991
    %1058 = vmatpush.bf16.msra.mxu0 %v889
    %1059 = vmatpush.bf16.msra.mxu0 %v888
    %1060 = vmatpush.bf16.msra.mxu0 %v887
    %1061 = vmatpush.bf16.msra.mxu0 %v886
    %1062 = vmatpush.bf16.msra.mxu0 %v885
    %1063 = vmatpush.bf16.msra.mxu0 %v884
    %1064 = vmatpush.bf16.msra.mxu0 %v883
    %1065 = vmatpush.bf16.msra.mxu0 %v882
    %1066 = vmatmul.bf16.gmra.mxu0 %v994
    %v1067 = vpop.f32.mrf.mxu0
    %v1068 = vadd.f32 0.0, %v1067
    %v1069 = vpop.f32.mrf.mxu0
    %v1070 = vadd.f32 0.0, %v1069
    %1071 = vmatmul.bf16.gmra.mxu0 %v996
    %v1072 = vpop.f32.mrf.mxu0
    %v1073 = vadd.f32 0.0, %v1072
    %v1074 = vpop.f32.mrf.mxu0
    %v1075 = vadd.f32 0.0, %v1074
    %1076 = vmatmul.bf16.gmra.mxu0 %v998
    %v1077 = vpop.f32.mrf.mxu0
    %v1078 = vadd.f32 0.0, %v1077
    %v1079 = vpop.f32.mrf.mxu0
    %v1080 = vadd.f32 0.0, %v1079
    %1081 = vmatmul.bf16.gmra.mxu0 %v1000
    %v1082 = vpop.f32.mrf.mxu0
    %v1083 = vadd.f32 0.0, %v1082
    %v1084 = vpop.f32.mrf.mxu0
    %v1085 = vadd.f32 0.0, %v1084
    %1086 = vmatmul.bf16.gmra.mxu0 %v1002
    %v1087 = vpop.f32.mrf.mxu0
    %v1088 = vadd.f32 0.0, %v1087
    %v1089 = vpop.f32.mrf.mxu0
    %v1090 = vadd.f32 0.0, %v1089
    %1091 = vmatmul.bf16.gmra.mxu0 %v1004
    %v1092 = vpop.f32.mrf.mxu0
    %v1093 = vadd.f32 0.0, %v1092
    %v1094 = vpop.f32.mrf.mxu0
    %v1095 = vadd.f32 0.0, %v1094
    %1096 = vmatmul.bf16.gmra.mxu0 %v1006
    %v1097 = vpop.f32.mrf.mxu0
    %v1098 = vadd.f32 0.0, %v1097
    %v1099 = vpop.f32.mrf.mxu0
    %v1100 = vadd.f32 0.0, %v1099
    %1101 = vmatmul.bf16.gmra.mxu0 %v1008
    %v1102 = vpop.f32.mrf.mxu0
    %v1103 = vadd.f32 0.0, %v1102
    %v1104 = vpop.f32.mrf.mxu0
    %v1105 = vadd.f32 0.0, %v1104
    %1106 = vmatmul.bf16.gmra.mxu0 %v1010
    %v1107 = vpop.f32.mrf.mxu0
    %v1108 = vadd.f32 0.0, %v1107
    %v1109 = vpop.f32.mrf.mxu0
    %v1110 = vadd.f32 0.0, %v1109
    %1111 = vmatmul.bf16.gmra.mxu0 %v1012
    %v1112 = vpop.f32.mrf.mxu0
    %v1113 = vadd.f32 0.0, %v1112
    %v1114 = vpop.f32.mrf.mxu0
    %v1115 = vadd.f32 0.0, %v1114
    %1116 = vmatmul.bf16.gmra.mxu0 %v1014
    %v1117 = vpop.f32.mrf.mxu0
    %v1118 = vadd.f32 0.0, %v1117
    %v1119 = vpop.f32.mrf.mxu0
    %v1120 = vadd.f32 0.0, %v1119
    %1121 = vmatmul.bf16.gmra.mxu0 %v1016
    %v1122 = vpop.f32.mrf.mxu0
    %v1123 = vadd.f32 0.0, %v1122
    %v1124 = vpop.f32.mrf.mxu0
    %v1125 = vadd.f32 0.0, %v1124
    %1126 = vmatmul.bf16.gmra.mxu0 %v1018
    %v1127 = vpop.f32.mrf.mxu0
    %v1128 = vadd.f32 0.0, %v1127
    %v1129 = vpop.f32.mrf.mxu0
    %v1130 = vadd.f32 0.0, %v1129
    %1131 = vmatmul.bf16.gmra.mxu0 %v1020
    %v1132 = vpop.f32.mrf.mxu0
    %v1133 = vadd.f32 0.0, %v1132
    %v1134 = vpop.f32.mrf.mxu0
    %v1135 = vadd.f32 0.0, %v1134
    %1136 = vmatmul.bf16.gmra.mxu0 %v1022
    %v1137 = vpop.f32.mrf.mxu0
    %v1138 = vadd.f32 0.0, %v1137
    %v1139 = vpop.f32.mrf.mxu0
    %v1140 = vadd.f32 0.0, %v1139
    %1141 = vmatmul.bf16.gmra.mxu0 %v1024
    %v1142 = vpop.f32.mrf.mxu0
    %v1143 = vadd.f32 0.0, %v1142
    %v1144 = vpop.f32.mrf.mxu0
    %v1145 = vadd.f32 0.0, %v1144
    %1146 = vdwg.mxu0
    %1147 = vmatpush.bf16.msra.mxu0 %v897
    %1148 = vmatpush.bf16.msra.mxu0 %v896
    %1149 = vmatpush.bf16.msra.mxu0 %v895
    %1150 = vmatpush.bf16.msra.mxu0 %v894
    %1151 = vmatpush.bf16.msra.mxu0 %v893
    %1152 = vmatpush.bf16.msra.mxu0 %v892
    %1153 = vmatpush.bf16.msra.mxu0 %v891
    %1154 = vmatpush.bf16.msra.mxu0 %v890
    %1155 = vmatmul.bf16.gmra.mxu0 %v995
    %v1156 = vpop.f32.mrf.mxu0
    %v1157 = vadd.f32 %v1068, %v1156
    %v1158 = vpop.f32.mrf.mxu0
    %v1159 = vadd.f32 %v1070, %v1158
    %1160 = vmatmul.bf16.gmra.mxu0 %v997
    %v1161 = vpop.f32.mrf.mxu0
    %v1162 = vadd.f32 %v1073, %v1161
    %v1163 = vpop.f32.mrf.mxu0
    %v1164 = vadd.f32 %v1075, %v1163
    %1165 = vmatmul.bf16.gmra.mxu0 %v999
    %v1166 = vpop.f32.mrf.mxu0
    %v1167 = vadd.f32 %v1078, %v1166
    %v1168 = vpop.f32.mrf.mxu0
    %v1169 = vadd.f32 %v1080, %v1168
    %1170 = vmatmul.bf16.gmra.mxu0 %v1001
    %v1171 = vpop.f32.mrf.mxu0
    %v1172 = vadd.f32 %v1083, %v1171
    %v1173 = vpop.f32.mrf.mxu0
    %v1174 = vadd.f32 %v1085, %v1173
    %1175 = vmatmul.bf16.gmra.mxu0 %v1003
    %v1176 = vpop.f32.mrf.mxu0
    %v1177 = vadd.f32 %v1088, %v1176
    %v1178 = vpop.f32.mrf.mxu0
    %v1179 = vadd.f32 %v1090, %v1178
    %1180 = vmatmul.bf16.gmra.mxu0 %v1005
    %v1181 = vpop.f32.mrf.mxu0
    %v1182 = vadd.f32 %v1093, %v1181
    %v1183 = vpop.f32.mrf.mxu0
    %v1184 = vadd.f32 %v1095, %v1183
    %1185 = vmatmul.bf16.gmra.mxu0 %v1007
    %v1186 = vpop.f32.mrf.mxu0
    %v1187 = vadd.f32 %v1098, %v1186
    %v1188 = vpop.f32.mrf.mxu0
    %v1189 = vadd.f32 %v1100, %v1188
    %1190 = vmatmul.bf16.gmra.mxu0 %v1009
    %v1191 = vpop.f32.mrf.mxu0
    %v1192 = vadd.f32 %v1103, %v1191
    %v1193 = vpop.f32.mrf.mxu0
    %v1194 = vadd.f32 %v1105, %v1193
    %1195 = vmatmul.bf16.gmra.mxu0 %v1011
    %v1196 = vpop.f32.mrf.mxu0
    %v1197 = vadd.f32 %v1108, %v1196
    %v1198 = vpop.f32.mrf.mxu0
    %v1199 = vadd.f32 %v1110, %v1198
    %1200 = vmatmul.bf16.gmra.mxu0 %v1013
    %v1201 = vpop.f32.mrf.mxu0
    %v1202 = vadd.f32 %v1113, %v1201
    %v1203 = vpop.f32.mrf.mxu0
    %v1204 = vadd.f32 %v1115, %v1203
    %1205 = vmatmul.bf16.gmra.mxu0 %v1015
    %v1206 = vpop.f32.mrf.mxu0
    %v1207 = vadd.f32 %v1118, %v1206
    %v1208 = vpop.f32.mrf.mxu0
    %v1209 = vadd.f32 %v1120, %v1208
    %1210 = vmatmul.bf16.gmra.mxu0 %v1017
    %v1211 = vpop.f32.mrf.mxu0
    %v1212 = vadd.f32 %v1123, %v1211
    %v1213 = vpop.f32.mrf.mxu0
    %v1214 = vadd.f32 %v1125, %v1213
    %1215 = vmatmul.bf16.gmra.mxu0 %v1019
    %v1216 = vpop.f32.mrf.mxu0
    %v1217 = vadd.f32 %v1128, %v1216
    %v1218 = vpop.f32.mrf.mxu0
    %v1219 = vadd.f32 %v1130, %v1218
    %1220 = vmatmul.bf16.gmra.mxu0 %v1021
    %v1221 = vpop.f32.mrf.mxu0
    %v1222 = vadd.f32 %v1133, %v1221
    %v1223 = vpop.f32.mrf.mxu0
    %v1224 = vadd.f32 %v1135, %v1223
    %1225 = vmatmul.bf16.gmra.mxu0 %v1023
    %v1226 = vpop.f32.mrf.mxu0
    %v1227 = vadd.f32 %v1138, %v1226
    %v1228 = vpop.f32.mrf.mxu0
    %v1229 = vadd.f32 %v1140, %v1228
    %1230 = vmatmul.bf16.gmra.mxu0 %v1025
    %v1231 = vpop.f32.mrf.mxu0
    %v1232 = vadd.f32 %v1143, %v1231
    %v1233 = vpop.f32.mrf.mxu0
    %v1234 = vadd.f32 %v1145, %v1233
    %1235 = vdwg.mxu0
    %v1268 = vunpack.c.l.b16 %v786
    %v1269 = vunpack.c.l.b16 %v787
    %v1270 = vunpack.c.l.b16 %v788
    %v1271 = vunpack.c.l.b16 %v789
    %v1272 = vunpack.c.l.b16 %v790
    %v1273 = vunpack.c.l.b16 %v791
    %v1274 = vunpack.c.l.b16 %v792
    %v1275 = vunpack.c.l.b16 %v793
    %v1276 = vunpack.c.l.b16 %v794
    %v1277 = vunpack.c.l.b16 %v795
    %v1278 = vunpack.c.l.b16 %v796
    %v1279 = vunpack.c.l.b16 %v797
    %v1280 = vunpack.c.l.b16 %v798
    %v1281 = vunpack.c.l.b16 %v799
    %v1282 = vunpack.c.l.b16 %v800
    %v1283 = vunpack.c.l.b16 %v801
    %v1284 = vunpack.c.l.b16 %v802
    %v1285 = vunpack.c.l.b16 %v803
    %v1286 = vunpack.c.l.b16 %v804
    %v1287 = vunpack.c.l.b16 %v805
    %v1288 = vunpack.c.l.b16 %v806
    %v1289 = vunpack.c.l.b16 %v807
    %v1290 = vunpack.c.l.b16 %v808
    %v1291 = vunpack.c.l.b16 %v809
    %v1292 = vunpack.c.l.b16 %v810
    %v1293 = vunpack.c.l.b16 %v811
    %v1294 = vunpack.c.l.b16 %v812
    %v1295 = vunpack.c.l.b16 %v813
    %v1296 = vunpack.c.l.b16 %v814
    %v1297 = vunpack.c.l.b16 %v815
    %v1298 = vunpack.c.l.b16 %v816
    %v1299 = vunpack.c.l.b16 %v817
    %v1300 = vpack.c.b16 %v1269, %v1268
    %v1301 = vpack.c.b16 %v1271, %v1270
    %v1302 = vpack.c.b16 %v1273, %v1272
    %v1303 = vpack.c.b16 %v1275, %v1274
    %v1304 = vpack.c.b16 %v1277, %v1276
    %v1305 = vpack.c.b16 %v1279, %v1278
    %v1306 = vpack.c.b16 %v1281, %v1280
    %v1307 = vpack.c.b16 %v1283, %v1282
    %v1308 = vpack.c.b16 %v1285, %v1284
    %v1309 = vpack.c.b16 %v1287, %v1286
    %v1310 = vpack.c.b16 %v1289, %v1288
    %v1311 = vpack.c.b16 %v1291, %v1290
    %v1312 = vpack.c.b16 %v1293, %v1292
    %v1313 = vpack.c.b16 %v1295, %v1294
    %v1314 = vpack.c.b16 %v1297, %v1296
    %v1315 = vpack.c.b16 %v1299, %v1298
    %1332 = vmatpush.bf16.msra.mxu0 %v1307
    %1333 = vmatpush.bf16.msra.mxu0 %v1306
    %1334 = vmatpush.bf16.msra.mxu0 %v1305
    %1335 = vmatpush.bf16.msra.mxu0 %v1304
    %1336 = vmatpush.bf16.msra.mxu0 %v1303
    %1337 = vmatpush.bf16.msra.mxu0 %v1302
    %1338 = vmatpush.bf16.msra.mxu0 %v1301
    %1339 = vmatpush.bf16.msra.mxu0 %v1300
    %1340 = vmatmul.bf16.gmra.mxu0 %v994
    %v1341 = vpop.f32.mrf.mxu0
    %v1342 = vadd.f32 %v1157, %v1341
    %v1343 = vpop.f32.mrf.mxu0
    %v1344 = vadd.f32 %v1159, %v1343
    %1345 = vmatmul.bf16.gmra.mxu0 %v996
    %v1346 = vpop.f32.mrf.mxu0
    %v1347 = vadd.f32 %v1162, %v1346
    %v1348 = vpop.f32.mrf.mxu0
    %v1349 = vadd.f32 %v1164, %v1348
    %1350 = vmatmul.bf16.gmra.mxu0 %v998
    %v1351 = vpop.f32.mrf.mxu0
    %v1352 = vadd.f32 %v1167, %v1351
    %v1353 = vpop.f32.mrf.mxu0
    %v1354 = vadd.f32 %v1169, %v1353
    %1355 = vmatmul.bf16.gmra.mxu0 %v1000
    %v1356 = vpop.f32.mrf.mxu0
    %v1357 = vadd.f32 %v1172, %v1356
    %v1358 = vpop.f32.mrf.mxu0
    %v1359 = vadd.f32 %v1174, %v1358
    %1360 = vmatmul.bf16.gmra.mxu0 %v1002
    %v1361 = vpop.f32.mrf.mxu0
    %v1362 = vadd.f32 %v1177, %v1361
    %v1363 = vpop.f32.mrf.mxu0
    %v1364 = vadd.f32 %v1179, %v1363
    %1365 = vmatmul.bf16.gmra.mxu0 %v1004
    %v1366 = vpop.f32.mrf.mxu0
    %v1367 = vadd.f32 %v1182, %v1366
    %v1368 = vpop.f32.mrf.mxu0
    %v1369 = vadd.f32 %v1184, %v1368
    %1370 = vmatmul.bf16.gmra.mxu0 %v1006
    %v1371 = vpop.f32.mrf.mxu0
    %v1372 = vadd.f32 %v1187, %v1371
    %v1373 = vpop.f32.mrf.mxu0
    %v1374 = vadd.f32 %v1189, %v1373
    %1375 = vmatmul.bf16.gmra.mxu0 %v1008
    %v1376 = vpop.f32.mrf.mxu0
    %v1377 = vadd.f32 %v1192, %v1376
    %v1378 = vpop.f32.mrf.mxu0
    %v1379 = vadd.f32 %v1194, %v1378
    %1380 = vmatmul.bf16.gmra.mxu0 %v1010
    %v1381 = vpop.f32.mrf.mxu0
    %v1382 = vadd.f32 %v1197, %v1381
    %v1383 = vpop.f32.mrf.mxu0
    %v1384 = vadd.f32 %v1199, %v1383
    %1385 = vmatmul.bf16.gmra.mxu0 %v1012
    %v1386 = vpop.f32.mrf.mxu0
    %v1387 = vadd.f32 %v1202, %v1386
    %v1388 = vpop.f32.mrf.mxu0
    %v1389 = vadd.f32 %v1204, %v1388
    %1390 = vmatmul.bf16.gmra.mxu0 %v1014
    %v1391 = vpop.f32.mrf.mxu0
    %v1392 = vadd.f32 %v1207, %v1391
    %v1393 = vpop.f32.mrf.mxu0
    %v1394 = vadd.f32 %v1209, %v1393
    %1395 = vmatmul.bf16.gmra.mxu0 %v1016
    %v1396 = vpop.f32.mrf.mxu0
    %v1397 = vadd.f32 %v1212, %v1396
    %v1398 = vpop.f32.mrf.mxu0
    %v1399 = vadd.f32 %v1214, %v1398
    %1400 = vmatmul.bf16.gmra.mxu0 %v1018
    %v1401 = vpop.f32.mrf.mxu0
    %v1402 = vadd.f32 %v1217, %v1401
    %v1403 = vpop.f32.mrf.mxu0
    %v1404 = vadd.f32 %v1219, %v1403
    %1405 = vmatmul.bf16.gmra.mxu0 %v1020
    %v1406 = vpop.f32.mrf.mxu0
    %v1407 = vadd.f32 %v1222, %v1406
    %v1408 = vpop.f32.mrf.mxu0
    %v1409 = vadd.f32 %v1224, %v1408
    %1410 = vmatmul.bf16.gmra.mxu0 %v1022
    %v1411 = vpop.f32.mrf.mxu0
    %v1412 = vadd.f32 %v1227, %v1411
    %v1413 = vpop.f32.mrf.mxu0
    %v1414 = vadd.f32 %v1229, %v1413
    %1415 = vmatmul.bf16.gmra.mxu0 %v1024
    %v1416 = vpop.f32.mrf.mxu0
    %v1417 = vadd.f32 %v1232, %v1416
    %v1418 = vpop.f32.mrf.mxu0
    %v1419 = vadd.f32 %v1234, %v1418
    %1420 = vdwg.mxu0
    %1421 = vmatpush.bf16.msra.mxu0 %v1315
    %1422 = vmatpush.bf16.msra.mxu0 %v1314
    %1423 = vmatpush.bf16.msra.mxu0 %v1313
    %1424 = vmatpush.bf16.msra.mxu0 %v1312
    %1425 = vmatpush.bf16.msra.mxu0 %v1311
    %1426 = vmatpush.bf16.msra.mxu0 %v1310
    %1427 = vmatpush.bf16.msra.mxu0 %v1309
    %1428 = vmatpush.bf16.msra.mxu0 %v1308
    %1429 = vmatmul.bf16.gmra.mxu0 %v995
    %v1430 = vpop.f32.mrf.mxu0
    %v1431 = vadd.f32 %v1342, %v1430
    %v1432 = vpop.f32.mrf.mxu0
    %v1433 = vadd.f32 %v1344, %v1432
    %1434 = vmatmul.bf16.gmra.mxu0 %v997
    %v1435 = vpop.f32.mrf.mxu0
    %v1436 = vadd.f32 %v1347, %v1435
    %v1437 = vpop.f32.mrf.mxu0
    %v1438 = vadd.f32 %v1349, %v1437
    %1439 = vmatmul.bf16.gmra.mxu0 %v999
    %v1440 = vpop.f32.mrf.mxu0
    %v1441 = vadd.f32 %v1352, %v1440
    %v1442 = vpop.f32.mrf.mxu0
    %v1443 = vadd.f32 %v1354, %v1442
    %1444 = vmatmul.bf16.gmra.mxu0 %v1001
    %v1445 = vpop.f32.mrf.mxu0
    %v1446 = vadd.f32 %v1357, %v1445
    %v1447 = vpop.f32.mrf.mxu0
    %v1448 = vadd.f32 %v1359, %v1447
    %1449 = vmatmul.bf16.gmra.mxu0 %v1003
    %v1450 = vpop.f32.mrf.mxu0
    %v1451 = vadd.f32 %v1362, %v1450
    %v1452 = vpop.f32.mrf.mxu0
    %v1453 = vadd.f32 %v1364, %v1452
    %1454 = vmatmul.bf16.gmra.mxu0 %v1005
    %v1455 = vpop.f32.mrf.mxu0
    %v1456 = vadd.f32 %v1367, %v1455
    %v1457 = vpop.f32.mrf.mxu0
    %v1458 = vadd.f32 %v1369, %v1457
    %1459 = vmatmul.bf16.gmra.mxu0 %v1007
    %v1460 = vpop.f32.mrf.mxu0
    %v1461 = vadd.f32 %v1372, %v1460
    %v1462 = vpop.f32.mrf.mxu0
    %v1463 = vadd.f32 %v1374, %v1462
    %1464 = vmatmul.bf16.gmra.mxu0 %v1009
    %v1465 = vpop.f32.mrf.mxu0
    %v1466 = vadd.f32 %v1377, %v1465
    %v1467 = vpop.f32.mrf.mxu0
    %v1468 = vadd.f32 %v1379, %v1467
    %1469 = vmatmul.bf16.gmra.mxu0 %v1011
    %v1470 = vpop.f32.mrf.mxu0
    %v1471 = vadd.f32 %v1382, %v1470
    %v1472 = vpop.f32.mrf.mxu0
    %v1473 = vadd.f32 %v1384, %v1472
    %1474 = vmatmul.bf16.gmra.mxu0 %v1013
    %v1475 = vpop.f32.mrf.mxu0
    %v1476 = vadd.f32 %v1387, %v1475
    %v1477 = vpop.f32.mrf.mxu0
    %v1478 = vadd.f32 %v1389, %v1477
    %1479 = vmatmul.bf16.gmra.mxu0 %v1015
    %v1480 = vpop.f32.mrf.mxu0
    %v1481 = vadd.f32 %v1392, %v1480
    %v1482 = vpop.f32.mrf.mxu0
    %v1483 = vadd.f32 %v1394, %v1482
    %1484 = vmatmul.bf16.gmra.mxu0 %v1017
    %v1485 = vpop.f32.mrf.mxu0
    %v1486 = vadd.f32 %v1397, %v1485
    %v1487 = vpop.f32.mrf.mxu0
    %v1488 = vadd.f32 %v1399, %v1487
    %1489 = vmatmul.bf16.gmra.mxu0 %v1019
    %v1490 = vpop.f32.mrf.mxu0
    %v1491 = vadd.f32 %v1402, %v1490
    %v1492 = vpop.f32.mrf.mxu0
    %v1493 = vadd.f32 %v1404, %v1492
    %1494 = vmatmul.bf16.gmra.mxu0 %v1021
    %v1495 = vpop.f32.mrf.mxu0
    %v1496 = vadd.f32 %v1407, %v1495
    %v1497 = vpop.f32.mrf.mxu0
    %v1498 = vadd.f32 %v1409, %v1497
    %1499 = vmatmul.bf16.gmra.mxu0 %v1023
    %v1500 = vpop.f32.mrf.mxu0
    %v1501 = vadd.f32 %v1412, %v1500
    %v1502 = vpop.f32.mrf.mxu0
    %v1503 = vadd.f32 %v1414, %v1502
    %1504 = vmatmul.bf16.gmra.mxu0 %v1025
    %v1505 = vpop.f32.mrf.mxu0
    %v1506 = vadd.f32 %v1417, %v1505
    %v1507 = vpop.f32.mrf.mxu0
    %v1508 = vadd.f32 %v1419, %v1507
    %1509 = vdwg.mxu0
    %v1510 = vmul.f32 %v213, %v1431
    %v1511 = vmul.f32 %v218, %v1433
    %v1512 = vmul.f32 %v223, %v1436
    %v1513 = vmul.f32 %v228, %v1438
    %v1514 = vmul.f32 %v233, %v1441
    %v1515 = vmul.f32 %v238, %v1443
    %v1516 = vmul.f32 %v243, %v1446
    %v1517 = vmul.f32 %v248, %v1448
    %v1518 = vmul.f32 %v253, %v1451
    %v1519 = vmul.f32 %v258, %v1453
    %v1520 = vmul.f32 %v263, %v1456
    %v1521 = vmul.f32 %v268, %v1458
    %v1522 = vmul.f32 %v273, %v1461
    %v1523 = vmul.f32 %v278, %v1463
    %v1524 = vmul.f32 %v283, %v1466
    %v1525 = vmul.f32 %v288, %v1468
    %v1526 = vmul.f32 %v293, %v1471
    %v1527 = vmul.f32 %v298, %v1473
    %v1528 = vmul.f32 %v303, %v1476
    %v1529 = vmul.f32 %v308, %v1478
    %v1530 = vmul.f32 %v313, %v1481
    %v1531 = vmul.f32 %v318, %v1483
    %v1532 = vmul.f32 %v323, %v1486
    %v1533 = vmul.f32 %v328, %v1488
    %v1534 = vmul.f32 %v333, %v1491
    %v1535 = vmul.f32 %v338, %v1493
    %v1536 = vmul.f32 %v343, %v1496
    %v1537 = vmul.f32 %v348, %v1498
    %v1538 = vmul.f32 %v353, %v1501
    %v1539 = vmul.f32 %v358, %v1503
    %v1540 = vmul.f32 %v363, %v1506
    %v1541 = vmul.f32 %v368, %v1508
    %v1542 = vadd.f32 %v1510, %v562
    %v1543 = vadd.f32 %v1511, %v563
    %v1544 = vadd.f32 %v1512, %v564
    %v1545 = vadd.f32 %v1513, %v565
    %v1546 = vadd.f32 %v1514, %v566
    %v1547 = vadd.f32 %v1515, %v567
    %v1548 = vadd.f32 %v1516, %v568
    %v1549 = vadd.f32 %v1517, %v569
    %v1550 = vadd.f32 %v1518, %v570
    %v1551 = vadd.f32 %v1519, %v571
    %v1552 = vadd.f32 %v1520, %v572
    %v1553 = vadd.f32 %v1521, %v573
    %v1554 = vadd.f32 %v1522, %v574
    %v1555 = vadd.f32 %v1523, %v575
    %v1556 = vadd.f32 %v1524, %v576
    %v1557 = vadd.f32 %v1525, %v577
    %v1558 = vadd.f32 %v1526, %v578
    %v1559 = vadd.f32 %v1527, %v579
    %v1560 = vadd.f32 %v1528, %v580
    %v1561 = vadd.f32 %v1529, %v581
    %v1562 = vadd.f32 %v1530, %v582
    %v1563 = vadd.f32 %v1531, %v583
    %v1564 = vadd.f32 %v1532, %v584
    %v1565 = vadd.f32 %v1533, %v585
    %v1566 = vadd.f32 %v1534, %v586
    %v1567 = vadd.f32 %v1535, %v587
    %v1568 = vadd.f32 %v1536, %v588
    %v1569 = vadd.f32 %v1537, %v589
    %v1570 = vadd.f32 %v1538, %v590
    %v1571 = vadd.f32 %v1539, %v591
    %v1572 = vadd.f32 %v1540, %v592
    %v1573 = vadd.f32 %v1541, %v593
    %v1574 = vpack.c.bf16 %v1542, %v1542
    %v1575 = vpack.c.bf16 %v1543, %v1543
    %v1576 = vpack.c.bf16 %v1544, %v1544
    %v1577 = vpack.c.bf16 %v1545, %v1545
    %v1578 = vpack.c.bf16 %v1546, %v1546
    %v1579 = vpack.c.bf16 %v1547, %v1547
    %v1580 = vpack.c.bf16 %v1548, %v1548
    %v1581 = vpack.c.bf16 %v1549, %v1549
    %v1582 = vpack.c.bf16 %v1550, %v1550
    %v1583 = vpack.c.bf16 %v1551, %v1551
    %v1584 = vpack.c.bf16 %v1552, %v1552
    %v1585 = vpack.c.bf16 %v1553, %v1553
    %v1586 = vpack.c.bf16 %v1554, %v1554
    %v1587 = vpack.c.bf16 %v1555, %v1555
    %v1588 = vpack.c.bf16 %v1556, %v1556
    %v1589 = vpack.c.bf16 %v1557, %v1557
    %v1590 = vpack.c.bf16 %v1558, %v1558
    %v1591 = vpack.c.bf16 %v1559, %v1559
    %v1592 = vpack.c.bf16 %v1560, %v1560
    %v1593 = vpack.c.bf16 %v1561, %v1561
    %v1594 = vpack.c.bf16 %v1562, %v1562
    %v1595 = vpack.c.bf16 %v1563, %v1563
    %v1596 = vpack.c.bf16 %v1564, %v1564
    %v1597 = vpack.c.bf16 %v1565, %v1565
    %v1598 = vpack.c.bf16 %v1566, %v1566
    %v1599 = vpack.c.bf16 %v1567, %v1567
    %v1600 = vpack.c.bf16 %v1568, %v1568
    %v1601 = vpack.c.bf16 %v1569, %v1569
    %v1602 = vpack.c.bf16 %v1570, %v1570
    %v1603 = vpack.c.bf16 %v1571, %v1571
    %v1604 = vpack.c.bf16 %v1572, %v1572
    %v1605 = vpack.c.bf16 %v1573, %v1573
    %v1606 = vunpack.c.l.bf16 %v1574
    %v1607 = vunpack.c.l.bf16 %v1575
    %v1608 = vunpack.c.l.bf16 %v1576
    %v1609 = vunpack.c.l.bf16 %v1577
    %v1610 = vunpack.c.l.bf16 %v1578
    %v1611 = vunpack.c.l.bf16 %v1579
    %v1612 = vunpack.c.l.bf16 %v1580
    %v1613 = vunpack.c.l.bf16 %v1581
    %v1614 = vunpack.c.l.bf16 %v1582
    %v1615 = vunpack.c.l.bf16 %v1583
    %v1616 = vunpack.c.l.bf16 %v1584
    %v1617 = vunpack.c.l.bf16 %v1585
    %v1618 = vunpack.c.l.bf16 %v1586
    %v1619 = vunpack.c.l.bf16 %v1587
    %v1620 = vunpack.c.l.bf16 %v1588
    %v1621 = vunpack.c.l.bf16 %v1589
    %v1622 = vunpack.c.l.bf16 %v1590
    %v1623 = vunpack.c.l.bf16 %v1591
    %v1624 = vunpack.c.l.bf16 %v1592
    %v1625 = vunpack.c.l.bf16 %v1593
    %v1626 = vunpack.c.l.bf16 %v1594
    %v1627 = vunpack.c.l.bf16 %v1595
    %v1628 = vunpack.c.l.bf16 %v1596
    %v1629 = vunpack.c.l.bf16 %v1597
    %v1630 = vunpack.c.l.bf16 %v1598
    %v1631 = vunpack.c.l.bf16 %v1599
    %v1632 = vunpack.c.l.bf16 %v1600
    %v1633 = vunpack.c.l.bf16 %v1601
    %v1634 = vunpack.c.l.bf16 %v1602
    %v1635 = vunpack.c.l.bf16 %v1603
    %v1636 = vunpack.c.l.bf16 %v1604
    %v1637 = vunpack.c.l.bf16 %v1605
    %v1638 = vsub.f32 %v1542, %v1606
    %v1639 = vsub.f32 %v1543, %v1607
    %v1640 = vsub.f32 %v1544, %v1608
    %v1641 = vsub.f32 %v1545, %v1609
    %v1642 = vsub.f32 %v1546, %v1610
    %v1643 = vsub.f32 %v1547, %v1611
    %v1644 = vsub.f32 %v1548, %v1612
    %v1645 = vsub.f32 %v1549, %v1613
    %v1646 = vsub.f32 %v1550, %v1614
    %v1647 = vsub.f32 %v1551, %v1615
    %v1648 = vsub.f32 %v1552, %v1616
    %v1649 = vsub.f32 %v1553, %v1617
    %v1650 = vsub.f32 %v1554, %v1618
    %v1651 = vsub.f32 %v1555, %v1619
    %v1652 = vsub.f32 %v1556, %v1620
    %v1653 = vsub.f32 %v1557, %v1621
    %v1654 = vsub.f32 %v1558, %v1622
    %v1655 = vsub.f32 %v1559, %v1623
    %v1656 = vsub.f32 %v1560, %v1624
    %v1657 = vsub.f32 %v1561, %v1625
    %v1658 = vsub.f32 %v1562, %v1626
    %v1659 = vsub.f32 %v1563, %v1627
    %v1660 = vsub.f32 %v1564, %v1628
    %v1661 = vsub.f32 %v1565, %v1629
    %v1662 = vsub.f32 %v1566, %v1630
    %v1663 = vsub.f32 %v1567, %v1631
    %v1664 = vsub.f32 %v1568, %v1632
    %v1665 = vsub.f32 %v1569, %v1633
    %v1666 = vsub.f32 %v1570, %v1634
    %v1667 = vsub.f32 %v1571, %v1635
    %v1668 = vsub.f32 %v1572, %v1636
    %v1669 = vsub.f32 %v1573, %v1637
    %v1670 = vpack.c.bf16 %v1639, %v1638
    %v1671 = vpack.c.bf16 %v1641, %v1640
    %v1672 = vpack.c.bf16 %v1643, %v1642
    %v1673 = vpack.c.bf16 %v1645, %v1644
    %v1674 = vpack.c.bf16 %v1647, %v1646
    %v1675 = vpack.c.bf16 %v1649, %v1648
    %v1676 = vpack.c.bf16 %v1651, %v1650
    %v1677 = vpack.c.bf16 %v1653, %v1652
    %v1678 = vpack.c.bf16 %v1655, %v1654
    %v1679 = vpack.c.bf16 %v1657, %v1656
    %v1680 = vpack.c.bf16 %v1659, %v1658
    %v1681 = vpack.c.bf16 %v1661, %v1660
    %v1682 = vpack.c.bf16 %v1663, %v1662
    %v1683 = vpack.c.bf16 %v1665, %v1664
    %v1684 = vpack.c.bf16 %v1667, %v1666
    %v1685 = vpack.c.bf16 %v1669, %v1668
    %1686 = vmatpush.bf16.msra.mxu0 %v1677
    %1687 = vmatpush.bf16.msra.mxu0 %v1676
    %1688 = vmatpush.bf16.msra.mxu0 %v1675
    %1689 = vmatpush.bf16.msra.mxu0 %v1674
    %1690 = vmatpush.bf16.msra.mxu0 %v1673
    %1691 = vmatpush.bf16.msra.mxu0 %v1672
    %1692 = vmatpush.bf16.msra.mxu0 %v1671
    %1693 = vmatpush.bf16.msra.mxu0 %v1670
    %1694 = vmatmul.bf16.gmra.mxu0 %v994
    %v1695 = vpop.f32.mrf.mxu0
    %v1696 = vadd.f32 0.0, %v1695
    %v1697 = vpop.f32.mrf.mxu0
    %v1698 = vadd.f32 0.0, %v1697
    %1699 = vmatmul.bf16.gmra.mxu0 %v996
    %v1700 = vpop.f32.mrf.mxu0
    %v1701 = vadd.f32 0.0, %v1700
    %v1702 = vpop.f32.mrf.mxu0
    %v1703 = vadd.f32 0.0, %v1702
    %1704 = vmatmul.bf16.gmra.mxu0 %v998
    %v1705 = vpop.f32.mrf.mxu0
    %v1706 = vadd.f32 0.0, %v1705
    %v1707 = vpop.f32.mrf.mxu0
    %v1708 = vadd.f32 0.0, %v1707
    %1709 = vmatmul.bf16.gmra.mxu0 %v1000
    %v1710 = vpop.f32.mrf.mxu0
    %v1711 = vadd.f32 0.0, %v1710
    %v1712 = vpop.f32.mrf.mxu0
    %v1713 = vadd.f32 0.0, %v1712
    %1714 = vmatmul.bf16.gmra.mxu0 %v1002
    %v1715 = vpop.f32.mrf.mxu0
    %v1716 = vadd.f32 0.0, %v1715
    %v1717 = vpop.f32.mrf.mxu0
    %v1718 = vadd.f32 0.0, %v1717
    %1719 = vmatmul.bf16.gmra.mxu0 %v1004
    %v1720 = vpop.f32.mrf.mxu0
    %v1721 = vadd.f32 0.0, %v1720
    %v1722 = vpop.f32.mrf.mxu0
    %v1723 = vadd.f32 0.0, %v1722
    %1724 = vmatmul.bf16.gmra.mxu0 %v1006
    %v1725 = vpop.f32.mrf.mxu0
    %v1726 = vadd.f32 0.0, %v1725
    %v1727 = vpop.f32.mrf.mxu0
    %v1728 = vadd.f32 0.0, %v1727
    %1729 = vmatmul.bf16.gmra.mxu0 %v1008
    %v1730 = vpop.f32.mrf.mxu0
    %v1731 = vadd.f32 0.0, %v1730
    %v1732 = vpop.f32.mrf.mxu0
    %v1733 = vadd.f32 0.0, %v1732
    %1734 = vmatmul.bf16.gmra.mxu0 %v1010
    %v1735 = vpop.f32.mrf.mxu0
    %v1736 = vadd.f32 0.0, %v1735
    %v1737 = vpop.f32.mrf.mxu0
    %v1738 = vadd.f32 0.0, %v1737
    %1739 = vmatmul.bf16.gmra.mxu0 %v1012
    %v1740 = vpop.f32.mrf.mxu0
    %v1741 = vadd.f32 0.0, %v1740
    %v1742 = vpop.f32.mrf.mxu0
    %v1743 = vadd.f32 0.0, %v1742
    %1744 = vmatmul.bf16.gmra.mxu0 %v1014
    %v1745 = vpop.f32.mrf.mxu0
    %v1746 = vadd.f32 0.0, %v1745
    %v1747 = vpop.f32.mrf.mxu0
    %v1748 = vadd.f32 0.0, %v1747
    %1749 = vmatmul.bf16.gmra.mxu0 %v1016
    %v1750 = vpop.f32.mrf.mxu0
    %v1751 = vadd.f32 0.0, %v1750
    %v1752 = vpop.f32.mrf.mxu0
    %v1753 = vadd.f32 0.0, %v1752
    %1754 = vmatmul.bf16.gmra.mxu0 %v1018
    %v1755 = vpop.f32.mrf.mxu0
    %v1756 = vadd.f32 0.0, %v1755
    %v1757 = vpop.f32.mrf.mxu0
    %v1758 = vadd.f32 0.0, %v1757
    %1759 = vmatmul.bf16.gmra.mxu0 %v1020
    %v1760 = vpop.f32.mrf.mxu0
    %v1761 = vadd.f32 0.0, %v1760
    %v1762 = vpop.f32.mrf.mxu0
    %v1763 = vadd.f32 0.0, %v1762
    %1764 = vmatmul.bf16.gmra.mxu0 %v1022
    %v1765 = vpop.f32.mrf.mxu0
    %v1766 = vadd.f32 0.0, %v1765
    %v1767 = vpop.f32.mrf.mxu0
    %v1768 = vadd.f32 0.0, %v1767
    %1769 = vmatmul.bf16.gmra.mxu0 %v1024
    %v1770 = vpop.f32.mrf.mxu0
    %v1771 = vadd.f32 0.0, %v1770
    %v1772 = vpop.f32.mrf.mxu0
    %v1773 = vadd.f32 0.0, %v1772
    %1774 = vdwg.mxu0
    %1775 = vmatpush.bf16.msra.mxu0 %v1685
    %1776 = vmatpush.bf16.msra.mxu0 %v1684
    %1777 = vmatpush.bf16.msra.mxu0 %v1683
    %1778 = vmatpush.bf16.msra.mxu0 %v1682
    %1779 = vmatpush.bf16.msra.mxu0 %v1681
    %1780 = vmatpush.bf16.msra.mxu0 %v1680
    %1781 = vmatpush.bf16.msra.mxu0 %v1679
    %1782 = vmatpush.bf16.msra.mxu0 %v1678
    %1783 = vmatmul.bf16.gmra.mxu0 %v995
    %v1784 = vpop.f32.mrf.mxu0
    %v1785 = vadd.f32 %v1696, %v1784
    %v1786 = vpop.f32.mrf.mxu0
    %v1787 = vadd.f32 %v1698, %v1786
    %1788 = vmatmul.bf16.gmra.mxu0 %v997
    %v1789 = vpop.f32.mrf.mxu0
    %v1790 = vadd.f32 %v1701, %v1789
    %v1791 = vpop.f32.mrf.mxu0
    %v1792 = vadd.f32 %v1703, %v1791
    %1793 = vmatmul.bf16.gmra.mxu0 %v999
    %v1794 = vpop.f32.mrf.mxu0
    %v1795 = vadd.f32 %v1706, %v1794
    %v1796 = vpop.f32.mrf.mxu0
    %v1797 = vadd.f32 %v1708, %v1796
    %1798 = vmatmul.bf16.gmra.mxu0 %v1001
    %v1799 = vpop.f32.mrf.mxu0
    %v1800 = vadd.f32 %v1711, %v1799
    %v1801 = vpop.f32.mrf.mxu0
    %v1802 = vadd.f32 %v1713, %v1801
    %1803 = vmatmul.bf16.gmra.mxu0 %v1003
    %v1804 = vpop.f32.mrf.mxu0
    %v1805 = vadd.f32 %v1716, %v1804
    %v1806 = vpop.f32.mrf.mxu0
    %v1807 = vadd.f32 %v1718, %v1806
    %1808 = vmatmul.bf16.gmra.mxu0 %v1005
    %v1809 = vpop.f32.mrf.mxu0
    %v1810 = vadd.f32 %v1721, %v1809
    %v1811 = vpop.f32.mrf.mxu0
    %v1812 = vadd.f32 %v1723, %v1811
    %1813 = vmatmul.bf16.gmra.mxu0 %v1007
    %v1814 = vpop.f32.mrf.mxu0
    %v1815 = vadd.f32 %v1726, %v1814
    %v1816 = vpop.f32.mrf.mxu0
    %v1817 = vadd.f32 %v1728, %v1816
    %1818 = vmatmul.bf16.gmra.mxu0 %v1009
    %v1819 = vpop.f32.mrf.mxu0
    %v1820 = vadd.f32 %v1731, %v1819
    %v1821 = vpop.f32.mrf.mxu0
    %v1822 = vadd.f32 %v1733, %v1821
    %1823 = vmatmul.bf16.gmra.mxu0 %v1011
    %v1824 = vpop.f32.mrf.mxu0
    %v1825 = vadd.f32 %v1736, %v1824
    %v1826 = vpop.f32.mrf.mxu0
    %v1827 = vadd.f32 %v1738, %v1826
    %1828 = vmatmul.bf16.gmra.mxu0 %v1013
    %v1829 = vpop.f32.mrf.mxu0
    %v1830 = vadd.f32 %v1741, %v1829
    %v1831 = vpop.f32.mrf.mxu0
    %v1832 = vadd.f32 %v1743, %v1831
    %1833 = vmatmul.bf16.gmra.mxu0 %v1015
    %v1834 = vpop.f32.mrf.mxu0
    %v1835 = vadd.f32 %v1746, %v1834
    %v1836 = vpop.f32.mrf.mxu0
    %v1837 = vadd.f32 %v1748, %v1836
    %1838 = vmatmul.bf16.gmra.mxu0 %v1017
    %v1839 = vpop.f32.mrf.mxu0
    %v1840 = vadd.f32 %v1751, %v1839
    %v1841 = vpop.f32.mrf.mxu0
    %v1842 = vadd.f32 %v1753, %v1841
    %1843 = vmatmul.bf16.gmra.mxu0 %v1019
    %v1844 = vpop.f32.mrf.mxu0
    %v1845 = vadd.f32 %v1756, %v1844
    %v1846 = vpop.f32.mrf.mxu0
    %v1847 = vadd.f32 %v1758, %v1846
    %1848 = vmatmul.bf16.gmra.mxu0 %v1021
    %v1849 = vpop.f32.mrf.mxu0
    %v1850 = vadd.f32 %v1761, %v1849
    %v1851 = vpop.f32.mrf.mxu0
    %v1852 = vadd.f32 %v1763, %v1851
    %1853 = vmatmul.bf16.gmra.mxu0 %v1023
    %v1854 = vpop.f32.mrf.mxu0
    %v1855 = vadd.f32 %v1766, %v1854
    %v1856 = vpop.f32.mrf.mxu0
    %v1857 = vadd.f32 %v1768, %v1856
    %1858 = vmatmul.bf16.gmra.mxu0 %v1025
    %v1859 = vpop.f32.mrf.mxu0
    %v1860 = vadd.f32 %v1771, %v1859
    %v1861 = vpop.f32.mrf.mxu0
    %v1862 = vadd.f32 %v1773, %v1861
    %1863 = vdwg.mxu0
    %v1896 = vunpack.c.l.b16 %v1574
    %v1897 = vunpack.c.l.b16 %v1575
    %v1898 = vunpack.c.l.b16 %v1576
    %v1899 = vunpack.c.l.b16 %v1577
    %v1900 = vunpack.c.l.b16 %v1578
    %v1901 = vunpack.c.l.b16 %v1579
    %v1902 = vunpack.c.l.b16 %v1580
    %v1903 = vunpack.c.l.b16 %v1581
    %v1904 = vunpack.c.l.b16 %v1582
    %v1905 = vunpack.c.l.b16 %v1583
    %v1906 = vunpack.c.l.b16 %v1584
    %v1907 = vunpack.c.l.b16 %v1585
    %v1908 = vunpack.c.l.b16 %v1586
    %v1909 = vunpack.c.l.b16 %v1587
    %v1910 = vunpack.c.l.b16 %v1588
    %v1911 = vunpack.c.l.b16 %v1589
    %v1912 = vunpack.c.l.b16 %v1590
    %v1913 = vunpack.c.l.b16 %v1591
    %v1914 = vunpack.c.l.b16 %v1592
    %v1915 = vunpack.c.l.b16 %v1593
    %v1916 = vunpack.c.l.b16 %v1594
    %v1917 = vunpack.c.l.b16 %v1595
    %v1918 = vunpack.c.l.b16 %v1596
    %v1919 = vunpack.c.l.b16 %v1597
    %v1920 = vunpack.c.l.b16 %v1598
    %v1921 = vunpack.c.l.b16 %v1599
    %v1922 = vunpack.c.l.b16 %v1600
    %v1923 = vunpack.c.l.b16 %v1601
    %v1924 = vunpack.c.l.b16 %v1602
    %v1925 = vunpack.c.l.b16 %v1603
    %v1926 = vunpack.c.l.b16 %v1604
    %v1927 = vunpack.c.l.b16 %v1605
    %v1928 = vpack.c.b16 %v1897, %v1896
    %v1929 = vpack.c.b16 %v1899, %v1898
    %v1930 = vpack.c.b16 %v1901, %v1900
    %v1931 = vpack.c.b16 %v1903, %v1902
    %v1932 = vpack.c.b16 %v1905, %v1904
    %v1933 = vpack.c.b16 %v1907, %v1906
    %v1934 = vpack.c.b16 %v1909, %v1908
    %v1935 = vpack.c.b16 %v1911, %v1910
    %v1936 = vpack.c.b16 %v1913, %v1912
    %v1937 = vpack.c.b16 %v1915, %v1914
    %v1938 = vpack.c.b16 %v1917, %v1916
    %v1939 = vpack.c.b16 %v1919, %v1918
    %v1940 = vpack.c.b16 %v1921, %v1920
    %v1941 = vpack.c.b16 %v1923, %v1922
    %v1942 = vpack.c.b16 %v1925, %v1924
    %v1943 = vpack.c.b16 %v1927, %v1926
    %1960 = vmatpush.bf16.msra.mxu0 %v1935
    %1961 = vmatpush.bf16.msra.mxu0 %v1934
    %1962 = vmatpush.bf16.msra.mxu0 %v1933
    %1963 = vmatpush.bf16.msra.mxu0 %v1932
    %1964 = vmatpush.bf16.msra.mxu0 %v1931
    %1965 = vmatpush.bf16.msra.mxu0 %v1930
    %1966 = vmatpush.bf16.msra.mxu0 %v1929
    %1967 = vmatpush.bf16.msra.mxu0 %v1928
    %1968 = vmatmul.bf16.gmra.mxu0 %v994
    %v1969 = vpop.f32.mrf.mxu0
    %v1970 = vadd.f32 %v1785, %v1969
    %v1971 = vpop.f32.mrf.mxu0
    %v1972 = vadd.f32 %v1787, %v1971
    %1973 = vmatmul.bf16.gmra.mxu0 %v996
    %v1974 = vpop.f32.mrf.mxu0
    %v1975 = vadd.f32 %v1790, %v1974
    %v1976 = vpop.f32.mrf.mxu0
    %v1977 = vadd.f32 %v1792, %v1976
    %1978 = vmatmul.bf16.gmra.mxu0 %v998
    %v1979 = vpop.f32.mrf.mxu0
    %v1980 = vadd.f32 %v1795, %v1979
    %v1981 = vpop.f32.mrf.mxu0
    %v1982 = vadd.f32 %v1797, %v1981
    %1983 = vmatmul.bf16.gmra.mxu0 %v1000
    %v1984 = vpop.f32.mrf.mxu0
    %v1985 = vadd.f32 %v1800, %v1984
    %v1986 = vpop.f32.mrf.mxu0
    %v1987 = vadd.f32 %v1802, %v1986
    %1988 = vmatmul.bf16.gmra.mxu0 %v1002
    %v1989 = vpop.f32.mrf.mxu0
    %v1990 = vadd.f32 %v1805, %v1989
    %v1991 = vpop.f32.mrf.mxu0
    %v1992 = vadd.f32 %v1807, %v1991
    %1993 = vmatmul.bf16.gmra.mxu0 %v1004
    %v1994 = vpop.f32.mrf.mxu0
    %v1995 = vadd.f32 %v1810, %v1994
    %v1996 = vpop.f32.mrf.mxu0
    %v1997 = vadd.f32 %v1812, %v1996
    %1998 = vmatmul.bf16.gmra.mxu0 %v1006
    %v1999 = vpop.f32.mrf.mxu0
    %v2000 = vadd.f32 %v1815, %v1999
    %v2001 = vpop.f32.mrf.mxu0
    %v2002 = vadd.f32 %v1817, %v2001
    %2003 = vmatmul.bf16.gmra.mxu0 %v1008
    %v2004 = vpop.f32.mrf.mxu0
    %v2005 = vadd.f32 %v1820, %v2004
    %v2006 = vpop.f32.mrf.mxu0
    %v2007 = vadd.f32 %v1822, %v2006
    %2008 = vmatmul.bf16.gmra.mxu0 %v1010
    %v2009 = vpop.f32.mrf.mxu0
    %v2010 = vadd.f32 %v1825, %v2009
    %v2011 = vpop.f32.mrf.mxu0
    %v2012 = vadd.f32 %v1827, %v2011
    %2013 = vmatmul.bf16.gmra.mxu0 %v1012
    %v2014 = vpop.f32.mrf.mxu0
    %v2015 = vadd.f32 %v1830, %v2014
    %v2016 = vpop.f32.mrf.mxu0
    %v2017 = vadd.f32 %v1832, %v2016
    %2018 = vmatmul.bf16.gmra.mxu0 %v1014
    %v2019 = vpop.f32.mrf.mxu0
    %v2020 = vadd.f32 %v1835, %v2019
    %v2021 = vpop.f32.mrf.mxu0
    %v2022 = vadd.f32 %v1837, %v2021
    %2023 = vmatmul.bf16.gmra.mxu0 %v1016
    %v2024 = vpop.f32.mrf.mxu0
    %v2025 = vadd.f32 %v1840, %v2024
    %v2026 = vpop.f32.mrf.mxu0
    %v2027 = vadd.f32 %v1842, %v2026
    %2028 = vmatmul.bf16.gmra.mxu0 %v1018
    %v2029 = vpop.f32.mrf.mxu0
    %v2030 = vadd.f32 %v1845, %v2029
    %v2031 = vpop.f32.mrf.mxu0
    %v2032 = vadd.f32 %v1847, %v2031
    %2033 = vmatmul.bf16.gmra.mxu0 %v1020
    %v2034 = vpop.f32.mrf.mxu0
    %v2035 = vadd.f32 %v1850, %v2034
    %v2036 = vpop.f32.mrf.mxu0
    %v2037 = vadd.f32 %v1852, %v2036
    %2038 = vmatmul.bf16.gmra.mxu0 %v1022
    %v2039 = vpop.f32.mrf.mxu0
    %v2040 = vadd.f32 %v1855, %v2039
    %v2041 = vpop.f32.mrf.mxu0
    %v2042 = vadd.f32 %v1857, %v2041
    %2043 = vmatmul.bf16.gmra.mxu0 %v1024
    %v2044 = vpop.f32.mrf.mxu0
    %v2045 = vadd.f32 %v1860, %v2044
    %v2046 = vpop.f32.mrf.mxu0
    %v2047 = vadd.f32 %v1862, %v2046
    %2048 = vdwg.mxu0
    %2049 = vmatpush.bf16.msra.mxu0 %v1943
    %2050 = vmatpush.bf16.msra.mxu0 %v1942
    %2051 = vmatpush.bf16.msra.mxu0 %v1941
    %2052 = vmatpush.bf16.msra.mxu0 %v1940
    %2053 = vmatpush.bf16.msra.mxu0 %v1939
    %2054 = vmatpush.bf16.msra.mxu0 %v1938
    %2055 = vmatpush.bf16.msra.mxu0 %v1937
    %2056 = vmatpush.bf16.msra.mxu0 %v1936
    %2057 = vmatmul.bf16.gmra.mxu0 %v995
    %v2058 = vpop.f32.mrf.mxu0
    %v2059 = vadd.f32 %v1970, %v2058
    %v2060 = vpop.f32.mrf.mxu0
    %v2061 = vadd.f32 %v1972, %v2060
    %2062 = vmatmul.bf16.gmra.mxu0 %v997
    %v2063 = vpop.f32.mrf.mxu0
    %v2064 = vadd.f32 %v1975, %v2063
    %v2065 = vpop.f32.mrf.mxu0
    %v2066 = vadd.f32 %v1977, %v2065
    %2067 = vmatmul.bf16.gmra.mxu0 %v999
    %v2068 = vpop.f32.mrf.mxu0
    %v2069 = vadd.f32 %v1980, %v2068
    %v2070 = vpop.f32.mrf.mxu0
    %v2071 = vadd.f32 %v1982, %v2070
    %2072 = vmatmul.bf16.gmra.mxu0 %v1001
    %v2073 = vpop.f32.mrf.mxu0
    %v2074 = vadd.f32 %v1985, %v2073
    %v2075 = vpop.f32.mrf.mxu0
    %v2076 = vadd.f32 %v1987, %v2075
    %2077 = vmatmul.bf16.gmra.mxu0 %v1003
    %v2078 = vpop.f32.mrf.mxu0
    %v2079 = vadd.f32 %v1990, %v2078
    %v2080 = vpop.f32.mrf.mxu0
    %v2081 = vadd.f32 %v1992, %v2080
    %2082 = vmatmul.bf16.gmra.mxu0 %v1005
    %v2083 = vpop.f32.mrf.mxu0
    %v2084 = vadd.f32 %v1995, %v2083
    %v2085 = vpop.f32.mrf.mxu0
    %v2086 = vadd.f32 %v1997, %v2085
    %2087 = vmatmul.bf16.gmra.mxu0 %v1007
    %v2088 = vpop.f32.mrf.mxu0
    %v2089 = vadd.f32 %v2000, %v2088
    %v2090 = vpop.f32.mrf.mxu0
    %v2091 = vadd.f32 %v2002, %v2090
    %2092 = vmatmul.bf16.gmra.mxu0 %v1009
    %v2093 = vpop.f32.mrf.mxu0
    %v2094 = vadd.f32 %v2005, %v2093
    %v2095 = vpop.f32.mrf.mxu0
    %v2096 = vadd.f32 %v2007, %v2095
    %2097 = vmatmul.bf16.gmra.mxu0 %v1011
    %v2098 = vpop.f32.mrf.mxu0
    %v2099 = vadd.f32 %v2010, %v2098
    %v2100 = vpop.f32.mrf.mxu0
    %v2101 = vadd.f32 %v2012, %v2100
    %2102 = vmatmul.bf16.gmra.mxu0 %v1013
    %v2103 = vpop.f32.mrf.mxu0
    %v2104 = vadd.f32 %v2015, %v2103
    %v2105 = vpop.f32.mrf.mxu0
    %v2106 = vadd.f32 %v2017, %v2105
    %2107 = vmatmul.bf16.gmra.mxu0 %v1015
    %v2108 = vpop.f32.mrf.mxu0
    %v2109 = vadd.f32 %v2020, %v2108
    %v2110 = vpop.f32.mrf.mxu0
    %v2111 = vadd.f32 %v2022, %v2110
    %2112 = vmatmul.bf16.gmra.mxu0 %v1017
    %v2113 = vpop.f32.mrf.mxu0
    %v2114 = vadd.f32 %v2025, %v2113
    %v2115 = vpop.f32.mrf.mxu0
    %v2116 = vadd.f32 %v2027, %v2115
    %2117 = vmatmul.bf16.gmra.mxu0 %v1019
    %v2118 = vpop.f32.mrf.mxu0
    %v2119 = vadd.f32 %v2030, %v2118
    %v2120 = vpop.f32.mrf.mxu0
    %v2121 = vadd.f32 %v2032, %v2120
    %2122 = vmatmul.bf16.gmra.mxu0 %v1021
    %v2123 = vpop.f32.mrf.mxu0
    %v2124 = vadd.f32 %v2035, %v2123
    %v2125 = vpop.f32.mrf.mxu0
    %v2126 = vadd.f32 %v2037, %v2125
    %2127 = vmatmul.bf16.gmra.mxu0 %v1023
    %v2128 = vpop.f32.mrf.mxu0
    %v2129 = vadd.f32 %v2040, %v2128
    %v2130 = vpop.f32.mrf.mxu0
    %v2131 = vadd.f32 %v2042, %v2130
    %2132 = vmatmul.bf16.gmra.mxu0 %v1025
    %v2133 = vpop.f32.mrf.mxu0
    %v2134 = vadd.f32 %v2045, %v2133
    %v2135 = vpop.f32.mrf.mxu0
    %v2136 = vadd.f32 %v2047, %v2135
    %2137 = vdwg.mxu0
    %v2138 = vmul.f32 %v213, %v2059
    %v2139 = vmul.f32 %v218, %v2061
    %v2140 = vmul.f32 %v223, %v2064
    %v2141 = vmul.f32 %v228, %v2066
    %v2142 = vmul.f32 %v233, %v2069
    %v2143 = vmul.f32 %v238, %v2071
    %v2144 = vmul.f32 %v243, %v2074
    %v2145 = vmul.f32 %v248, %v2076
    %v2146 = vmul.f32 %v253, %v2079
    %v2147 = vmul.f32 %v258, %v2081
    %v2148 = vmul.f32 %v263, %v2084
    %v2149 = vmul.f32 %v268, %v2086
    %v2150 = vmul.f32 %v273, %v2089
    %v2151 = vmul.f32 %v278, %v2091
    %v2152 = vmul.f32 %v283, %v2094
    %v2153 = vmul.f32 %v288, %v2096
    %v2154 = vmul.f32 %v293, %v2099
    %v2155 = vmul.f32 %v298, %v2101
    %v2156 = vmul.f32 %v303, %v2104
    %v2157 = vmul.f32 %v308, %v2106
    %v2158 = vmul.f32 %v313, %v2109
    %v2159 = vmul.f32 %v318, %v2111
    %v2160 = vmul.f32 %v323, %v2114
    %v2161 = vmul.f32 %v328, %v2116
    %v2162 = vmul.f32 %v333, %v2119
    %v2163 = vmul.f32 %v338, %v2121
    %v2164 = vmul.f32 %v343, %v2124
    %v2165 = vmul.f32 %v348, %v2126
    %v2166 = vmul.f32 %v353, %v2129
    %v2167 = vmul.f32 %v358, %v2131
    %v2168 = vmul.f32 %v363, %v2134
    %v2169 = vmul.f32 %v368, %v2136
    %v2170 = vadd.f32 %v2138, %v562
    %v2171 = vadd.f32 %v2139, %v563
    %v2172 = vadd.f32 %v2140, %v564
    %v2173 = vadd.f32 %v2141, %v565
    %v2174 = vadd.f32 %v2142, %v566
    %v2175 = vadd.f32 %v2143, %v567
    %v2176 = vadd.f32 %v2144, %v568
    %v2177 = vadd.f32 %v2145, %v569
    %v2178 = vadd.f32 %v2146, %v570
    %v2179 = vadd.f32 %v2147, %v571
    %v2180 = vadd.f32 %v2148, %v572
    %v2181 = vadd.f32 %v2149, %v573
    %v2182 = vadd.f32 %v2150, %v574
    %v2183 = vadd.f32 %v2151, %v575
    %v2184 = vadd.f32 %v2152, %v576
    %v2185 = vadd.f32 %v2153, %v577
    %v2186 = vadd.f32 %v2154, %v578
    %v2187 = vadd.f32 %v2155, %v579
    %v2188 = vadd.f32 %v2156, %v580
    %v2189 = vadd.f32 %v2157, %v581
    %v2190 = vadd.f32 %v2158, %v582
    %v2191 = vadd.f32 %v2159, %v583
    %v2192 = vadd.f32 %v2160, %v584
    %v2193 = vadd.f32 %v2161, %v585
    %v2194 = vadd.f32 %v2162, %v586
    %v2195 = vadd.f32 %v2163, %v587
    %v2196 = vadd.f32 %v2164, %v588
    %v2197 = vadd.f32 %v2165, %v589
    %v2198 = vadd.f32 %v2166, %v590
    %v2199 = vadd.f32 %v2167, %v591
    %v2200 = vadd.f32 %v2168, %v592
    %v2201 = vadd.f32 %v2169, %v593
    %v2202 = vpack.c.bf16 %v2170, %v2170
    %v2203 = vpack.c.bf16 %v2171, %v2171
    %v2204 = vpack.c.bf16 %v2172, %v2172
    %v2205 = vpack.c.bf16 %v2173, %v2173
    %v2206 = vpack.c.bf16 %v2174, %v2174
    %v2207 = vpack.c.bf16 %v2175, %v2175
    %v2208 = vpack.c.bf16 %v2176, %v2176
    %v2209 = vpack.c.bf16 %v2177, %v2177
    %v2210 = vpack.c.bf16 %v2178, %v2178
    %v2211 = vpack.c.bf16 %v2179, %v2179
    %v2212 = vpack.c.bf16 %v2180, %v2180
    %v2213 = vpack.c.bf16 %v2181, %v2181
    %v2214 = vpack.c.bf16 %v2182, %v2182
    %v2215 = vpack.c.bf16 %v2183, %v2183
    %v2216 = vpack.c.bf16 %v2184, %v2184
    %v2217 = vpack.c.bf16 %v2185, %v2185
    %v2218 = vpack.c.bf16 %v2186, %v2186
    %v2219 = vpack.c.bf16 %v2187, %v2187
    %v2220 = vpack.c.bf16 %v2188, %v2188
    %v2221 = vpack.c.bf16 %v2189, %v2189
    %v2222 = vpack.c.bf16 %v2190, %v2190
    %v2223 = vpack.c.bf16 %v2191, %v2191
    %v2224 = vpack.c.bf16 %v2192, %v2192
    %v2225 = vpack.c.bf16 %v2193, %v2193
    %v2226 = vpack.c.bf16 %v2194, %v2194
    %v2227 = vpack.c.bf16 %v2195, %v2195
    %v2228 = vpack.c.bf16 %v2196, %v2196
    %v2229 = vpack.c.bf16 %v2197, %v2197
    %v2230 = vpack.c.bf16 %v2198, %v2198
    %v2231 = vpack.c.bf16 %v2199, %v2199
    %v2232 = vpack.c.bf16 %v2200, %v2200
    %v2233 = vpack.c.bf16 %v2201, %v2201
    %v2234 = vunpack.c.l.bf16 %v2202
    %v2235 = vunpack.c.l.bf16 %v2203
    %v2236 = vunpack.c.l.bf16 %v2204
    %v2237 = vunpack.c.l.bf16 %v2205
    %v2238 = vunpack.c.l.bf16 %v2206
    %v2239 = vunpack.c.l.bf16 %v2207
    %v2240 = vunpack.c.l.bf16 %v2208
    %v2241 = vunpack.c.l.bf16 %v2209
    %v2242 = vunpack.c.l.bf16 %v2210
    %v2243 = vunpack.c.l.bf16 %v2211
    %v2244 = vunpack.c.l.bf16 %v2212
    %v2245 = vunpack.c.l.bf16 %v2213
    %v2246 = vunpack.c.l.bf16 %v2214
    %v2247 = vunpack.c.l.bf16 %v2215
    %v2248 = vunpack.c.l.bf16 %v2216
    %v2249 = vunpack.c.l.bf16 %v2217
    %v2250 = vunpack.c.l.bf16 %v2218
    %v2251 = vunpack.c.l.bf16 %v2219
    %v2252 = vunpack.c.l.bf16 %v2220
    %v2253 = vunpack.c.l.bf16 %v2221
    %v2254 = vunpack.c.l.bf16 %v2222
    %v2255 = vunpack.c.l.bf16 %v2223
    %v2256 = vunpack.c.l.bf16 %v2224
    %v2257 = vunpack.c.l.bf16 %v2225
    %v2258 = vunpack.c.l.bf16 %v2226
    %v2259 = vunpack.c.l.bf16 %v2227
    %v2260 = vunpack.c.l.bf16 %v2228
    %v2261 = vunpack.c.l.bf16 %v2229
    %v2262 = vunpack.c.l.bf16 %v2230
    %v2263 = vunpack.c.l.bf16 %v2231
    %v2264 = vunpack.c.l.bf16 %v2232
    %v2265 = vunpack.c.l.bf16 %v2233
    %v2266 = vsub.f32 %v2170, %v2234
    %v2267 = vsub.f32 %v2171, %v2235
    %v2268 = vsub.f32 %v2172, %v2236
    %v2269 = vsub.f32 %v2173, %v2237
    %v2270 = vsub.f32 %v2174, %v2238
    %v2271 = vsub.f32 %v2175, %v2239
    %v2272 = vsub.f32 %v2176, %v2240
    %v2273 = vsub.f32 %v2177, %v2241
    %v2274 = vsub.f32 %v2178, %v2242
    %v2275 = vsub.f32 %v2179, %v2243
    %v2276 = vsub.f32 %v2180, %v2244
    %v2277 = vsub.f32 %v2181, %v2245
    %v2278 = vsub.f32 %v2182, %v2246
    %v2279 = vsub.f32 %v2183, %v2247
    %v2280 = vsub.f32 %v2184, %v2248
    %v2281 = vsub.f32 %v2185, %v2249
    %v2282 = vsub.f32 %v2186, %v2250
    %v2283 = vsub.f32 %v2187, %v2251
    %v2284 = vsub.f32 %v2188, %v2252
    %v2285 = vsub.f32 %v2189, %v2253
    %v2286 = vsub.f32 %v2190, %v2254
    %v2287 = vsub.f32 %v2191, %v2255
    %v2288 = vsub.f32 %v2192, %v2256
    %v2289 = vsub.f32 %v2193, %v2257
    %v2290 = vsub.f32 %v2194, %v2258
    %v2291 = vsub.f32 %v2195, %v2259
    %v2292 = vsub.f32 %v2196, %v2260
    %v2293 = vsub.f32 %v2197, %v2261
    %v2294 = vsub.f32 %v2198, %v2262
    %v2295 = vsub.f32 %v2199, %v2263
    %v2296 = vsub.f32 %v2200, %v2264
    %v2297 = vsub.f32 %v2201, %v2265
    %v2298 = vpack.c.bf16 %v2267, %v2266
    %v2299 = vpack.c.bf16 %v2269, %v2268
    %v2300 = vpack.c.bf16 %v2271, %v2270
    %v2301 = vpack.c.bf16 %v2273, %v2272
    %v2302 = vpack.c.bf16 %v2275, %v2274
    %v2303 = vpack.c.bf16 %v2277, %v2276
    %v2304 = vpack.c.bf16 %v2279, %v2278
    %v2305 = vpack.c.bf16 %v2281, %v2280
    %v2306 = vpack.c.bf16 %v2283, %v2282
    %v2307 = vpack.c.bf16 %v2285, %v2284
    %v2308 = vpack.c.bf16 %v2287, %v2286
    %v2309 = vpack.c.bf16 %v2289, %v2288
    %v2310 = vpack.c.bf16 %v2291, %v2290
    %v2311 = vpack.c.bf16 %v2293, %v2292
    %v2312 = vpack.c.bf16 %v2295, %v2294
    %v2313 = vpack.c.bf16 %v2297, %v2296
    %2314 = vmatpush.bf16.msra.mxu0 %v2305
    %2315 = vmatpush.bf16.msra.mxu0 %v2304
    %2316 = vmatpush.bf16.msra.mxu0 %v2303
    %2317 = vmatpush.bf16.msra.mxu0 %v2302
    %2318 = vmatpush.bf16.msra.mxu0 %v2301
    %2319 = vmatpush.bf16.msra.mxu0 %v2300
    %2320 = vmatpush.bf16.msra.mxu0 %v2299
    %2321 = vmatpush.bf16.msra.mxu0 %v2298
    %2322 = vmatmul.bf16.gmra.mxu0 %v994
    %v2323 = vpop.f32.mrf.mxu0
    %v2324 = vadd.f32 0.0, %v2323
    %v2325 = vpop.f32.mrf.mxu0
    %v2326 = vadd.f32 0.0, %v2325
    %2327 = vmatmul.bf16.gmra.mxu0 %v996
    %v2328 = vpop.f32.mrf.mxu0
    %v2329 = vadd.f32 0.0, %v2328
    %v2330 = vpop.f32.mrf.mxu0
    %v2331 = vadd.f32 0.0, %v2330
    %2332 = vmatmul.bf16.gmra.mxu0 %v998
    %v2333 = vpop.f32.mrf.mxu0
    %v2334 = vadd.f32 0.0, %v2333
    %v2335 = vpop.f32.mrf.mxu0
    %v2336 = vadd.f32 0.0, %v2335
    %2337 = vmatmul.bf16.gmra.mxu0 %v1000
    %v2338 = vpop.f32.mrf.mxu0
    %v2339 = vadd.f32 0.0, %v2338
    %v2340 = vpop.f32.mrf.mxu0
    %v2341 = vadd.f32 0.0, %v2340
    %2342 = vmatmul.bf16.gmra.mxu0 %v1002
    %v2343 = vpop.f32.mrf.mxu0
    %v2344 = vadd.f32 0.0, %v2343
    %v2345 = vpop.f32.mrf.mxu0
    %v2346 = vadd.f32 0.0, %v2345
    %2347 = vmatmul.bf16.gmra.mxu0 %v1004
    %v2348 = vpop.f32.mrf.mxu0
    %v2349 = vadd.f32 0.0, %v2348
    %v2350 = vpop.f32.mrf.mxu0
    %v2351 = vadd.f32 0.0, %v2350
    %2352 = vmatmul.bf16.gmra.mxu0 %v1006
    %v2353 = vpop.f32.mrf.mxu0
    %v2354 = vadd.f32 0.0, %v2353
    %v2355 = vpop.f32.mrf.mxu0
    %v2356 = vadd.f32 0.0, %v2355
    %2357 = vmatmul.bf16.gmra.mxu0 %v1008
    %v2358 = vpop.f32.mrf.mxu0
    %v2359 = vadd.f32 0.0, %v2358
    %v2360 = vpop.f32.mrf.mxu0
    %v2361 = vadd.f32 0.0, %v2360
    %2362 = vmatmul.bf16.gmra.mxu0 %v1010
    %v2363 = vpop.f32.mrf.mxu0
    %v2364 = vadd.f32 0.0, %v2363
    %v2365 = vpop.f32.mrf.mxu0
    %v2366 = vadd.f32 0.0, %v2365
    %2367 = vmatmul.bf16.gmra.mxu0 %v1012
    %v2368 = vpop.f32.mrf.mxu0
    %v2369 = vadd.f32 0.0, %v2368
    %v2370 = vpop.f32.mrf.mxu0
    %v2371 = vadd.f32 0.0, %v2370
    %2372 = vmatmul.bf16.gmra.mxu0 %v1014
    %v2373 = vpop.f32.mrf.mxu0
    %v2374 = vadd.f32 0.0, %v2373
    %v2375 = vpop.f32.mrf.mxu0
    %v2376 = vadd.f32 0.0, %v2375
    %2377 = vmatmul.bf16.gmra.mxu0 %v1016
    %v2378 = vpop.f32.mrf.mxu0
    %v2379 = vadd.f32 0.0, %v2378
    %v2380 = vpop.f32.mrf.mxu0
    %v2381 = vadd.f32 0.0, %v2380
    %2382 = vmatmul.bf16.gmra.mxu0 %v1018
    %v2383 = vpop.f32.mrf.mxu0
    %v2384 = vadd.f32 0.0, %v2383
    %v2385 = vpop.f32.mrf.mxu0
    %v2386 = vadd.f32 0.0, %v2385
    %2387 = vmatmul.bf16.gmra.mxu0 %v1020
    %v2388 = vpop.f32.mrf.mxu0
    %v2389 = vadd.f32 0.0, %v2388
    %v2390 = vpop.f32.mrf.mxu0
    %v2391 = vadd.f32 0.0, %v2390
    %2392 = vmatmul.bf16.gmra.mxu0 %v1022
    %v2393 = vpop.f32.mrf.mxu0
    %v2394 = vadd.f32 0.0, %v2393
    %v2395 = vpop.f32.mrf.mxu0
    %v2396 = vadd.f32 0.0, %v2395
    %2397 = vmatmul.bf16.gmra.mxu0 %v1024
    %v2398 = vpop.f32.mrf.mxu0
    %v2399 = vadd.f32 0.0, %v2398
    %v2400 = vpop.f32.mrf.mxu0
    %v2401 = vadd.f32 0.0, %v2400
    %2402 = vdwg.mxu0
    %2403 = vmatpush.bf16.msra.mxu0 %v2313
    %2404 = vmatpush.bf16.msra.mxu0 %v2312
    %2405 = vmatpush.bf16.msra.mxu0 %v2311
    %2406 = vmatpush.bf16.msra.mxu0 %v2310
    %2407 = vmatpush.bf16.msra.mxu0 %v2309
    %2408 = vmatpush.bf16.msra.mxu0 %v2308
    %2409 = vmatpush.bf16.msra.mxu0 %v2307
    %2410 = vmatpush.bf16.msra.mxu0 %v2306
    %2411 = vmatmul.bf16.gmra.mxu0 %v995
    %v2412 = vpop.f32.mrf.mxu0
    %v2413 = vadd.f32 %v2324, %v2412
    %v2414 = vpop.f32.mrf.mxu0
    %v2415 = vadd.f32 %v2326, %v2414
    %2416 = vmatmul.bf16.gmra.mxu0 %v997
    %v2417 = vpop.f32.mrf.mxu0
    %v2418 = vadd.f32 %v2329, %v2417
    %v2419 = vpop.f32.mrf.mxu0
    %v2420 = vadd.f32 %v2331, %v2419
    %2421 = vmatmul.bf16.gmra.mxu0 %v999
    %v2422 = vpop.f32.mrf.mxu0
    %v2423 = vadd.f32 %v2334, %v2422
    %v2424 = vpop.f32.mrf.mxu0
    %v2425 = vadd.f32 %v2336, %v2424
    %2426 = vmatmul.bf16.gmra.mxu0 %v1001
    %v2427 = vpop.f32.mrf.mxu0
    %v2428 = vadd.f32 %v2339, %v2427
    %v2429 = vpop.f32.mrf.mxu0
    %v2430 = vadd.f32 %v2341, %v2429
    %2431 = vmatmul.bf16.gmra.mxu0 %v1003
    %v2432 = vpop.f32.mrf.mxu0
    %v2433 = vadd.f32 %v2344, %v2432
    %v2434 = vpop.f32.mrf.mxu0
    %v2435 = vadd.f32 %v2346, %v2434
    %2436 = vmatmul.bf16.gmra.mxu0 %v1005
    %v2437 = vpop.f32.mrf.mxu0
    %v2438 = vadd.f32 %v2349, %v2437
    %v2439 = vpop.f32.mrf.mxu0
    %v2440 = vadd.f32 %v2351, %v2439
    %2441 = vmatmul.bf16.gmra.mxu0 %v1007
    %v2442 = vpop.f32.mrf.mxu0
    %v2443 = vadd.f32 %v2354, %v2442
    %v2444 = vpop.f32.mrf.mxu0
    %v2445 = vadd.f32 %v2356, %v2444
    %2446 = vmatmul.bf16.gmra.mxu0 %v1009
    %v2447 = vpop.f32.mrf.mxu0
    %v2448 = vadd.f32 %v2359, %v2447
    %v2449 = vpop.f32.mrf.mxu0
    %v2450 = vadd.f32 %v2361, %v2449
    %2451 = vmatmul.bf16.gmra.mxu0 %v1011
    %v2452 = vpop.f32.mrf.mxu0
    %v2453 = vadd.f32 %v2364, %v2452
    %v2454 = vpop.f32.mrf.mxu0
    %v2455 = vadd.f32 %v2366, %v2454
    %2456 = vmatmul.bf16.gmra.mxu0 %v1013
    %v2457 = vpop.f32.mrf.mxu0
    %v2458 = vadd.f32 %v2369, %v2457
    %v2459 = vpop.f32.mrf.mxu0
    %v2460 = vadd.f32 %v2371, %v2459
    %2461 = vmatmul.bf16.gmra.mxu0 %v1015
    %v2462 = vpop.f32.mrf.mxu0
    %v2463 = vadd.f32 %v2374, %v2462
    %v2464 = vpop.f32.mrf.mxu0
    %v2465 = vadd.f32 %v2376, %v2464
    %2466 = vmatmul.bf16.gmra.mxu0 %v1017
    %v2467 = vpop.f32.mrf.mxu0
    %v2468 = vadd.f32 %v2379, %v2467
    %v2469 = vpop.f32.mrf.mxu0
    %v2470 = vadd.f32 %v2381, %v2469
    %2471 = vmatmul.bf16.gmra.mxu0 %v1019
    %v2472 = vpop.f32.mrf.mxu0
    %v2473 = vadd.f32 %v2384, %v2472
    %v2474 = vpop.f32.mrf.mxu0
    %v2475 = vadd.f32 %v2386, %v2474
    %2476 = vmatmul.bf16.gmra.mxu0 %v1021
    %v2477 = vpop.f32.mrf.mxu0
    %v2478 = vadd.f32 %v2389, %v2477
    %v2479 = vpop.f32.mrf.mxu0
    %v2480 = vadd.f32 %v2391, %v2479
    %2481 = vmatmul.bf16.gmra.mxu0 %v1023
    %v2482 = vpop.f32.mrf.mxu0
    %v2483 = vadd.f32 %v2394, %v2482
    %v2484 = vpop.f32.mrf.mxu0
    %v2485 = vadd.f32 %v2396, %v2484
    %2486 = vmatmul.bf16.gmra.mxu0 %v1025
    %v2487 = vpop.f32.mrf.mxu0
    %v2488 = vadd.f32 %v2399, %v2487
    %v2489 = vpop.f32.mrf.mxu0
    %v2490 = vadd.f32 %v2401, %v2489
    %2491 = vdwg.mxu0
    %v2524 = vunpack.c.l.b16 %v2202
    %v2525 = vunpack.c.l.b16 %v2203
    %v2526 = vunpack.c.l.b16 %v2204
    %v2527 = vunpack.c.l.b16 %v2205
    %v2528 = vunpack.c.l.b16 %v2206
    %v2529 = vunpack.c.l.b16 %v2207
    %v2530 = vunpack.c.l.b16 %v2208
    %v2531 = vunpack.c.l.b16 %v2209
    %v2532 = vunpack.c.l.b16 %v2210
    %v2533 = vunpack.c.l.b16 %v2211
    %v2534 = vunpack.c.l.b16 %v2212
    %v2535 = vunpack.c.l.b16 %v2213
    %v2536 = vunpack.c.l.b16 %v2214
    %v2537 = vunpack.c.l.b16 %v2215
    %v2538 = vunpack.c.l.b16 %v2216
    %v2539 = vunpack.c.l.b16 %v2217
    %v2540 = vunpack.c.l.b16 %v2218
    %v2541 = vunpack.c.l.b16 %v2219
    %v2542 = vunpack.c.l.b16 %v2220
    %v2543 = vunpack.c.l.b16 %v2221
    %v2544 = vunpack.c.l.b16 %v2222
    %v2545 = vunpack.c.l.b16 %v2223
    %v2546 = vunpack.c.l.b16 %v2224
    %v2547 = vunpack.c.l.b16 %v2225
    %v2548 = vunpack.c.l.b16 %v2226
    %v2549 = vunpack.c.l.b16 %v2227
    %v2550 = vunpack.c.l.b16 %v2228
    %v2551 = vunpack.c.l.b16 %v2229
    %v2552 = vunpack.c.l.b16 %v2230
    %v2553 = vunpack.c.l.b16 %v2231
    %v2554 = vunpack.c.l.b16 %v2232
    %v2555 = vunpack.c.l.b16 %v2233
    %v2556 = vpack.c.b16 %v2525, %v2524
    %v2557 = vpack.c.b16 %v2527, %v2526
    %v2558 = vpack.c.b16 %v2529, %v2528
    %v2559 = vpack.c.b16 %v2531, %v2530
    %v2560 = vpack.c.b16 %v2533, %v2532
    %v2561 = vpack.c.b16 %v2535, %v2534
    %v2562 = vpack.c.b16 %v2537, %v2536
    %v2563 = vpack.c.b16 %v2539, %v2538
    %v2564 = vpack.c.b16 %v2541, %v2540
    %v2565 = vpack.c.b16 %v2543, %v2542
    %v2566 = vpack.c.b16 %v2545, %v2544
    %v2567 = vpack.c.b16 %v2547, %v2546
    %v2568 = vpack.c.b16 %v2549, %v2548
    %v2569 = vpack.c.b16 %v2551, %v2550
    %v2570 = vpack.c.b16 %v2553, %v2552
    %v2571 = vpack.c.b16 %v2555, %v2554
    %2588 = vmatpush.bf16.msra.mxu0 %v2563
    %2589 = vmatpush.bf16.msra.mxu0 %v2562
    %2590 = vmatpush.bf16.msra.mxu0 %v2561
    %2591 = vmatpush.bf16.msra.mxu0 %v2560
    %2592 = vmatpush.bf16.msra.mxu0 %v2559
    %2593 = vmatpush.bf16.msra.mxu0 %v2558
    %2594 = vmatpush.bf16.msra.mxu0 %v2557
    %2595 = vmatpush.bf16.msra.mxu0 %v2556
    %2596 = vmatmul.bf16.gmra.mxu0 %v994
    %v2597 = vpop.f32.mrf.mxu0
    %v2598 = vadd.f32 %v2413, %v2597
    %v2599 = vpop.f32.mrf.mxu0
    %v2600 = vadd.f32 %v2415, %v2599
    %2601 = vmatmul.bf16.gmra.mxu0 %v996
    %v2602 = vpop.f32.mrf.mxu0
    %v2603 = vadd.f32 %v2418, %v2602
    %v2604 = vpop.f32.mrf.mxu0
    %v2605 = vadd.f32 %v2420, %v2604
    %2606 = vmatmul.bf16.gmra.mxu0 %v998
    %v2607 = vpop.f32.mrf.mxu0
    %v2608 = vadd.f32 %v2423, %v2607
    %v2609 = vpop.f32.mrf.mxu0
    %v2610 = vadd.f32 %v2425, %v2609
    %2611 = vmatmul.bf16.gmra.mxu0 %v1000
    %v2612 = vpop.f32.mrf.mxu0
    %v2613 = vadd.f32 %v2428, %v2612
    %v2614 = vpop.f32.mrf.mxu0
    %v2615 = vadd.f32 %v2430, %v2614
    %2616 = vmatmul.bf16.gmra.mxu0 %v1002
    %v2617 = vpop.f32.mrf.mxu0
    %v2618 = vadd.f32 %v2433, %v2617
    %v2619 = vpop.f32.mrf.mxu0
    %v2620 = vadd.f32 %v2435, %v2619
    %2621 = vmatmul.bf16.gmra.mxu0 %v1004
    %v2622 = vpop.f32.mrf.mxu0
    %v2623 = vadd.f32 %v2438, %v2622
    %v2624 = vpop.f32.mrf.mxu0
    %v2625 = vadd.f32 %v2440, %v2624
    %2626 = vmatmul.bf16.gmra.mxu0 %v1006
    %v2627 = vpop.f32.mrf.mxu0
    %v2628 = vadd.f32 %v2443, %v2627
    %v2629 = vpop.f32.mrf.mxu0
    %v2630 = vadd.f32 %v2445, %v2629
    %2631 = vmatmul.bf16.gmra.mxu0 %v1008
    %v2632 = vpop.f32.mrf.mxu0
    %v2633 = vadd.f32 %v2448, %v2632
    %v2634 = vpop.f32.mrf.mxu0
    %v2635 = vadd.f32 %v2450, %v2634
    %2636 = vmatmul.bf16.gmra.mxu0 %v1010
    %v2637 = vpop.f32.mrf.mxu0
    %v2638 = vadd.f32 %v2453, %v2637
    %v2639 = vpop.f32.mrf.mxu0
    %v2640 = vadd.f32 %v2455, %v2639
    %2641 = vmatmul.bf16.gmra.mxu0 %v1012
    %v2642 = vpop.f32.mrf.mxu0
    %v2643 = vadd.f32 %v2458, %v2642
    %v2644 = vpop.f32.mrf.mxu0
    %v2645 = vadd.f32 %v2460, %v2644
    %2646 = vmatmul.bf16.gmra.mxu0 %v1014
    %v2647 = vpop.f32.mrf.mxu0
    %v2648 = vadd.f32 %v2463, %v2647
    %v2649 = vpop.f32.mrf.mxu0
    %v2650 = vadd.f32 %v2465, %v2649
    %2651 = vmatmul.bf16.gmra.mxu0 %v1016
    %v2652 = vpop.f32.mrf.mxu0
    %v2653 = vadd.f32 %v2468, %v2652
    %v2654 = vpop.f32.mrf.mxu0
    %v2655 = vadd.f32 %v2470, %v2654
    %2656 = vmatmul.bf16.gmra.mxu0 %v1018
    %v2657 = vpop.f32.mrf.mxu0
    %v2658 = vadd.f32 %v2473, %v2657
    %v2659 = vpop.f32.mrf.mxu0
    %v2660 = vadd.f32 %v2475, %v2659
    %2661 = vmatmul.bf16.gmra.mxu0 %v1020
    %v2662 = vpop.f32.mrf.mxu0
    %v2663 = vadd.f32 %v2478, %v2662
    %v2664 = vpop.f32.mrf.mxu0
    %v2665 = vadd.f32 %v2480, %v2664
    %2666 = vmatmul.bf16.gmra.mxu0 %v1022
    %v2667 = vpop.f32.mrf.mxu0
    %v2668 = vadd.f32 %v2483, %v2667
    %v2669 = vpop.f32.mrf.mxu0
    %v2670 = vadd.f32 %v2485, %v2669
    %2671 = vmatmul.bf16.gmra.mxu0 %v1024
    %v2672 = vpop.f32.mrf.mxu0
    %v2673 = vadd.f32 %v2488, %v2672
    %v2674 = vpop.f32.mrf.mxu0
    %v2675 = vadd.f32 %v2490, %v2674
    %2676 = vdwg.mxu0
    %2677 = vmatpush.bf16.msra.mxu0 %v2571
    %2678 = vmatpush.bf16.msra.mxu0 %v2570
    %2679 = vmatpush.bf16.msra.mxu0 %v2569
    %2680 = vmatpush.bf16.msra.mxu0 %v2568
    %2681 = vmatpush.bf16.msra.mxu0 %v2567
    %2682 = vmatpush.bf16.msra.mxu0 %v2566
    %2683 = vmatpush.bf16.msra.mxu0 %v2565
    %2684 = vmatpush.bf16.msra.mxu0 %v2564
    %2685 = vmatmul.bf16.gmra.mxu0 %v995
    %v2686 = vpop.f32.mrf.mxu0
    %v2687 = vadd.f32 %v2598, %v2686
    %v2688 = vpop.f32.mrf.mxu0
    %v2689 = vadd.f32 %v2600, %v2688
    %2690 = vmatmul.bf16.gmra.mxu0 %v997
    %v2691 = vpop.f32.mrf.mxu0
    %v2692 = vadd.f32 %v2603, %v2691
    %v2693 = vpop.f32.mrf.mxu0
    %v2694 = vadd.f32 %v2605, %v2693
    %2695 = vmatmul.bf16.gmra.mxu0 %v999
    %v2696 = vpop.f32.mrf.mxu0
    %v2697 = vadd.f32 %v2608, %v2696
    %v2698 = vpop.f32.mrf.mxu0
    %v2699 = vadd.f32 %v2610, %v2698
    %2700 = vmatmul.bf16.gmra.mxu0 %v1001
    %v2701 = vpop.f32.mrf.mxu0
    %v2702 = vadd.f32 %v2613, %v2701
    %v2703 = vpop.f32.mrf.mxu0
    %v2704 = vadd.f32 %v2615, %v2703
    %2705 = vmatmul.bf16.gmra.mxu0 %v1003
    %v2706 = vpop.f32.mrf.mxu0
    %v2707 = vadd.f32 %v2618, %v2706
    %v2708 = vpop.f32.mrf.mxu0
    %v2709 = vadd.f32 %v2620, %v2708
    %2710 = vmatmul.bf16.gmra.mxu0 %v1005
    %v2711 = vpop.f32.mrf.mxu0
    %v2712 = vadd.f32 %v2623, %v2711
    %v2713 = vpop.f32.mrf.mxu0
    %v2714 = vadd.f32 %v2625, %v2713
    %2715 = vmatmul.bf16.gmra.mxu0 %v1007
    %v2716 = vpop.f32.mrf.mxu0
    %v2717 = vadd.f32 %v2628, %v2716
    %v2718 = vpop.f32.mrf.mxu0
    %v2719 = vadd.f32 %v2630, %v2718
    %2720 = vmatmul.bf16.gmra.mxu0 %v1009
    %v2721 = vpop.f32.mrf.mxu0
    %v2722 = vadd.f32 %v2633, %v2721
    %v2723 = vpop.f32.mrf.mxu0
    %v2724 = vadd.f32 %v2635, %v2723
    %2725 = vmatmul.bf16.gmra.mxu0 %v1011
    %v2726 = vpop.f32.mrf.mxu0
    %v2727 = vadd.f32 %v2638, %v2726
    %v2728 = vpop.f32.mrf.mxu0
    %v2729 = vadd.f32 %v2640, %v2728
    %2730 = vmatmul.bf16.gmra.mxu0 %v1013
    %v2731 = vpop.f32.mrf.mxu0
    %v2732 = vadd.f32 %v2643, %v2731
    %v2733 = vpop.f32.mrf.mxu0
    %v2734 = vadd.f32 %v2645, %v2733
    %2735 = vmatmul.bf16.gmra.mxu0 %v1015
    %v2736 = vpop.f32.mrf.mxu0
    %v2737 = vadd.f32 %v2648, %v2736
    %v2738 = vpop.f32.mrf.mxu0
    %v2739 = vadd.f32 %v2650, %v2738
    %2740 = vmatmul.bf16.gmra.mxu0 %v1017
    %v2741 = vpop.f32.mrf.mxu0
    %v2742 = vadd.f32 %v2653, %v2741
    %v2743 = vpop.f32.mrf.mxu0
    %v2744 = vadd.f32 %v2655, %v2743
    %2745 = vmatmul.bf16.gmra.mxu0 %v1019
    %v2746 = vpop.f32.mrf.mxu0
    %v2747 = vadd.f32 %v2658, %v2746
    %v2748 = vpop.f32.mrf.mxu0
    %v2749 = vadd.f32 %v2660, %v2748
    %2750 = vmatmul.bf16.gmra.mxu0 %v1021
    %v2751 = vpop.f32.mrf.mxu0
    %v2752 = vadd.f32 %v2663, %v2751
    %v2753 = vpop.f32.mrf.mxu0
    %v2754 = vadd.f32 %v2665, %v2753
    %2755 = vmatmul.bf16.gmra.mxu0 %v1023
    %v2756 = vpop.f32.mrf.mxu0
    %v2757 = vadd.f32 %v2668, %v2756
    %v2758 = vpop.f32.mrf.mxu0
    %v2759 = vadd.f32 %v2670, %v2758
    %2760 = vmatmul.bf16.gmra.mxu0 %v1025
    %v2761 = vpop.f32.mrf.mxu0
    %v2762 = vadd.f32 %v2673, %v2761
    %v2763 = vpop.f32.mrf.mxu0
    %v2764 = vadd.f32 %v2675, %v2763
    %2765 = vdwg.mxu0
    %v2766 = vmul.f32 %v213, %v2687
    %v2767 = vmul.f32 %v218, %v2689
    %v2768 = vmul.f32 %v223, %v2692
    %v2769 = vmul.f32 %v228, %v2694
    %v2770 = vmul.f32 %v233, %v2697
    %v2771 = vmul.f32 %v238, %v2699
    %v2772 = vmul.f32 %v243, %v2702
    %v2773 = vmul.f32 %v248, %v2704
    %v2774 = vmul.f32 %v253, %v2707
    %v2775 = vmul.f32 %v258, %v2709
    %v2776 = vmul.f32 %v263, %v2712
    %v2777 = vmul.f32 %v268, %v2714
    %v2778 = vmul.f32 %v273, %v2717
    %v2779 = vmul.f32 %v278, %v2719
    %v2780 = vmul.f32 %v283, %v2722
    %v2781 = vmul.f32 %v288, %v2724
    %v2782 = vmul.f32 %v293, %v2727
    %v2783 = vmul.f32 %v298, %v2729
    %v2784 = vmul.f32 %v303, %v2732
    %v2785 = vmul.f32 %v308, %v2734
    %v2786 = vmul.f32 %v313, %v2737
    %v2787 = vmul.f32 %v318, %v2739
    %v2788 = vmul.f32 %v323, %v2742
    %v2789 = vmul.f32 %v328, %v2744
    %v2790 = vmul.f32 %v333, %v2747
    %v2791 = vmul.f32 %v338, %v2749
    %v2792 = vmul.f32 %v343, %v2752
    %v2793 = vmul.f32 %v348, %v2754
    %v2794 = vmul.f32 %v353, %v2757
    %v2795 = vmul.f32 %v358, %v2759
    %v2796 = vmul.f32 %v363, %v2762
    %v2797 = vmul.f32 %v368, %v2764
    %v2798 = vadd.f32 %v2766, %v562
    %v2799 = vadd.f32 %v2767, %v563
    %v2800 = vadd.f32 %v2768, %v564
    %v2801 = vadd.f32 %v2769, %v565
    %v2802 = vadd.f32 %v2770, %v566
    %v2803 = vadd.f32 %v2771, %v567
    %v2804 = vadd.f32 %v2772, %v568
    %v2805 = vadd.f32 %v2773, %v569
    %v2806 = vadd.f32 %v2774, %v570
    %v2807 = vadd.f32 %v2775, %v571
    %v2808 = vadd.f32 %v2776, %v572
    %v2809 = vadd.f32 %v2777, %v573
    %v2810 = vadd.f32 %v2778, %v574
    %v2811 = vadd.f32 %v2779, %v575
    %v2812 = vadd.f32 %v2780, %v576
    %v2813 = vadd.f32 %v2781, %v577
    %v2814 = vadd.f32 %v2782, %v578
    %v2815 = vadd.f32 %v2783, %v579
    %v2816 = vadd.f32 %v2784, %v580
    %v2817 = vadd.f32 %v2785, %v581
    %v2818 = vadd.f32 %v2786, %v582
    %v2819 = vadd.f32 %v2787, %v583
    %v2820 = vadd.f32 %v2788, %v584
    %v2821 = vadd.f32 %v2789, %v585
    %v2822 = vadd.f32 %v2790, %v586
    %v2823 = vadd.f32 %v2791, %v587
    %v2824 = vadd.f32 %v2792, %v588
    %v2825 = vadd.f32 %v2793, %v589
    %v2826 = vadd.f32 %v2794, %v590
    %v2827 = vadd.f32 %v2795, %v591
    %v2828 = vadd.f32 %v2796, %v592
    %v2829 = vadd.f32 %v2797, %v593
    %2831 = vset.pattern.permute.xlu0 0
    %2832 = vperm.xlu0 %2831, %v82
    %v2833 = vpop.permute.xlu0 %2832
    %2836 = vset.pattern.permute.xlu0 0
    %2837 = vperm.xlu0 %2836, %v83
    %v2838 = vpop.permute.xlu0 %2837
    %2841 = vset.pattern.permute.xlu0 0
    %2842 = vperm.xlu0 %2841, %v84
    %v2843 = vpop.permute.xlu0 %2842
    %2846 = vset.pattern.permute.xlu0 0
    %2847 = vperm.xlu0 %2846, %v85
    %v2848 = vpop.permute.xlu0 %2847
    %2851 = vset.pattern.permute.xlu0 0
    %2852 = vperm.xlu0 %2851, %v86
    %v2853 = vpop.permute.xlu0 %2852
    %2856 = vset.pattern.permute.xlu0 0
    %2857 = vperm.xlu0 %2856, %v87
    %v2858 = vpop.permute.xlu0 %2857
    %2861 = vset.pattern.permute.xlu0 0
    %2862 = vperm.xlu0 %2861, %v88
    %v2863 = vpop.permute.xlu0 %2862
    %2866 = vset.pattern.permute.xlu0 0
    %2867 = vperm.xlu0 %2866, %v89
    %v2868 = vpop.permute.xlu0 %2867
    %2871 = vset.pattern.permute.xlu0 0
    %2872 = vperm.xlu0 %2871, %v90
    %v2873 = vpop.permute.xlu0 %2872
    %2876 = vset.pattern.permute.xlu0 0
    %2877 = vperm.xlu0 %2876, %v91
    %v2878 = vpop.permute.xlu0 %2877
    %2881 = vset.pattern.permute.xlu0 0
    %2882 = vperm.xlu0 %2881, %v92
    %v2883 = vpop.permute.xlu0 %2882
    %2886 = vset.pattern.permute.xlu0 0
    %2887 = vperm.xlu0 %2886, %v93
    %v2888 = vpop.permute.xlu0 %2887
    %2891 = vset.pattern.permute.xlu0 0
    %2892 = vperm.xlu0 %2891, %v94
    %v2893 = vpop.permute.xlu0 %2892
    %2896 = vset.pattern.permute.xlu0 0
    %2897 = vperm.xlu0 %2896, %v95
    %v2898 = vpop.permute.xlu0 %2897
    %2901 = vset.pattern.permute.xlu0 0
    %2902 = vperm.xlu0 %2901, %v96
    %v2903 = vpop.permute.xlu0 %2902
    %2906 = vset.pattern.permute.xlu0 0
    %2907 = vperm.xlu0 %2906, %v97
    %v2908 = vpop.permute.xlu0 %2907
    %2911 = vset.pattern.permute.xlu0 0
    %2912 = vperm.xlu0 %2911, %v98
    %v2913 = vpop.permute.xlu0 %2912
    %2916 = vset.pattern.permute.xlu0 0
    %2917 = vperm.xlu0 %2916, %v99
    %v2918 = vpop.permute.xlu0 %2917
    %2921 = vset.pattern.permute.xlu0 0
    %2922 = vperm.xlu0 %2921, %v100
    %v2923 = vpop.permute.xlu0 %2922
    %2926 = vset.pattern.permute.xlu0 0
    %2927 = vperm.xlu0 %2926, %v101
    %v2928 = vpop.permute.xlu0 %2927
    %2931 = vset.pattern.permute.xlu0 0
    %2932 = vperm.xlu0 %2931, %v102
    %v2933 = vpop.permute.xlu0 %2932
    %2936 = vset.pattern.permute.xlu0 0
    %2937 = vperm.xlu0 %2936, %v103
    %v2938 = vpop.permute.xlu0 %2937
    %2941 = vset.pattern.permute.xlu0 0
    %2942 = vperm.xlu0 %2941, %v104
    %v2943 = vpop.permute.xlu0 %2942
    %2946 = vset.pattern.permute.xlu0 0
    %2947 = vperm.xlu0 %2946, %v105
    %v2948 = vpop.permute.xlu0 %2947
    %2951 = vset.pattern.permute.xlu0 0
    %2952 = vperm.xlu0 %2951, %v106
    %v2953 = vpop.permute.xlu0 %2952
    %2956 = vset.pattern.permute.xlu0 0
    %2957 = vperm.xlu0 %2956, %v107
    %v2958 = vpop.permute.xlu0 %2957
    %2961 = vset.pattern.permute.xlu0 0
    %2962 = vperm.xlu0 %2961, %v108
    %v2963 = vpop.permute.xlu0 %2962
    %2966 = vset.pattern.permute.xlu0 0
    %2967 = vperm.xlu0 %2966, %v109
    %v2968 = vpop.permute.xlu0 %2967
    %2971 = vset.pattern.permute.xlu0 0
    %2972 = vperm.xlu0 %2971, %v110
    %v2973 = vpop.permute.xlu0 %2972
    %2976 = vset.pattern.permute.xlu0 0
    %2977 = vperm.xlu0 %2976, %v111
    %v2978 = vpop.permute.xlu0 %2977
    %2981 = vset.pattern.permute.xlu0 0
    %2982 = vperm.xlu0 %2981, %v112
    %v2983 = vpop.permute.xlu0 %2982
    %2986 = vset.pattern.permute.xlu0 0
    %2987 = vperm.xlu0 %2986, %v113
    %v2988 = vpop.permute.xlu0 %2987
    %v2990 = vmul.f32 %v2798, %v2833
    %v2991 = vmul.f32 %v2799, %v2838
    %v2992 = vmul.f32 %v2800, %v2843
    %v2993 = vmul.f32 %v2801, %v2848
    %v2994 = vmul.f32 %v2802, %v2853
    %v2995 = vmul.f32 %v2803, %v2858
    %v2996 = vmul.f32 %v2804, %v2863
    %v2997 = vmul.f32 %v2805, %v2868
    %v2998 = vmul.f32 %v2806, %v2873
    %v2999 = vmul.f32 %v2807, %v2878
    %v3000 = vmul.f32 %v2808, %v2883
    %v3001 = vmul.f32 %v2809, %v2888
    %v3002 = vmul.f32 %v2810, %v2893
    %v3003 = vmul.f32 %v2811, %v2898
    %v3004 = vmul.f32 %v2812, %v2903
    %v3005 = vmul.f32 %v2813, %v2908
    %v3006 = vmul.f32 %v2814, %v2913
    %v3007 = vmul.f32 %v2815, %v2918
    %v3008 = vmul.f32 %v2816, %v2923
    %v3009 = vmul.f32 %v2817, %v2928
    %v3010 = vmul.f32 %v2818, %v2933
    %v3011 = vmul.f32 %v2819, %v2938
    %v3012 = vmul.f32 %v2820, %v2943
    %v3013 = vmul.f32 %v2821, %v2948
    %v3014 = vmul.f32 %v2822, %v2953
    %v3015 = vmul.f32 %v2823, %v2958
    %v3016 = vmul.f32 %v2824, %v2963
    %v3017 = vmul.f32 %v2825, %v2968
    %v3018 = vmul.f32 %v2826, %v2973
    %v3019 = vmul.f32 %v2827, %v2978
    %v3020 = vmul.f32 %v2828, %v2983
    %v3021 = vmul.f32 %v2829, %v2988
    %3022 = vst [vmem:[#allocation2] sm:$0xff] %v2990
    %3023 = vst [vmem:[#allocation2 + $0x8] sm:$0xff] %v2991
    %3024 = vst [vmem:[#allocation2 + $0x10] sm:$0xff] %v2992
    %3025 = vst [vmem:[#allocation2 + $0x18] sm:$0xff] %v2993
    %3026 = vst [vmem:[#allocation2 + $0x20] sm:$0xff] %v2994
    %3027 = vst [vmem:[#allocation2 + $0x28] sm:$0xff] %v2995
    %3028 = vst [vmem:[#allocation2 + $0x30] sm:$0xff] %v2996
    %3029 = vst [vmem:[#allocation2 + $0x38] sm:$0xff] %v2997
    %3030 = vst [vmem:[#allocation2 + $0x40] sm:$0xff] %v2998
    %3031 = vst [vmem:[#allocation2 + $0x48] sm:$0xff] %v2999
    %3032 = vst [vmem:[#allocation2 + $0x50] sm:$0xff] %v3000
    %3033 = vst [vmem:[#allocation2 + $0x58] sm:$0xff] %v3001
    %3034 = vst [vmem:[#allocation2 + $0x60] sm:$0xff] %v3002
    %3035 = vst [vmem:[#allocation2 + $0x68] sm:$0xff] %v3003
    %3036 = vst [vmem:[#allocation2 + $0x70] sm:$0xff] %v3004
    %3037 = vst [vmem:[#allocation2 + $0x78] sm:$0xff] %v3005
    %3038 = vst [vmem:[#allocation2 + $0x80] sm:$0xff] %v3006
    %3039 = vst [vmem:[#allocation2 + $0x88] sm:$0xff] %v3007
    %3040 = vst [vmem:[#allocation2 + $0x90] sm:$0xff] %v3008
    %3041 = vst [vmem:[#allocation2 + $0x98] sm:$0xff] %v3009
    %3042 = vst [vmem:[#allocation2 + $0xa0] sm:$0xff] %v3010
    %3043 = vst [vmem:[#allocation2 + $0xa8] sm:$0xff] %v3011
    %3044 = vst [vmem:[#allocation2 + $0xb0] sm:$0xff] %v3012
    %3045 = vst [vmem:[#allocation2 + $0xb8] sm:$0xff] %v3013
    %3046 = vst [vmem:[#allocation2 + $0xc0] sm:$0xff] %v3014
    %3047 = vst [vmem:[#allocation2 + $0xc8] sm:$0xff] %v3015
    %3048 = vst [vmem:[#allocation2 + $0xd0] sm:$0xff] %v3016
    %3049 = vst [vmem:[#allocation2 + $0xd8] sm:$0xff] %v3017
    %3050 = vst [vmem:[#allocation2 + $0xe0] sm:$0xff] %v3018
    %3051 = vst [vmem:[#allocation2 + $0xe8] sm:$0xff] %v3019
    %3052 = vst [vmem:[#allocation2 + $0xf0] sm:$0xff] %v3020
    %3053 = vst [vmem:[#allocation2 + $0xf8] sm:$0xff] %v3021
    // Predicated region
    $region18: #{tpu_custom_call.1} parent=1 // pred_check
      _
    $region19: #{tpu_custom_call.1} parent=1 // pred_check_branch
      %3055 = sbr.rel (0) target = $region21
    $region20: #{tpu_custom_call.1} parent=1 // pred_region
      %3057 = vsyncadd [#allocation3], 0
      %s3058 = sshll.u32 [#allocation2], 4
      %s3059 = int_to_ptr.vmem [resolvable:$true] %s3058
      %s3060 = sshll.u32 %s4, 4
      %s3061 = int_to_ptr.hbm [resolvable:$true] %s3060
      %3066 = dma.vmem_to_hbm [thread:$0]  %s3059, 4096, %s3061, [#allocation3], 128, 128, 8
    $region21: #{tpu_custom_call.1} parent=1 // pred_fallthru
      _
    // Predicated region
    $region22: #{tpu_custom_call.1} parent=1 // pred_check
      _
    $region23: #{tpu_custom_call.1} parent=1 // pred_check_branch
      %3068 = sbr.rel (0) target = $region25
    $region24: #{tpu_custom_call.1} parent=1 // pred_region
      %3070 = dma.done [#allocation3], 4096
    $region25: #{tpu_custom_call.1} parent=1 // pred_fallthru
      _
    %3071 = vsyncpa [#allocation3], 1

// kernel: tpu_custom_call.1
$region0: #{tpu_custom_call.1}
  #allocation0 [shape = 'u32[]', space=smem, size = 0x4, offset = 0x4, fixed_abs, tag = 'smem constant byte address 0x4 - core index']
  #allocation1 [shape = 'u32[72,128]{1,0:T(1,128)}', space=vmem, size = 0x9000, scoped, tag = 'internal scratch']
  %s0 = inlined_call_operand.vmem [shape: bf16[256,256], index: 0, kind: input, shape index: {}]
  %s1 = inlined_call_operand.vmem [shape: f32[256,1], index: 1, kind: input, shape index: {}]
  %s2 = inlined_call_operand.vmem [shape: f32[256,1], index: 2, kind: input, shape index: {}]
  %s3 = inlined_call_operand.vmem [shape: f32[256,128], index: 3, kind: input, shape index: {}]
  %s4 = inlined_call_operand.hbm [shape: f32[256,128], index: 4, kind: output, shape index: {}]
  %s5 = sld [smem:[#allocation0]]
  $region26: #{tpu_custom_call.1} parent=0
    _
  %s7 = ssub.s32 1, %s5
  %s8 = scalar_select 0, %s7, %s5
  $region1: #{tpu_custom_call.1} parent=0
    #allocation2 [shape = 'u8[131072]{0}', space=vmem, size = 0x20000, scoped, tag = 'output window, operand 0, single buffered']
    #allocation3 [shape = 's32[1]{0}', space=sflag, size = 0x4, scoped, tag = 'scoped memory for tpu_custom_call.1']
    %9 = vsyncpa [#allocation3], 0
    // Predicated region
    $region2: #{tpu_custom_call.1} parent=1 // pred_check
      _
    $region3: #{tpu_custom_call.1} parent=1 // pred_check_branch
      %11 = sbr.rel (0) target = $region5
    $region4: #{tpu_custom_call.1} parent=1 // pred_region
      _
    $region5: #{tpu_custom_call.1} parent=1 // pred_fallthru
      _
    // Predicated region
    $region6: #{tpu_custom_call.1} parent=1 // pred_check
      _
    $region7: #{tpu_custom_call.1} parent=1 // pred_check_branch
      %13 = sbr.rel (0) target = $region9
    $region8: #{tpu_custom_call.1} parent=1 // pred_region
      _
    $region9: #{tpu_custom_call.1} parent=1 // pred_fallthru
      _
    // Predicated region
    $region10: #{tpu_custom_call.1} parent=1 // pred_check
      _
    $region11: #{tpu_custom_call.1} parent=1 // pred_check_branch
      %15 = sbr.rel (0) target = $region13
    $region12: #{tpu_custom_call.1} parent=1 // pred_region
      _
    $region13: #{tpu_custom_call.1} parent=1 // pred_fallthru
      _
    // Predicated region
    $region14: #{tpu_custom_call.1} parent=1 // pred_check
      _
    $region15: #{tpu_custom_call.1} parent=1 // pred_check_branch
      %17 = sbr.rel (0) target = $region17
    $region16: #{tpu_custom_call.1} parent=1 // pred_region
      _
    $region17: #{tpu_custom_call.1} parent=1 // pred_fallthru
      _
    %v18 = vld [vmem:[%s0] sm:$0xff]
    %v19 = vld [vmem:[%s0 + $0x8] sm:$0xff]
    %v20 = vld [vmem:[%s0 + $0x10] sm:$0xff]
    %v21 = vld [vmem:[%s0 + $0x18] sm:$0xff]
    %v22 = vld [vmem:[%s0 + $0x20] sm:$0xff]
    %v23 = vld [vmem:[%s0 + $0x28] sm:$0xff]
    %v24 = vld [vmem:[%s0 + $0x30] sm:$0xff]
    %v25 = vld [vmem:[%s0 + $0x38] sm:$0xff]
    %v26 = vld [vmem:[%s0 + $0x40] sm:$0xff]
    %v27 = vld [vmem:[%s0 + $0x48] sm:$0xff]
    %v28 = vld [vmem:[%s0 + $0x50] sm:$0xff]
    %v29 = vld [vmem:[%s0 + $0x58] sm:$0xff]
    %v30 = vld [vmem:[%s0 + $0x60] sm:$0xff]
    %v31 = vld [vmem:[%s0 + $0x68] sm:$0xff]
    %v32 = vld [vmem:[%s0 + $0x70] sm:$0xff]
    %v33 = vld [vmem:[%s0 + $0x78] sm:$0xff]
    %v34 = vld [vmem:[%s0 + $0x80] sm:$0xff]
    %v35 = vld [vmem:[%s0 + $0x88] sm:$0xff]
    %v36 = vld [vmem:[%s0 + $0x90] sm:$0xff]
    %v37 = vld [vmem:[%s0 + $0x98] sm:$0xff]
    %v38 = vld [vmem:[%s0 + $0xa0] sm:$0xff]
    %v39 = vld [vmem:[%s0 + $0xa8] sm:$0xff]
    %v40 = vld [vmem:[%s0 + $0xb0] sm:$0xff]
    %v41 = vld [vmem:[%s0 + $0xb8] sm:$0xff]
    %v42 = vld [vmem:[%s0 + $0xc0] sm:$0xff]
    %v43 = vld [vmem:[%s0 + $0xc8] sm:$0xff]
    %v44 = vld [vmem:[%s0 + $0xd0] sm:$0xff]
    %v45 = vld [vmem:[%s0 + $0xd8] sm:$0xff]
    %v46 = vld [vmem:[%s0 + $0xe0] sm:$0xff]
    %v47 = vld [vmem:[%s0 + $0xe8] sm:$0xff]
    %v48 = vld [vmem:[%s0 + $0xf0] sm:$0xff]
    %v49 = vld [vmem:[%s0 + $0xf8] sm:$0xff]
    %v50 = vld [vmem:[%s1] sm:$0xff]
    %v51 = vld [vmem:[%s1 + $0x8] sm:$0xff]
    %v52 = vld [vmem:[%s1 + $0x10] sm:$0xff]
    %v53 = vld [vmem:[%s1 + $0x18] sm:$0xff]
    %v54 = vld [vmem:[%s1 + $0x20] sm:$0xff]
    %v55 = vld [vmem:[%s1 + $0x28] sm:$0xff]
    %v56 = vld [vmem:[%s1 + $0x30] sm:$0xff]
    %v57 = vld [vmem:[%s1 + $0x38] sm:$0xff]
    %v58 = vld [vmem:[%s1 + $0x40] sm:$0xff]
    %v59 = vld [vmem:[%s1 + $0x48] sm:$0xff]
    %v60 = vld [vmem:[%s1 + $0x50] sm:$0xff]
    %v61 = vld [vmem:[%s1 + $0x58] sm:$0xff]
    %v62 = vld [vmem:[%s1 + $0x60] sm:$0xff]
    %v63 = vld [vmem:[%s1 + $0x68] sm:$0xff]
    %v64 = vld [vmem:[%s1 + $0x70] sm:$0xff]
    %v65 = vld [vmem:[%s1 + $0x78] sm:$0xff]
    %v66 = vld [vmem:[%s1 + $0x80] sm:$0xff]
    %v67 = vld [vmem:[%s1 + $0x88] sm:$0xff]
    %v68 = vld [vmem:[%s1 + $0x90] sm:$0xff]
    %v69 = vld [vmem:[%s1 + $0x98] sm:$0xff]
    %v70 = vld [vmem:[%s1 + $0xa0] sm:$0xff]
    %v71 = vld [vmem:[%s1 + $0xa8] sm:$0xff]
    %v72 = vld [vmem:[%s1 + $0xb0] sm:$0xff]
    %v73 = vld [vmem:[%s1 + $0xb8] sm:$0xff]
    %v74 = vld [vmem:[%s1 + $0xc0] sm:$0xff]
    %v75 = vld [vmem:[%s1 + $0xc8] sm:$0xff]
    %v76 = vld [vmem:[%s1 + $0xd0] sm:$0xff]
    %v77 = vld [vmem:[%s1 + $0xd8] sm:$0xff]
    %v78 = vld [vmem:[%s1 + $0xe0] sm:$0xff]
    %v79 = vld [vmem:[%s1 + $0xe8] sm:$0xff]
    %v80 = vld [vmem:[%s1 + $0xf0] sm:$0xff]
    %v81 = vld [vmem:[%s1 + $0xf8] sm:$0xff]
    %v82 = vld [vmem:[%s2] sm:$0xff]
    %v83 = vld [vmem:[%s2 + $0x8] sm:$0xff]
    %v84 = vld [vmem:[%s2 + $0x10] sm:$0xff]
    %v85 = vld [vmem:[%s2 + $0x18] sm:$0xff]
    %v86 = vld [vmem:[%s2 + $0x20] sm:$0xff]
    %v87 = vld [vmem:[%s2 + $0x28] sm:$0xff]
    %v88 = vld [vmem:[%s2 + $0x30] sm:$0xff]
    %v89 = vld [vmem:[%s2 + $0x38] sm:$0xff]
    %v90 = vld [vmem:[%s2 + $0x40] sm:$0xff]
    %v91 = vld [vmem:[%s2 + $0x48] sm:$0xff]
    %v92 = vld [vmem:[%s2 + $0x50] sm:$0xff]
    %v93 = vld [vmem:[%s2 + $0x58] sm:$0xff]
    %v94 = vld [vmem:[%s2 + $0x60] sm:$0xff]
    %v95 = vld [vmem:[%s2 + $0x68] sm:$0xff]
    %v96 = vld [vmem:[%s2 + $0x70] sm:$0xff]
    %v97 = vld [vmem:[%s2 + $0x78] sm:$0xff]
    %v98 = vld [vmem:[%s2 + $0x80] sm:$0xff]
    %v99 = vld [vmem:[%s2 + $0x88] sm:$0xff]
    %v100 = vld [vmem:[%s2 + $0x90] sm:$0xff]
    %v101 = vld [vmem:[%s2 + $0x98] sm:$0xff]
    %v102 = vld [vmem:[%s2 + $0xa0] sm:$0xff]
    %v103 = vld [vmem:[%s2 + $0xa8] sm:$0xff]
    %v104 = vld [vmem:[%s2 + $0xb0] sm:$0xff]
    %v105 = vld [vmem:[%s2 + $0xb8] sm:$0xff]
    %v106 = vld [vmem:[%s2 + $0xc0] sm:$0xff]
    %v107 = vld [vmem:[%s2 + $0xc8] sm:$0xff]
    %v108 = vld [vmem:[%s2 + $0xd0] sm:$0xff]
    %v109 = vld [vmem:[%s2 + $0xd8] sm:$0xff]
    %v110 = vld [vmem:[%s2 + $0xe0] sm:$0xff]
    %v111 = vld [vmem:[%s2 + $0xe8] sm:$0xff]
    %v112 = vld [vmem:[%s2 + $0xf0] sm:$0xff]
    %v113 = vld [vmem:[%s2 + $0xf8] sm:$0xff]
    %v114 = vld [vmem:[%s3] sm:$0xff]
    %v115 = vld [vmem:[%s3 + $0x8] sm:$0xff]
    %v116 = vld [vmem:[%s3 + $0x10] sm:$0xff]
    %v117 = vld [vmem:[%s3 + $0x18] sm:$0xff]
    %v118 = vld [vmem:[%s3 + $0x20] sm:$0xff]
    %v119 = vld [vmem:[%s3 + $0x28] sm:$0xff]
    %v120 = vld [vmem:[%s3 + $0x30] sm:$0xff]
    %v121 = vld [vmem:[%s3 + $0x38] sm:$0xff]
    %v122 = vld [vmem:[%s3 + $0x40] sm:$0xff]
    %v123 = vld [vmem:[%s3 + $0x48] sm:$0xff]
    %v124 = vld [vmem:[%s3 + $0x50] sm:$0xff]
    %v125 = vld [vmem:[%s3 + $0x58] sm:$0xff]
    %v126 = vld [vmem:[%s3 + $0x60] sm:$0xff]
    %v127 = vld [vmem:[%s3 + $0x68] sm:$0xff]
    %v128 = vld [vmem:[%s3 + $0x70] sm:$0xff]
    %v129 = vld [vmem:[%s3 + $0x78] sm:$0xff]
    %v130 = vld [vmem:[%s3 + $0x80] sm:$0xff]
    %v131 = vld [vmem:[%s3 + $0x88] sm:$0xff]
    %v132 = vld [vmem:[%s3 + $0x90] sm:$0xff]
    %v133 = vld [vmem:[%s3 + $0x98] sm:$0xff]
    %v134 = vld [vmem:[%s3 + $0xa0] sm:$0xff]
    %v135 = vld [vmem:[%s3 + $0xa8] sm:$0xff]
    %v136 = vld [vmem:[%s3 + $0xb0] sm:$0xff]
    %v137 = vld [vmem:[%s3 + $0xb8] sm:$0xff]
    %v138 = vld [vmem:[%s3 + $0xc0] sm:$0xff]
    %v139 = vld [vmem:[%s3 + $0xc8] sm:$0xff]
    %v140 = vld [vmem:[%s3 + $0xd0] sm:$0xff]
    %v141 = vld [vmem:[%s3 + $0xd8] sm:$0xff]
    %v142 = vld [vmem:[%s3 + $0xe0] sm:$0xff]
    %v143 = vld [vmem:[%s3 + $0xe8] sm:$0xff]
    %v144 = vld [vmem:[%s3 + $0xf0] sm:$0xff]
    %v145 = vld [vmem:[%s3 + $0xf8] sm:$0xff]
    %v146 = vmul.f32 %v50, 0.9
    %v147 = vmul.f32 %v51, 0.9
    %v148 = vmul.f32 %v52, 0.9
    %v149 = vmul.f32 %v53, 0.9
    %v150 = vmul.f32 %v54, 0.9
    %v151 = vmul.f32 %v55, 0.9
    %v152 = vmul.f32 %v56, 0.9
    %v153 = vmul.f32 %v57, 0.9
    %v154 = vmul.f32 %v58, 0.9
    %v155 = vmul.f32 %v59, 0.9
    %v156 = vmul.f32 %v60, 0.9
    %v157 = vmul.f32 %v61, 0.9
    %v158 = vmul.f32 %v62, 0.9
    %v159 = vmul.f32 %v63, 0.9
    %v160 = vmul.f32 %v64, 0.9
    %v161 = vmul.f32 %v65, 0.9
    %v162 = vmul.f32 %v66, 0.9
    %v163 = vmul.f32 %v67, 0.9
    %v164 = vmul.f32 %v68, 0.9
    %v165 = vmul.f32 %v69, 0.9
    %v166 = vmul.f32 %v70, 0.9
    %v167 = vmul.f32 %v71, 0.9
    %v168 = vmul.f32 %v72, 0.9
    %v169 = vmul.f32 %v73, 0.9
    %v170 = vmul.f32 %v74, 0.9
    %v171 = vmul.f32 %v75, 0.9
    %v172 = vmul.f32 %v76, 0.9
    %v173 = vmul.f32 %v77, 0.9
    %v174 = vmul.f32 %v78, 0.9
    %v175 = vmul.f32 %v79, 0.9
    %v176 = vmul.f32 %v80, 0.9
    %v177 = vmul.f32 %v81, 0.9
    %v178 = vmul.f32 %v146, %v50
    %v179 = vmul.f32 %v147, %v51
    %v180 = vmul.f32 %v148, %v52
    %v181 = vmul.f32 %v149, %v53
    %v182 = vmul.f32 %v150, %v54
    %v183 = vmul.f32 %v151, %v55
    %v184 = vmul.f32 %v152, %v56
    %v185 = vmul.f32 %v153, %v57
    %v186 = vmul.f32 %v154, %v58
    %v187 = vmul.f32 %v155, %v59
    %v188 = vmul.f32 %v156, %v60
    %v189 = vmul.f32 %v157, %v61
    %v190 = vmul.f32 %v158, %v62
    %v191 = vmul.f32 %v159, %v63
    %v192 = vmul.f32 %v160, %v64
    %v193 = vmul.f32 %v161, %v65
    %v194 = vmul.f32 %v162, %v66
    %v195 = vmul.f32 %v163, %v67
    %v196 = vmul.f32 %v164, %v68
    %v197 = vmul.f32 %v165, %v69
    %v198 = vmul.f32 %v166, %v70
    %v199 = vmul.f32 %v167, %v71
    %v200 = vmul.f32 %v168, %v72
    %v201 = vmul.f32 %v169, %v73
    %v202 = vmul.f32 %v170, %v74
    %v203 = vmul.f32 %v171, %v75
    %v204 = vmul.f32 %v172, %v76
    %v205 = vmul.f32 %v173, %v77
    %v206 = vmul.f32 %v174, %v78
    %v207 = vmul.f32 %v175, %v79
    %v208 = vmul.f32 %v176, %v80
    %v209 = vmul.f32 %v177, %v81
    %211 = vset.pattern.permute.xlu0 0
    %212 = vperm.xlu0 %211, %v178
    %v213 = vpop.permute.xlu0 %212
    %216 = vset.pattern.permute.xlu0 0
    %217 = vperm.xlu0 %216, %v179
    %v218 = vpop.permute.xlu0 %217
    %221 = vset.pattern.permute.xlu0 0
    %222 = vperm.xlu0 %221, %v180
    %v223 = vpop.permute.xlu0 %222
    %226 = vset.pattern.permute.xlu0 0
    %227 = vperm.xlu0 %226, %v181
    %v228 = vpop.permute.xlu0 %227
    %231 = vset.pattern.permute.xlu0 0
    %232 = vperm.xlu0 %231, %v182
    %v233 = vpop.permute.xlu0 %232
    %236 = vset.pattern.permute.xlu0 0
    %237 = vperm.xlu0 %236, %v183
    %v238 = vpop.permute.xlu0 %237
    %241 = vset.pattern.permute.xlu0 0
    %242 = vperm.xlu0 %241, %v184
    %v243 = vpop.permute.xlu0 %242
    %246 = vset.pattern.permute.xlu0 0
    %247 = vperm.xlu0 %246, %v185
    %v248 = vpop.permute.xlu0 %247
    %251 = vset.pattern.permute.xlu0 0
    %252 = vperm.xlu0 %251, %v186
    %v253 = vpop.permute.xlu0 %252
    %256 = vset.pattern.permute.xlu0 0
    %257 = vperm.xlu0 %256, %v187
    %v258 = vpop.permute.xlu0 %257
    %261 = vset.pattern.permute.xlu0 0
    %262 = vperm.xlu0 %261, %v188
    %v263 = vpop.permute.xlu0 %262
    %266 = vset.pattern.permute.xlu0 0
    %267 = vperm.xlu0 %266, %v189
    %v268 = vpop.permute.xlu0 %267
    %271 = vset.pattern.permute.xlu0 0
    %272 = vperm.xlu0 %271, %v190
    %v273 = vpop.permute.xlu0 %272
    %276 = vset.pattern.permute.xlu0 0
    %277 = vperm.xlu0 %276, %v191
    %v278 = vpop.permute.xlu0 %277
    %281 = vset.pattern.permute.xlu0 0
    %282 = vperm.xlu0 %281, %v192
    %v283 = vpop.permute.xlu0 %282
    %286 = vset.pattern.permute.xlu0 0
    %287 = vperm.xlu0 %286, %v193
    %v288 = vpop.permute.xlu0 %287
    %291 = vset.pattern.permute.xlu0 0
    %292 = vperm.xlu0 %291, %v194
    %v293 = vpop.permute.xlu0 %292
    %296 = vset.pattern.permute.xlu0 0
    %297 = vperm.xlu0 %296, %v195
    %v298 = vpop.permute.xlu0 %297
    %301 = vset.pattern.permute.xlu0 0
    %302 = vperm.xlu0 %301, %v196
    %v303 = vpop.permute.xlu0 %302
    %306 = vset.pattern.permute.xlu0 0
    %307 = vperm.xlu0 %306, %v197
    %v308 = vpop.permute.xlu0 %307
    %311 = vset.pattern.permute.xlu0 0
    %312 = vperm.xlu0 %311, %v198
    %v313 = vpop.permute.xlu0 %312
    %316 = vset.pattern.permute.xlu0 0
    %317 = vperm.xlu0 %316, %v199
    %v318 = vpop.permute.xlu0 %317
    %321 = vset.pattern.permute.xlu0 0
    %322 = vperm.xlu0 %321, %v200
    %v323 = vpop.permute.xlu0 %322
    %326 = vset.pattern.permute.xlu0 0
    %327 = vperm.xlu0 %326, %v201
    %v328 = vpop.permute.xlu0 %327
    %331 = vset.pattern.permute.xlu0 0
    %332 = vperm.xlu0 %331, %v202
    %v333 = vpop.permute.xlu0 %332
    %336 = vset.pattern.permute.xlu0 0
    %337 = vperm.xlu0 %336, %v203
    %v338 = vpop.permute.xlu0 %337
    %341 = vset.pattern.permute.xlu0 0
    %342 = vperm.xlu0 %341, %v204
    %v343 = vpop.permute.xlu0 %342
    %346 = vset.pattern.permute.xlu0 0
    %347 = vperm.xlu0 %346, %v205
    %v348 = vpop.permute.xlu0 %347
    %351 = vset.pattern.permute.xlu0 0
    %352 = vperm.xlu0 %351, %v206
    %v353 = vpop.permute.xlu0 %352
    %356 = vset.pattern.permute.xlu0 0
    %357 = vperm.xlu0 %356, %v207
    %v358 = vpop.permute.xlu0 %357
    %361 = vset.pattern.permute.xlu0 0
    %362 = vperm.xlu0 %361, %v208
    %v363 = vpop.permute.xlu0 %362
    %366 = vset.pattern.permute.xlu0 0
    %367 = vperm.xlu0 %366, %v209
    %v368 = vpop.permute.xlu0 %367
    %v370 = vmul.f32 %v50, 0.1
    %v371 = vmul.f32 %v51, 0.1
    %v372 = vmul.f32 %v52, 0.1
    %v373 = vmul.f32 %v53, 0.1
    %v374 = vmul.f32 %v54, 0.1
    %v375 = vmul.f32 %v55, 0.1
    %v376 = vmul.f32 %v56, 0.1
    %v377 = vmul.f32 %v57, 0.1
    %v378 = vmul.f32 %v58, 0.1
    %v379 = vmul.f32 %v59, 0.1
    %v380 = vmul.f32 %v60, 0.1
    %v381 = vmul.f32 %v61, 0.1
    %v382 = vmul.f32 %v62, 0.1
    %v383 = vmul.f32 %v63, 0.1
    %v384 = vmul.f32 %v64, 0.1
    %v385 = vmul.f32 %v65, 0.1
    %v386 = vmul.f32 %v66, 0.1
    %v387 = vmul.f32 %v67, 0.1
    %v388 = vmul.f32 %v68, 0.1
    %v389 = vmul.f32 %v69, 0.1
    %v390 = vmul.f32 %v70, 0.1
    %v391 = vmul.f32 %v71, 0.1
    %v392 = vmul.f32 %v72, 0.1
    %v393 = vmul.f32 %v73, 0.1
    %v394 = vmul.f32 %v74, 0.1
    %v395 = vmul.f32 %v75, 0.1
    %v396 = vmul.f32 %v76, 0.1
    %v397 = vmul.f32 %v77, 0.1
    %v398 = vmul.f32 %v78, 0.1
    %v399 = vmul.f32 %v79, 0.1
    %v400 = vmul.f32 %v80, 0.1
    %v401 = vmul.f32 %v81, 0.1
    %403 = vset.pattern.permute.xlu0 0
    %404 = vperm.xlu0 %403, %v370
    %v405 = vpop.permute.xlu0 %404
    %408 = vset.pattern.permute.xlu0 0
    %409 = vperm.xlu0 %408, %v371
    %v410 = vpop.permute.xlu0 %409
    %413 = vset.pattern.permute.xlu0 0
    %414 = vperm.xlu0 %413, %v372
    %v415 = vpop.permute.xlu0 %414
    %418 = vset.pattern.permute.xlu0 0
    %419 = vperm.xlu0 %418, %v373
    %v420 = vpop.permute.xlu0 %419
    %423 = vset.pattern.permute.xlu0 0
    %424 = vperm.xlu0 %423, %v374
    %v425 = vpop.permute.xlu0 %424
    %428 = vset.pattern.permute.xlu0 0
    %429 = vperm.xlu0 %428, %v375
    %v430 = vpop.permute.xlu0 %429
    %433 = vset.pattern.permute.xlu0 0
    %434 = vperm.xlu0 %433, %v376
    %v435 = vpop.permute.xlu0 %434
    %438 = vset.pattern.permute.xlu0 0
    %439 = vperm.xlu0 %438, %v377
    %v440 = vpop.permute.xlu0 %439
    %443 = vset.pattern.permute.xlu0 0
    %444 = vperm.xlu0 %443, %v378
    %v445 = vpop.permute.xlu0 %444
    %448 = vset.pattern.permute.xlu0 0
    %449 = vperm.xlu0 %448, %v379
    %v450 = vpop.permute.xlu0 %449
    %453 = vset.pattern.permute.xlu0 0
    %454 = vperm.xlu0 %453, %v380
    %v455 = vpop.permute.xlu0 %454
    %458 = vset.pattern.permute.xlu0 0
    %459 = vperm.xlu0 %458, %v381
    %v460 = vpop.permute.xlu0 %459
    %463 = vset.pattern.permute.xlu0 0
    %464 = vperm.xlu0 %463, %v382
    %v465 = vpop.permute.xlu0 %464
    %468 = vset.pattern.permute.xlu0 0
    %469 = vperm.xlu0 %468, %v383
    %v470 = vpop.permute.xlu0 %469
    %473 = vset.pattern.permute.xlu0 0
    %474 = vperm.xlu0 %473, %v384
    %v475 = vpop.permute.xlu0 %474
    %478 = vset.pattern.permute.xlu0 0
    %479 = vperm.xlu0 %478, %v385
    %v480 = vpop.permute.xlu0 %479
    %483 = vset.pattern.permute.xlu0 0
    %484 = vperm.xlu0 %483, %v386
    %v485 = vpop.permute.xlu0 %484
    %488 = vset.pattern.permute.xlu0 0
    %489 = vperm.xlu0 %488, %v387
    %v490 = vpop.permute.xlu0 %489
    %493 = vset.pattern.permute.xlu0 0
    %494 = vperm.xlu0 %493, %v388
    %v495 = vpop.permute.xlu0 %494
    %498 = vset.pattern.permute.xlu0 0
    %499 = vperm.xlu0 %498, %v389
    %v500 = vpop.permute.xlu0 %499
    %503 = vset.pattern.permute.xlu0 0
    %504 = vperm.xlu0 %503, %v390
    %v505 = vpop.permute.xlu0 %504
    %508 = vset.pattern.permute.xlu0 0
    %509 = vperm.xlu0 %508, %v391
    %v510 = vpop.permute.xlu0 %509
    %513 = vset.pattern.permute.xlu0 0
    %514 = vperm.xlu0 %513, %v392
    %v515 = vpop.permute.xlu0 %514
    %518 = vset.pattern.permute.xlu0 0
    %519 = vperm.xlu0 %518, %v393
    %v520 = vpop.permute.xlu0 %519
    %523 = vset.pattern.permute.xlu0 0
    %524 = vperm.xlu0 %523, %v394
    %v525 = vpop.permute.xlu0 %524
    %528 = vset.pattern.permute.xlu0 0
    %529 = vperm.xlu0 %528, %v395
    %v530 = vpop.permute.xlu0 %529
    %533 = vset.pattern.permute.xlu0 0
    %534 = vperm.xlu0 %533, %v396
    %v535 = vpop.permute.xlu0 %534
    %538 = vset.pattern.permute.xlu0 0
    %539 = vperm.xlu0 %538, %v397
    %v540 = vpop.permute.xlu0 %539
    %543 = vset.pattern.permute.xlu0 0
    %544 = vperm.xlu0 %543, %v398
    %v545 = vpop.permute.xlu0 %544
    %548 = vset.pattern.permute.xlu0 0
    %549 = vperm.xlu0 %548, %v399
    %v550 = vpop.permute.xlu0 %549
    %553 = vset.pattern.permute.xlu0 0
    %554 = vperm.xlu0 %553, %v400
    %v555 = vpop.permute.xlu0 %554
    %558 = vset.pattern.permute.xlu0 0
    %559 = vperm.xlu0 %558, %v401
    %v560 = vpop.permute.xlu0 %559
    %v562 = vmul.f32 %v405, %v114
    %v563 = vmul.f32 %v410, %v115
    %v564 = vmul.f32 %v415, %v116
    %v565 = vmul.f32 %v420, %v117
    %v566 = vmul.f32 %v425, %v118
    %v567 = vmul.f32 %v430, %v119
    %v568 = vmul.f32 %v435, %v120
    %v569 = vmul.f32 %v440, %v121
    %v570 = vmul.f32 %v445, %v122
    %v571 = vmul.f32 %v450, %v123
    %v572 = vmul.f32 %v455, %v124
    %v573 = vmul.f32 %v460, %v125
    %v574 = vmul.f32 %v465, %v126
    %v575 = vmul.f32 %v470, %v127
    %v576 = vmul.f32 %v475, %v128
    %v577 = vmul.f32 %v480, %v129
    %v578 = vmul.f32 %v485, %v130
    %v579 = vmul.f32 %v490, %v131
    %v580 = vmul.f32 %v495, %v132
    %v581 = vmul.f32 %v500, %v133
    %v582 = vmul.f32 %v505, %v134
    %v583 = vmul.f32 %v510, %v135
    %v584 = vmul.f32 %v515, %v136
    %v585 = vmul.f32 %v520, %v137
    %v586 = vmul.f32 %v525, %v138
    %v587 = vmul.f32 %v530, %v139
    %v588 = vmul.f32 %v535, %v140
    %v589 = vmul.f32 %v540, %v141
    %v590 = vmul.f32 %v545, %v142
    %v591 = vmul.f32 %v550, %v143
    %v592 = vmul.f32 %v555, %v144
    %v593 = vmul.f32 %v560, %v145
    %595 = vset.pattern.permute.xlu0 0
    %596 = vperm.xlu0 %595, %v50
    %v597 = vpop.permute.xlu0 %596
    %600 = vset.pattern.permute.xlu0 0
    %601 = vperm.xlu0 %600, %v51
    %v602 = vpop.permute.xlu0 %601
    %605 = vset.pattern.permute.xlu0 0
    %606 = vperm.xlu0 %605, %v52
    %v607 = vpop.permute.xlu0 %606
    %610 = vset.pattern.permute.xlu0 0
    %611 = vperm.xlu0 %610, %v53
    %v612 = vpop.permute.xlu0 %611
    %615 = vset.pattern.permute.xlu0 0
    %616 = vperm.xlu0 %615, %v54
    %v617 = vpop.permute.xlu0 %616
    %620 = vset.pattern.permute.xlu0 0
    %621 = vperm.xlu0 %620, %v55
    %v622 = vpop.permute.xlu0 %621
    %625 = vset.pattern.permute.xlu0 0
    %626 = vperm.xlu0 %625, %v56
    %v627 = vpop.permute.xlu0 %626
    %630 = vset.pattern.permute.xlu0 0
    %631 = vperm.xlu0 %630, %v57
    %v632 = vpop.permute.xlu0 %631
    %635 = vset.pattern.permute.xlu0 0
    %636 = vperm.xlu0 %635, %v58
    %v637 = vpop.permute.xlu0 %636
    %640 = vset.pattern.permute.xlu0 0
    %641 = vperm.xlu0 %640, %v59
    %v642 = vpop.permute.xlu0 %641
    %645 = vset.pattern.permute.xlu0 0
    %646 = vperm.xlu0 %645, %v60
    %v647 = vpop.permute.xlu0 %646
    %650 = vset.pattern.permute.xlu0 0
    %651 = vperm.xlu0 %650, %v61
    %v652 = vpop.permute.xlu0 %651
    %655 = vset.pattern.permute.xlu0 0
    %656 = vperm.xlu0 %655, %v62
    %v657 = vpop.permute.xlu0 %656
    %660 = vset.pattern.permute.xlu0 0
    %661 = vperm.xlu0 %660, %v63
    %v662 = vpop.permute.xlu0 %661
    %665 = vset.pattern.permute.xlu0 0
    %666 = vperm.xlu0 %665, %v64
    %v667 = vpop.permute.xlu0 %666
    %670 = vset.pattern.permute.xlu0 0
    %671 = vperm.xlu0 %670, %v65
    %v672 = vpop.permute.xlu0 %671
    %675 = vset.pattern.permute.xlu0 0
    %676 = vperm.xlu0 %675, %v66
    %v677 = vpop.permute.xlu0 %676
    %680 = vset.pattern.permute.xlu0 0
    %681 = vperm.xlu0 %680, %v67
    %v682 = vpop.permute.xlu0 %681
    %685 = vset.pattern.permute.xlu0 0
    %686 = vperm.xlu0 %685, %v68
    %v687 = vpop.permute.xlu0 %686
    %690 = vset.pattern.permute.xlu0 0
    %691 = vperm.xlu0 %690, %v69
    %v692 = vpop.permute.xlu0 %691
    %695 = vset.pattern.permute.xlu0 0
    %696 = vperm.xlu0 %695, %v70
    %v697 = vpop.permute.xlu0 %696
    %700 = vset.pattern.permute.xlu0 0
    %701 = vperm.xlu0 %700, %v71
    %v702 = vpop.permute.xlu0 %701
    %705 = vset.pattern.permute.xlu0 0
    %706 = vperm.xlu0 %705, %v72
    %v707 = vpop.permute.xlu0 %706
    %710 = vset.pattern.permute.xlu0 0
    %711 = vperm.xlu0 %710, %v73
    %v712 = vpop.permute.xlu0 %711
    %715 = vset.pattern.permute.xlu0 0
    %716 = vperm.xlu0 %715, %v74
    %v717 = vpop.permute.xlu0 %716
    %720 = vset.pattern.permute.xlu0 0
    %721 = vperm.xlu0 %720, %v75
    %v722 = vpop.permute.xlu0 %721
    %725 = vset.pattern.permute.xlu0 0
    %726 = vperm.xlu0 %725, %v76
    %v727 = vpop.permute.xlu0 %726
    %730 = vset.pattern.permute.xlu0 0
    %731 = vperm.xlu0 %730, %v77
    %v732 = vpop.permute.xlu0 %731
    %735 = vset.pattern.permute.xlu0 0
    %736 = vperm.xlu0 %735, %v78
    %v737 = vpop.permute.xlu0 %736
    %740 = vset.pattern.permute.xlu0 0
    %741 = vperm.xlu0 %740, %v79
    %v742 = vpop.permute.xlu0 %741
    %745 = vset.pattern.permute.xlu0 0
    %746 = vperm.xlu0 %745, %v80
    %v747 = vpop.permute.xlu0 %746
    %750 = vset.pattern.permute.xlu0 0
    %751 = vperm.xlu0 %750, %v81
    %v752 = vpop.permute.xlu0 %751
    %v754 = vmul.f32 %v597, %v114
    %v755 = vmul.f32 %v602, %v115
    %v756 = vmul.f32 %v607, %v116
    %v757 = vmul.f32 %v612, %v117
    %v758 = vmul.f32 %v617, %v118
    %v759 = vmul.f32 %v622, %v119
    %v760 = vmul.f32 %v627, %v120
    %v761 = vmul.f32 %v632, %v121
    %v762 = vmul.f32 %v637, %v122
    %v763 = vmul.f32 %v642, %v123
    %v764 = vmul.f32 %v647, %v124
    %v765 = vmul.f32 %v652, %v125
    %v766 = vmul.f32 %v657, %v126
    %v767 = vmul.f32 %v662, %v127
    %v768 = vmul.f32 %v667, %v128
    %v769 = vmul.f32 %v672, %v129
    %v770 = vmul.f32 %v677, %v130
    %v771 = vmul.f32 %v682, %v131
    %v772 = vmul.f32 %v687, %v132
    %v773 = vmul.f32 %v692, %v133
    %v774 = vmul.f32 %v697, %v134
    %v775 = vmul.f32 %v702, %v135
    %v776 = vmul.f32 %v707, %v136
    %v777 = vmul.f32 %v712, %v137
    %v778 = vmul.f32 %v717, %v138
    %v779 = vmul.f32 %v722, %v139
    %v780 = vmul.f32 %v727, %v140
    %v781 = vmul.f32 %v732, %v141
    %v782 = vmul.f32 %v737, %v142
    %v783 = vmul.f32 %v742, %v143
    %v784 = vmul.f32 %v747, %v144
    %v785 = vmul.f32 %v752, %v145
    %v786 = vpack.c.bf16 %v754, %v754
    %v787 = vpack.c.bf16 %v755, %v755
    %v788 = vpack.c.bf16 %v756, %v756
    %v789 = vpack.c.bf16 %v757, %v757
    %v790 = vpack.c.bf16 %v758, %v758
    %v791 = vpack.c.bf16 %v759, %v759
    %v792 = vpack.c.bf16 %v760, %v760
    %v793 = vpack.c.bf16 %v761, %v761
    %v794 = vpack.c.bf16 %v762, %v762
    %v795 = vpack.c.bf16 %v763, %v763
    %v796 = vpack.c.bf16 %v764, %v764
    %v797 = vpack.c.bf16 %v765, %v765
    %v798 = vpack.c.bf16 %v766, %v766
    %v799 = vpack.c.bf16 %v767, %v767
    %v800 = vpack.c.bf16 %v768, %v768
    %v801 = vpack.c.bf16 %v769, %v769
    %v802 = vpack.c.bf16 %v770, %v770
    %v803 = vpack.c.bf16 %v771, %v771
    %v804 = vpack.c.bf16 %v772, %v772
    %v805 = vpack.c.bf16 %v773, %v773
    %v806 = vpack.c.bf16 %v774, %v774
    %v807 = vpack.c.bf16 %v775, %v775
    %v808 = vpack.c.bf16 %v776, %v776
    %v809 = vpack.c.bf16 %v777, %v777
    %v810 = vpack.c.bf16 %v778, %v778
    %v811 = vpack.c.bf16 %v779, %v779
    %v812 = vpack.c.bf16 %v780, %v780
    %v813 = vpack.c.bf16 %v781, %v781
    %v814 = vpack.c.bf16 %v782, %v782
    %v815 = vpack.c.bf16 %v783, %v783
    %v816 = vpack.c.bf16 %v784, %v784
    %v817 = vpack.c.bf16 %v785, %v785
    %v818 = vunpack.c.l.bf16 %v786
    %v819 = vunpack.c.l.bf16 %v787
    %v820 = vunpack.c.l.bf16 %v788
    %v821 = vunpack.c.l.bf16 %v789
    %v822 = vunpack.c.l.bf16 %v790
    %v823 = vunpack.c.l.bf16 %v791
    %v824 = vunpack.c.l.bf16 %v792
    %v825 = vunpack.c.l.bf16 %v793
    %v826 = vunpack.c.l.bf16 %v794
    %v827 = vunpack.c.l.bf16 %v795
    %v828 = vunpack.c.l.bf16 %v796
    %v829 = vunpack.c.l.bf16 %v797
    %v830 = vunpack.c.l.bf16 %v798
    %v831 = vunpack.c.l.bf16 %v799
    %v832 = vunpack.c.l.bf16 %v800
    %v833 = vunpack.c.l.bf16 %v801
    %v834 = vunpack.c.l.bf16 %v802
    %v835 = vunpack.c.l.bf16 %v803
    %v836 = vunpack.c.l.bf16 %v804
    %v837 = vunpack.c.l.bf16 %v805
    %v838 = vunpack.c.l.bf16 %v806
    %v839 = vunpack.c.l.bf16 %v807
    %v840 = vunpack.c.l.bf16 %v808
    %v841 = vunpack.c.l.bf16 %v809
    %v842 = vunpack.c.l.bf16 %v810
    %v843 = vunpack.c.l.bf16 %v811
    %v844 = vunpack.c.l.bf16 %v812
    %v845 = vunpack.c.l.bf16 %v813
    %v846 = vunpack.c.l.bf16 %v814
    %v847 = vunpack.c.l.bf16 %v815
    %v848 = vunpack.c.l.bf16 %v816
    %v849 = vunpack.c.l.bf16 %v817
    %v850 = vsub.f32 %v754, %v818
    %v851 = vsub.f32 %v755, %v819
    %v852 = vsub.f32 %v756, %v820
    %v853 = vsub.f32 %v757, %v821
    %v854 = vsub.f32 %v758, %v822
    %v855 = vsub.f32 %v759, %v823
    %v856 = vsub.f32 %v760, %v824
    %v857 = vsub.f32 %v761, %v825
    %v858 = vsub.f32 %v762, %v826
    %v859 = vsub.f32 %v763, %v827
    %v860 = vsub.f32 %v764, %v828
    %v861 = vsub.f32 %v765, %v829
    %v862 = vsub.f32 %v766, %v830
    %v863 = vsub.f32 %v767, %v831
    %v864 = vsub.f32 %v768, %v832
    %v865 = vsub.f32 %v769, %v833
    %v866 = vsub.f32 %v770, %v834
    %v867 = vsub.f32 %v771, %v835
    %v868 = vsub.f32 %v772, %v836
    %v869 = vsub.f32 %v773, %v837
    %v870 = vsub.f32 %v774, %v838
    %v871 = vsub.f32 %v775, %v839
    %v872 = vsub.f32 %v776, %v840
    %v873 = vsub.f32 %v777, %v841
    %v874 = vsub.f32 %v778, %v842
    %v875 = vsub.f32 %v779, %v843
    %v876 = vsub.f32 %v780, %v844
    %v877 = vsub.f32 %v781, %v845
    %v878 = vsub.f32 %v782, %v846
    %v879 = vsub.f32 %v783, %v847
    %v880 = vsub.f32 %v784, %v848
    %v881 = vsub.f32 %v785, %v849
    %v882 = vpack.c.bf16 %v851, %v850
    %v883 = vpack.c.bf16 %v853, %v852
    %v884 = vpack.c.bf16 %v855, %v854
    %v885 = vpack.c.bf16 %v857, %v856
    %v886 = vpack.c.bf16 %v859, %v858
    %v887 = vpack.c.bf16 %v861, %v860
    %v888 = vpack.c.bf16 %v863, %v862
    %v889 = vpack.c.bf16 %v865, %v864
    %v890 = vpack.c.bf16 %v867, %v866
    %v891 = vpack.c.bf16 %v869, %v868
    %v892 = vpack.c.bf16 %v871, %v870
    %v893 = vpack.c.bf16 %v873, %v872
    %v894 = vpack.c.bf16 %v875, %v874
    %v895 = vpack.c.bf16 %v877, %v876
    %v896 = vpack.c.bf16 %v879, %v878
    %v897 = vpack.c.bf16 %v881, %v880
    %v930 = vunpack.c.l.b16 %v18
    %v931 = vunpack.c.h.b16 %v18
    %v932 = vunpack.c.l.b16 %v19
    %v933 = vunpack.c.h.b16 %v19
    %v934 = vunpack.c.l.b16 %v20
    %v935 = vunpack.c.h.b16 %v20
    %v936 = vunpack.c.l.b16 %v21
    %v937 = vunpack.c.h.b16 %v21
    %v938 = vunpack.c.l.b16 %v22
    %v939 = vunpack.c.h.b16 %v22
    %v940 = vunpack.c.l.b16 %v23
    %v941 = vunpack.c.h.b16 %v23
    %v942 = vunpack.c.l.b16 %v24
    %v943 = vunpack.c.h.b16 %v24
    %v944 = vunpack.c.l.b16 %v25
    %v945 = vunpack.c.h.b16 %v25
    %v946 = vunpack.c.l.b16 %v26
    %v947 = vunpack.c.h.b16 %v26
    %v948 = vunpack.c.l.b16 %v27
    %v949 = vunpack.c.h.b16 %v27
    %v950 = vunpack.c.l.b16 %v28
    %v951 = vunpack.c.h.b16 %v28
    %v952 = vunpack.c.l.b16 %v29
    %v953 = vunpack.c.h.b16 %v29
    %v954 = vunpack.c.l.b16 %v30
    %v955 = vunpack.c.h.b16 %v30
    %v956 = vunpack.c.l.b16 %v31
    %v957 = vunpack.c.h.b16 %v31
    %v958 = vunpack.c.l.b16 %v32
    %v959 = vunpack.c.h.b16 %v32
    %v960 = vunpack.c.l.b16 %v33
    %v961 = vunpack.c.h.b16 %v33
    %v962 = vunpack.c.l.b16 %v34
    %v963 = vunpack.c.h.b16 %v34
    %v964 = vunpack.c.l.b16 %v35
    %v965 = vunpack.c.h.b16 %v35
    %v966 = vunpack.c.l.b16 %v36
    %v967 = vunpack.c.h.b16 %v36
    %v968 = vunpack.c.l.b16 %v37
    %v969 = vunpack.c.h.b16 %v37
    %v970 = vunpack.c.l.b16 %v38
    %v971 = vunpack.c.h.b16 %v38
    %v972 = vunpack.c.l.b16 %v39
    %v973 = vunpack.c.h.b16 %v39
    %v974 = vunpack.c.l.b16 %v40
    %v975 = vunpack.c.h.b16 %v40
    %v976 = vunpack.c.l.b16 %v41
    %v977 = vunpack.c.h.b16 %v41
    %v978 = vunpack.c.l.b16 %v42
    %v979 = vunpack.c.h.b16 %v42
    %v980 = vunpack.c.l.b16 %v43
    %v981 = vunpack.c.h.b16 %v43
    %v982 = vunpack.c.l.b16 %v44
    %v983 = vunpack.c.h.b16 %v44
    %v984 = vunpack.c.l.b16 %v45
    %v985 = vunpack.c.h.b16 %v45
    %v986 = vunpack.c.l.b16 %v46
    %v987 = vunpack.c.h.b16 %v46
    %v988 = vunpack.c.l.b16 %v47
    %v989 = vunpack.c.h.b16 %v47
    %v990 = vunpack.c.l.b16 %v48
    %v991 = vunpack.c.h.b16 %v48
    %v992 = vunpack.c.l.b16 %v49
    %v993 = vunpack.c.h.b16 %v49
    %v994 = vpack.c.b16 %v932, %v930
    %v995 = vpack.c.b16 %v933, %v931
    %v996 = vpack.c.b16 %v936, %v934
    %v997 = vpack.c.b16 %v937, %v935
    %v998 = vpack.c.b16 %v940, %v938
    %v999 = vpack.c.b16 %v941, %v939
    %v1000 = vpack.c.b16 %v944, %v942
    %v1001 = vpack.c.b16 %v945, %v943
    %v1002 = vpack.c.b16 %v948, %v946
    %v1003 = vpack.c.b16 %v949, %v947
    %v1004 = vpack.c.b16 %v952, %v950
    %v1005 = vpack.c.b16 %v953, %v951
    %v1006 = vpack.c.b16 %v956, %v954
    %v1007 = vpack.c.b16 %v957, %v955
    %v1008 = vpack.c.b16 %v960, %v958
    %v1009 = vpack.c.b16 %v961, %v959
    %v1010 = vpack.c.b16 %v964, %v962
    %v1011 = vpack.c.b16 %v965, %v963
    %v1012 = vpack.c.b16 %v968, %v966
    %v1013 = vpack.c.b16 %v969, %v967
    %v1014 = vpack.c.b16 %v972, %v970
    %v1015 = vpack.c.b16 %v973, %v971
    %v1016 = vpack.c.b16 %v976, %v974
    %v1017 = vpack.c.b16 %v977, %v975
    %v1018 = vpack.c.b16 %v980, %v978
    %v1019 = vpack.c.b16 %v981, %v979
    %v1020 = vpack.c.b16 %v984, %v982
    %v1021 = vpack.c.b16 %v985, %v983
    %v1022 = vpack.c.b16 %v988, %v986
    %v1023 = vpack.c.b16 %v989, %v987
    %v1024 = vpack.c.b16 %v992, %v990
    %v1025 = vpack.c.b16 %v993, %v991
    %1058 = vmatpush.bf16.msra.mxu0 %v889
    %1059 = vmatpush.bf16.msra.mxu0 %v888
    %1060 = vmatpush.bf16.msra.mxu0 %v887
    %1061 = vmatpush.bf16.msra.mxu0 %v886
    %1062 = vmatpush.bf16.msra.mxu0 %v885
    %1063 = vmatpush.bf16.msra.mxu0 %v884
    %1064 = vmatpush.bf16.msra.mxu0 %v883
    %1065 = vmatpush.bf16.msra.mxu0 %v882
    %1066 = vmatmul.bf16.gmra.mxu0 %v994
    %v1067 = vpop.f32.mrf.mxu0
    %v1068 = vadd.f32 0.0, %v1067
    %v1069 = vpop.f32.mrf.mxu0
    %v1070 = vadd.f32 0.0, %v1069
    %1071 = vmatmul.bf16.gmra.mxu0 %v996
    %v1072 = vpop.f32.mrf.mxu0
    %v1073 = vadd.f32 0.0, %v1072
    %v1074 = vpop.f32.mrf.mxu0
    %v1075 = vadd.f32 0.0, %v1074
    %1076 = vmatmul.bf16.gmra.mxu0 %v998
    %v1077 = vpop.f32.mrf.mxu0
    %v1078 = vadd.f32 0.0, %v1077
    %v1079 = vpop.f32.mrf.mxu0
    %v1080 = vadd.f32 0.0, %v1079
    %1081 = vmatmul.bf16.gmra.mxu0 %v1000
    %v1082 = vpop.f32.mrf.mxu0
    %v1083 = vadd.f32 0.0, %v1082
    %v1084 = vpop.f32.mrf.mxu0
    %v1085 = vadd.f32 0.0, %v1084
    %1086 = vmatmul.bf16.gmra.mxu0 %v1002
    %v1087 = vpop.f32.mrf.mxu0
    %v1088 = vadd.f32 0.0, %v1087
    %v1089 = vpop.f32.mrf.mxu0
    %v1090 = vadd.f32 0.0, %v1089
    %1091 = vmatmul.bf16.gmra.mxu0 %v1004
    %v1092 = vpop.f32.mrf.mxu0
    %v1093 = vadd.f32 0.0, %v1092
    %v1094 = vpop.f32.mrf.mxu0
    %v1095 = vadd.f32 0.0, %v1094
    %1096 = vmatmul.bf16.gmra.mxu0 %v1006
    %v1097 = vpop.f32.mrf.mxu0
    %v1098 = vadd.f32 0.0, %v1097
    %v1099 = vpop.f32.mrf.mxu0
    %v1100 = vadd.f32 0.0, %v1099
    %1101 = vmatmul.bf16.gmra.mxu0 %v1008
    %v1102 = vpop.f32.mrf.mxu0
    %v1103 = vadd.f32 0.0, %v1102
    %v1104 = vpop.f32.mrf.mxu0
    %v1105 = vadd.f32 0.0, %v1104
    %1106 = vmatmul.bf16.gmra.mxu0 %v1010
    %v1107 = vpop.f32.mrf.mxu0
    %v1108 = vadd.f32 0.0, %v1107
    %v1109 = vpop.f32.mrf.mxu0
    %v1110 = vadd.f32 0.0, %v1109
    %1111 = vmatmul.bf16.gmra.mxu0 %v1012
    %v1112 = vpop.f32.mrf.mxu0
    %v1113 = vadd.f32 0.0, %v1112
    %v1114 = vpop.f32.mrf.mxu0
    %v1115 = vadd.f32 0.0, %v1114
    %1116 = vmatmul.bf16.gmra.mxu0 %v1014
    %v1117 = vpop.f32.mrf.mxu0
    %v1118 = vadd.f32 0.0, %v1117
    %v1119 = vpop.f32.mrf.mxu0
    %v1120 = vadd.f32 0.0, %v1119
    %1121 = vmatmul.bf16.gmra.mxu0 %v1016
    %v1122 = vpop.f32.mrf.mxu0
    %v1123 = vadd.f32 0.0, %v1122
    %v1124 = vpop.f32.mrf.mxu0
    %v1125 = vadd.f32 0.0, %v1124
    %1126 = vmatmul.bf16.gmra.mxu0 %v1018
    %v1127 = vpop.f32.mrf.mxu0
    %v1128 = vadd.f32 0.0, %v1127
    %v1129 = vpop.f32.mrf.mxu0
    %v1130 = vadd.f32 0.0, %v1129
    %1131 = vmatmul.bf16.gmra.mxu0 %v1020
    %v1132 = vpop.f32.mrf.mxu0
    %v1133 = vadd.f32 0.0, %v1132
    %v1134 = vpop.f32.mrf.mxu0
    %v1135 = vadd.f32 0.0, %v1134
    %1136 = vmatmul.bf16.gmra.mxu0 %v1022
    %v1137 = vpop.f32.mrf.mxu0
    %v1138 = vadd.f32 0.0, %v1137
    %v1139 = vpop.f32.mrf.mxu0
    %v1140 = vadd.f32 0.0, %v1139
    %1141 = vmatmul.bf16.gmra.mxu0 %v1024
    %v1142 = vpop.f32.mrf.mxu0
    %v1143 = vadd.f32 0.0, %v1142
    %v1144 = vpop.f32.mrf.mxu0
    %v1145 = vadd.f32 0.0, %v1144
    %1146 = vdwg.mxu0
    %1147 = vmatpush.bf16.msra.mxu0 %v897
    %1148 = vmatpush.bf16.msra.mxu0 %v896
    %1149 = vmatpush.bf16.msra.mxu0 %v895
    %1150 = vmatpush.bf16.msra.mxu0 %v894
    %1151 = vmatpush.bf16.msra.mxu0 %v893
    %1152 = vmatpush.bf16.msra.mxu0 %v892
    %1153 = vmatpush.bf16.msra.mxu0 %v891
    %1154 = vmatpush.bf16.msra.mxu0 %v890
    %1155 = vmatmul.bf16.gmra.mxu0 %v995
    %v1156 = vpop.f32.mrf.mxu0
    %v1157 = vadd.f32 %v1068, %v1156
    %v1158 = vpop.f32.mrf.mxu0
    %v1159 = vadd.f32 %v1070, %v1158
    %1160 = vmatmul.bf16.gmra.mxu0 %v997
    %v1161 = vpop.f32.mrf.mxu0
    %v1162 = vadd.f32 %v1073, %v1161
    %v1163 = vpop.f32.mrf.mxu0
    %v1164 = vadd.f32 %v1075, %v1163
    %1165 = vmatmul.bf16.gmra.mxu0 %v999
    %v1166 = vpop.f32.mrf.mxu0
    %v1167 = vadd.f32 %v1078, %v1166
    %v1168 = vpop.f32.mrf.mxu0
    %v1169 = vadd.f32 %v1080, %v1168
    %1170 = vmatmul.bf16.gmra.mxu0 %v1001
    %v1171 = vpop.f32.mrf.mxu0
    %v1172 = vadd.f32 %v1083, %v1171
    %v1173 = vpop.f32.mrf.mxu0
    %v1174 = vadd.f32 %v1085, %v1173
    %1175 = vmatmul.bf16.gmra.mxu0 %v1003
    %v1176 = vpop.f32.mrf.mxu0
    %v1177 = vadd.f32 %v1088, %v1176
    %v1178 = vpop.f32.mrf.mxu0
    %v1179 = vadd.f32 %v1090, %v1178
    %1180 = vmatmul.bf16.gmra.mxu0 %v1005
    %v1181 = vpop.f32.mrf.mxu0
    %v1182 = vadd.f32 %v1093, %v1181
    %v1183 = vpop.f32.mrf.mxu0
    %v1184 = vadd.f32 %v1095, %v1183
    %1185 = vmatmul.bf16.gmra.mxu0 %v1007
    %v1186 = vpop.f32.mrf.mxu0
    %v1187 = vadd.f32 %v1098, %v1186
    %v1188 = vpop.f32.mrf.mxu0
    %v1189 = vadd.f32 %v1100, %v1188
    %1190 = vmatmul.bf16.gmra.mxu0 %v1009
    %v1191 = vpop.f32.mrf.mxu0
    %v1192 = vadd.f32 %v1103, %v1191
    %v1193 = vpop.f32.mrf.mxu0
    %v1194 = vadd.f32 %v1105, %v1193
    %1195 = vmatmul.bf16.gmra.mxu0 %v1011
    %v1196 = vpop.f32.mrf.mxu0
    %v1197 = vadd.f32 %v1108, %v1196
    %v1198 = vpop.f32.mrf.mxu0
    %v1199 = vadd.f32 %v1110, %v1198
    %1200 = vmatmul.bf16.gmra.mxu0 %v1013
    %v1201 = vpop.f32.mrf.mxu0
    %v1202 = vadd.f32 %v1113, %v1201
    %v1203 = vpop.f32.mrf.mxu0
    %v1204 = vadd.f32 %v1115, %v1203
    %1205 = vmatmul.bf16.gmra.mxu0 %v1015
    %v1206 = vpop.f32.mrf.mxu0
    %v1207 = vadd.f32 %v1118, %v1206
    %v1208 = vpop.f32.mrf.mxu0
    %v1209 = vadd.f32 %v1120, %v1208
    %1210 = vmatmul.bf16.gmra.mxu0 %v1017
    %v1211 = vpop.f32.mrf.mxu0
    %v1212 = vadd.f32 %v1123, %v1211
    %v1213 = vpop.f32.mrf.mxu0
    %v1214 = vadd.f32 %v1125, %v1213
    %1215 = vmatmul.bf16.gmra.mxu0 %v1019
    %v1216 = vpop.f32.mrf.mxu0
    %v1217 = vadd.f32 %v1128, %v1216
    %v1218 = vpop.f32.mrf.mxu0
    %v1219 = vadd.f32 %v1130, %v1218
    %1220 = vmatmul.bf16.gmra.mxu0 %v1021
    %v1221 = vpop.f32.mrf.mxu0
    %v1222 = vadd.f32 %v1133, %v1221
    %v1223 = vpop.f32.mrf.mxu0
    %v1224 = vadd.f32 %v1135, %v1223
    %1225 = vmatmul.bf16.gmra.mxu0 %v1023
    %v1226 = vpop.f32.mrf.mxu0
    %v1227 = vadd.f32 %v1138, %v1226
    %v1228 = vpop.f32.mrf.mxu0
    %v1229 = vadd.f32 %v1140, %v1228
    %1230 = vmatmul.bf16.gmra.mxu0 %v1025
    %v1231 = vpop.f32.mrf.mxu0
    %v1232 = vadd.f32 %v1143, %v1231
    %v1233 = vpop.f32.mrf.mxu0
    %v1234 = vadd.f32 %v1145, %v1233
    %1235 = vdwg.mxu0
    %v1268 = vunpack.c.l.b16 %v786
    %v1269 = vunpack.c.l.b16 %v787
    %v1270 = vunpack.c.l.b16 %v788
    %v1271 = vunpack.c.l.b16 %v789
    %v1272 = vunpack.c.l.b16 %v790
    %v1273 = vunpack.c.l.b16 %v791
    %v1274 = vunpack.c.l.b16 %v792
    %v1275 = vunpack.c.l.b16 %v793
    %v1276 = vunpack.c.l.b16 %v794
    %v1277 = vunpack.c.l.b16 %v795
    %v1278 = vunpack.c.l.b16 %v796
    %v1279 = vunpack.c.l.b16 %v797
    %v1280 = vunpack.c.l.b16 %v798
    %v1281 = vunpack.c.l.b16 %v799
    %v1282 = vunpack.c.l.b16 %v800
    %v1283 = vunpack.c.l.b16 %v801
    %v1284 = vunpack.c.l.b16 %v802
    %v1285 = vunpack.c.l.b16 %v803
    %v1286 = vunpack.c.l.b16 %v804
    %v1287 = vunpack.c.l.b16 %v805
    %v1288 = vunpack.c.l.b16 %v806
    %v1289 = vunpack.c.l.b16 %v807
    %v1290 = vunpack.c.l.b16 %v808
    %v1291 = vunpack.c.l.b16 %v809
    %v1292 = vunpack.c.l.b16 %v810
    %v1293 = vunpack.c.l.b16 %v811
    %v1294 = vunpack.c.l.b16 %v812
    %v1295 = vunpack.c.l.b16 %v813
    %v1296 = vunpack.c.l.b16 %v814
    %v1297 = vunpack.c.l.b16 %v815
    %v1298 = vunpack.c.l.b16 %v816
    %v1299 = vunpack.c.l.b16 %v817
    %v1300 = vpack.c.b16 %v1269, %v1268
    %v1301 = vpack.c.b16 %v1271, %v1270
    %v1302 = vpack.c.b16 %v1273, %v1272
    %v1303 = vpack.c.b16 %v1275, %v1274
    %v1304 = vpack.c.b16 %v1277, %v1276
    %v1305 = vpack.c.b16 %v1279, %v1278
    %v1306 = vpack.c.b16 %v1281, %v1280
    %v1307 = vpack.c.b16 %v1283, %v1282
    %v1308 = vpack.c.b16 %v1285, %v1284
    %v1309 = vpack.c.b16 %v1287, %v1286
    %v1310 = vpack.c.b16 %v1289, %v1288
    %v1311 = vpack.c.b16 %v1291, %v1290
    %v1312 = vpack.c.b16 %v1293, %v1292
    %v1313 = vpack.c.b16 %v1295, %v1294
    %v1314 = vpack.c.b16 %v1297, %v1296
    %v1315 = vpack.c.b16 %v1299, %v1298
    %1332 = vmatpush.bf16.msra.mxu0 %v1307
    %1333 = vmatpush.bf16.msra.mxu0 %v1306
    %1334 = vmatpush.bf16.msra.mxu0 %v1305
    %1335 = vmatpush.bf16.msra.mxu0 %v1304
    %1336 = vmatpush.bf16.msra.mxu0 %v1303
    %1337 = vmatpush.bf16.msra.mxu0 %v1302
    %1338 = vmatpush.bf16.msra.mxu0 %v1301
    %1339 = vmatpush.bf16.msra.mxu0 %v1300
    %1340 = vmatmul.bf16.gmra.mxu0 %v994
    %v1341 = vpop.f32.mrf.mxu0
    %v1342 = vadd.f32 %v1157, %v1341
    %v1343 = vpop.f32.mrf.mxu0
    %v1344 = vadd.f32 %v1159, %v1343
    %1345 = vmatmul.bf16.gmra.mxu0 %v996
    %v1346 = vpop.f32.mrf.mxu0
    %v1347 = vadd.f32 %v1162, %v1346
    %v1348 = vpop.f32.mrf.mxu0
    %v1349 = vadd.f32 %v1164, %v1348
    %1350 = vmatmul.bf16.gmra.mxu0 %v998
    %v1351 = vpop.f32.mrf.mxu0
    %v1352 = vadd.f32 %v1167, %v1351
    %v1353 = vpop.f32.mrf.mxu0
    %v1354 = vadd.f32 %v1169, %v1353
    %1355 = vmatmul.bf16.gmra.mxu0 %v1000
    %v1356 = vpop.f32.mrf.mxu0
    %v1357 = vadd.f32 %v1172, %v1356
    %v1358 = vpop.f32.mrf.mxu0
    %v1359 = vadd.f32 %v1174, %v1358
    %1360 = vmatmul.bf16.gmra.mxu0 %v1002
    %v1361 = vpop.f32.mrf.mxu0
    %v1362 = vadd.f32 %v1177, %v1361
    %v1363 = vpop.f32.mrf.mxu0
    %v1364 = vadd.f32 %v1179, %v1363
    %1365 = vmatmul.bf16.gmra.mxu0 %v1004
    %v1366 = vpop.f32.mrf.mxu0
    %v1367 = vadd.f32 %v1182, %v1366
    %v1368 = vpop.f32.mrf.mxu0
    %v1369 = vadd.f32 %v1184, %v1368
    %1370 = vmatmul.bf16.gmra.mxu0 %v1006
    %v1371 = vpop.f32.mrf.mxu0
    %v1372 = vadd.f32 %v1187, %v1371
    %v1373 = vpop.f32.mrf.mxu0
    %v1374 = vadd.f32 %v1189, %v1373
    %1375 = vmatmul.bf16.gmra.mxu0 %v1008
    %v1376 = vpop.f32.mrf.mxu0
    %v1377 = vadd.f32 %v1192, %v1376
    %v1378 = vpop.f32.mrf.mxu0
    %v1379 = vadd.f32 %v1194, %v1378
    %1380 = vmatmul.bf16.gmra.mxu0 %v1010
    %v1381 = vpop.f32.mrf.mxu0
    %v1382 = vadd.f32 %v1197, %v1381
    %v1383 = vpop.f32.mrf.mxu0
    %v1384 = vadd.f32 %v1199, %v1383
    %1385 = vmatmul.bf16.gmra.mxu0 %v1012
    %v1386 = vpop.f32.mrf.mxu0
    %v1387 = vadd.f32 %v1202, %v1386
    %v1388 = vpop.f32.mrf.mxu0
    %v1389 = vadd.f32 %v1204, %v1388
    %1390 = vmatmul.bf16.gmra.mxu0 %v1014
    %v1391 = vpop.f32.mrf.mxu0
    %v1392 = vadd.f32 %v1207, %v1391
    %v1393 = vpop.f32.mrf.mxu0
    %v1394 = vadd.f32 %v1209, %v1393
    %1395 = vmatmul.bf16.gmra.mxu0 %v1016
    %v1396 = vpop.f32.mrf.mxu0
    %v1397 = vadd.f32 %v1212, %v1396
    %v1398 = vpop.f32.mrf.mxu0
    %v1399 = vadd.f32 %v1214, %v1398
    %1400 = vmatmul.bf16.gmra.mxu0 %v1018
    %v1401 = vpop.f32.mrf.mxu0
    %v1402 = vadd.f32 %v1217, %v1401
    %v1403 = vpop.f32.mrf.mxu0
    %v1404 = vadd.f32 %v1219, %v1403
    %1405 = vmatmul.bf16.gmra.mxu0 %v1020
    %v1406 = vpop.f32.mrf.mxu0
    %v1407 = vadd.f32 %v1222, %v1406
    %v1408 = vpop.f32.mrf.mxu0
    %v1409 = vadd.f32 %v1224, %v1408
    %1410 = vmatmul.bf16.gmra.mxu0 %v1022
    %v1411 = vpop.f32.mrf.mxu0
    %v1412 = vadd.f32 %v1227, %v1411
    %v1413 = vpop.f32.mrf.mxu0
    %v1414 = vadd.f32 %v1229, %v1413
    %1415 = vmatmul.bf16.gmra.mxu0 %v1024
    %v1416 = vpop.f32.mrf.mxu0
    %v1417 = vadd.f32 %v1232, %v1416
    %v1418 = vpop.f32.mrf.mxu0
    %v1419 = vadd.f32 %v1234, %v1418
    %1420 = vdwg.mxu0
    %1421 = vmatpush.bf16.msra.mxu0 %v1315
    %1422 = vmatpush.bf16.msra.mxu0 %v1314
    %1423 = vmatpush.bf16.msra.mxu0 %v1313
    %1424 = vmatpush.bf16.msra.mxu0 %v1312
    %1425 = vmatpush.bf16.msra.mxu0 %v1311
    %1426 = vmatpush.bf16.msra.mxu0 %v1310
    %1427 = vmatpush.bf16.msra.mxu0 %v1309
    %1428 = vmatpush.bf16.msra.mxu0 %v1308
    %1429 = vmatmul.bf16.gmra.mxu0 %v995
    %v1430 = vpop.f32.mrf.mxu0
    %v1431 = vadd.f32 %v1342, %v1430
    %v1432 = vpop.f32.mrf.mxu0
    %v1433 = vadd.f32 %v1344, %v1432
    %1434 = vmatmul.bf16.gmra.mxu0 %v997
    %v1435 = vpop.f32.mrf.mxu0
    %v1436 = vadd.f32 %v1347, %v1435
    %v1437 = vpop.f32.mrf.mxu0
    %v1438 = vadd.f32 %v1349, %v1437
    %1439 = vmatmul.bf16.gmra.mxu0 %v999
    %v1440 = vpop.f32.mrf.mxu0
    %v1441 = vadd.f32 %v1352, %v1440
    %v1442 = vpop.f32.mrf.mxu0
    %v1443 = vadd.f32 %v1354, %v1442
    %1444 = vmatmul.bf16.gmra.mxu0 %v1001
    %v1445 = vpop.f32.mrf.mxu0
    %v1446 = vadd.f32 %v1357, %v1445
    %v1447 = vpop.f32.mrf.mxu0
    %v1448 = vadd.f32 %v1359, %v1447
    %1449 = vmatmul.bf16.gmra.mxu0 %v1003
    %v1450 = vpop.f32.mrf.mxu0
    %v1451 = vadd.f32 %v1362, %v1450
    %v1452 = vpop.f32.mrf.mxu0
    %v1453 = vadd.f32 %v1364, %v1452
    %1454 = vmatmul.bf16.gmra.mxu0 %v1005
    %v1455 = vpop.f32.mrf.mxu0
    %v1456 = vadd.f32 %v1367, %v1455
    %v1457 = vpop.f32.mrf.mxu0
    %v1458 = vadd.f32 %v1369, %v1457
    %1459 = vmatmul.bf16.gmra.mxu0 %v1007
    %v1460 = vpop.f32.mrf.mxu0
    %v1461 = vadd.f32 %v1372, %v1460
    %v1462 = vpop.f32.mrf.mxu0
    %v1463 = vadd.f32 %v1374, %v1462
    %1464 = vmatmul.bf16.gmra.mxu0 %v1009
    %v1465 = vpop.f32.mrf.mxu0
    %v1466 = vadd.f32 %v1377, %v1465
    %v1467 = vpop.f32.mrf.mxu0
    %v1468 = vadd.f32 %v1379, %v1467
    %1469 = vmatmul.bf16.gmra.mxu0 %v1011
    %v1470 = vpop.f32.mrf.mxu0
    %v1471 = vadd.f32 %v1382, %v1470
    %v1472 = vpop.f32.mrf.mxu0
    %v1473 = vadd.f32 %v1384, %v1472
    %1474 = vmatmul.bf16.gmra.mxu0 %v1013
    %v1475 = vpop.f32.mrf.mxu0
    %v1476 = vadd.f32 %v1387, %v1475
    %v1477 = vpop.f32.mrf.mxu0
    %v1478 = vadd.f32 %v1389, %v1477
    %1479 = vmatmul.bf16.gmra.mxu0 %v1015
    %v1480 = vpop.f32.mrf.mxu0
    %v1481 = vadd.f32 %v1392, %v1480
    %v1482 = vpop.f32.mrf.mxu0
    %v1483 = vadd.f32 %v1394, %v1482
    %1484 = vmatmul.bf16.gmra.mxu0 %v1017
    %v1485 = vpop.f32.mrf.mxu0
    %v1486 = vadd.f32 %v1397, %v1485
    %v1487 = vpop.f32.mrf.mxu0
    %v1488 = vadd.f32 %v1399, %v1487
    %1489 = vmatmul.bf16.gmra.mxu0 %v1019
    %v1490 = vpop.f32.mrf.mxu0
    %v1491 = vadd.f32 %v1402, %v1490
    %v1492 = vpop.f32.mrf.mxu0
    %v1493 = vadd.f32 %v1404, %v1492
    %1494 = vmatmul.bf16.gmra.mxu0 %v1021
    %v1495 = vpop.f32.mrf.mxu0
    %v1496 = vadd.f32 %v1407, %v1495
    %v1497 = vpop.f32.mrf.mxu0
    %v1498 = vadd.f32 %v1409, %v1497
    %1499 = vmatmul.bf16.gmra.mxu0 %v1023
    %v1500 = vpop.f32.mrf.mxu0
    %v1501 = vadd.f32 %v1412, %v1500
    %v1502 = vpop.f32.mrf.mxu0
    %v1503 = vadd.f32 %v1414, %v1502
    %1504 = vmatmul.bf16.gmra.mxu0 %v1025
    %v1505 = vpop.f32.mrf.mxu0
    %v1506 = vadd.f32 %v1417, %v1505
    %v1507 = vpop.f32.mrf.mxu0
    %v1508 = vadd.f32 %v1419, %v1507
    %1509 = vdwg.mxu0
    %v1510 = vmul.f32 %v213, %v1431
    %v1511 = vmul.f32 %v218, %v1433
    %v1512 = vmul.f32 %v223, %v1436
    %v1513 = vmul.f32 %v228, %v1438
    %v1514 = vmul.f32 %v233, %v1441
    %v1515 = vmul.f32 %v238, %v1443
    %v1516 = vmul.f32 %v243, %v1446
    %v1517 = vmul.f32 %v248, %v1448
    %v1518 = vmul.f32 %v253, %v1451
    %v1519 = vmul.f32 %v258, %v1453
    %v1520 = vmul.f32 %v263, %v1456
    %v1521 = vmul.f32 %v268, %v1458
    %v1522 = vmul.f32 %v273, %v1461
    %v1523 = vmul.f32 %v278, %v1463
    %v1524 = vmul.f32 %v283, %v1466
    %v1525 = vmul.f32 %v288, %v1468
    %v1526 = vmul.f32 %v293, %v1471
    %v1527 = vmul.f32 %v298, %v1473
    %v1528 = vmul.f32 %v303, %v1476
    %v1529 = vmul.f32 %v308, %v1478
    %v1530 = vmul.f32 %v313, %v1481
    %v1531 = vmul.f32 %v318, %v1483
    %v1532 = vmul.f32 %v323, %v1486
    %v1533 = vmul.f32 %v328, %v1488
    %v1534 = vmul.f32 %v333, %v1491
    %v1535 = vmul.f32 %v338, %v1493
    %v1536 = vmul.f32 %v343, %v1496
    %v1537 = vmul.f32 %v348, %v1498
    %v1538 = vmul.f32 %v353, %v1501
    %v1539 = vmul.f32 %v358, %v1503
    %v1540 = vmul.f32 %v363, %v1506
    %v1541 = vmul.f32 %v368, %v1508
    %v1542 = vadd.f32 %v1510, %v562
    %v1543 = vadd.f32 %v1511, %v563
    %v1544 = vadd.f32 %v1512, %v564
    %v1545 = vadd.f32 %v1513, %v565
    %v1546 = vadd.f32 %v1514, %v566
    %v1547 = vadd.f32 %v1515, %v567
    %v1548 = vadd.f32 %v1516, %v568
    %v1549 = vadd.f32 %v1517, %v569
    %v1550 = vadd.f32 %v1518, %v570
    %v1551 = vadd.f32 %v1519, %v571
    %v1552 = vadd.f32 %v1520, %v572
    %v1553 = vadd.f32 %v1521, %v573
    %v1554 = vadd.f32 %v1522, %v574
    %v1555 = vadd.f32 %v1523, %v575
    %v1556 = vadd.f32 %v1524, %v576
    %v1557 = vadd.f32 %v1525, %v577
    %v1558 = vadd.f32 %v1526, %v578
    %v1559 = vadd.f32 %v1527, %v579
    %v1560 = vadd.f32 %v1528, %v580
    %v1561 = vadd.f32 %v1529, %v581
    %v1562 = vadd.f32 %v1530, %v582
    %v1563 = vadd.f32 %v1531, %v583
    %v1564 = vadd.f32 %v1532, %v584
    %v1565 = vadd.f32 %v1533, %v585
    %v1566 = vadd.f32 %v1534, %v586
    %v1567 = vadd.f32 %v1535, %v587
    %v1568 = vadd.f32 %v1536, %v588
    %v1569 = vadd.f32 %v1537, %v589
    %v1570 = vadd.f32 %v1538, %v590
    %v1571 = vadd.f32 %v1539, %v591
    %v1572 = vadd.f32 %v1540, %v592
    %v1573 = vadd.f32 %v1541, %v593
    %v1574 = vpack.c.bf16 %v1542, %v1542
    %v1575 = vpack.c.bf16 %v1543, %v1543
    %v1576 = vpack.c.bf16 %v1544, %v1544
    %v1577 = vpack.c.bf16 %v1545, %v1545
    %v1578 = vpack.c.bf16 %v1546, %v1546
    %v1579 = vpack.c.bf16 %v1547, %v1547
    %v1580 = vpack.c.bf16 %v1548, %v1548
    %v1581 = vpack.c.bf16 %v1549, %v1549
    %v1582 = vpack.c.bf16 %v1550, %v1550
    %v1583 = vpack.c.bf16 %v1551, %v1551
    %v1584 = vpack.c.bf16 %v1552, %v1552
    %v1585 = vpack.c.bf16 %v1553, %v1553
    %v1586 = vpack.c.bf16 %v1554, %v1554
    %v1587 = vpack.c.bf16 %v1555, %v1555
    %v1588 = vpack.c.bf16 %v1556, %v1556
    %v1589 = vpack.c.bf16 %v1557, %v1557
    %v1590 = vpack.c.bf16 %v1558, %v1558
    %v1591 = vpack.c.bf16 %v1559, %v1559
    %v1592 = vpack.c.bf16 %v1560, %v1560
    %v1593 = vpack.c.bf16 %v1561, %v1561
    %v1594 = vpack.c.bf16 %v1562, %v1562
    %v1595 = vpack.c.bf16 %v1563, %v1563
    %v1596 = vpack.c.bf16 %v1564, %v1564
    %v1597 = vpack.c.bf16 %v1565, %v1565
    %v1598 = vpack.c.bf16 %v1566, %v1566
    %v1599 = vpack.c.bf16 %v1567, %v1567
    %v1600 = vpack.c.bf16 %v1568, %v1568
    %v1601 = vpack.c.bf16 %v1569, %v1569
    %v1602 = vpack.c.bf16 %v1570, %v1570
    %v1603 = vpack.c.bf16 %v1571, %v1571
    %v1604 = vpack.c.bf16 %v1572, %v1572
    %v1605 = vpack.c.bf16 %v1573, %v1573
    %v1606 = vunpack.c.l.bf16 %v1574
    %v1607 = vunpack.c.l.bf16 %v1575
    %v1608 = vunpack.c.l.bf16 %v1576
    %v1609 = vunpack.c.l.bf16 %v1577
    %v1610 = vunpack.c.l.bf16 %v1578
    %v1611 = vunpack.c.l.bf16 %v1579
    %v1612 = vunpack.c.l.bf16 %v1580
    %v1613 = vunpack.c.l.bf16 %v1581
    %v1614 = vunpack.c.l.bf16 %v1582
    %v1615 = vunpack.c.l.bf16 %v1583
    %v1616 = vunpack.c.l.bf16 %v1584
    %v1617 = vunpack.c.l.bf16 %v1585
    %v1618 = vunpack.c.l.bf16 %v1586
    %v1619 = vunpack.c.l.bf16 %v1587
    %v1620 = vunpack.c.l.bf16 %v1588
    %v1621 = vunpack.c.l.bf16 %v1589
    %v1622 = vunpack.c.l.bf16 %v1590
    %v1623 = vunpack.c.l.bf16 %v1591
    %v1624 = vunpack.c.l.bf16 %v1592
    %v1625 = vunpack.c.l.bf16 %v1593
    %v1626 = vunpack.c.l.bf16 %v1594
    %v1627 = vunpack.c.l.bf16 %v1595
    %v1628 = vunpack.c.l.bf16 %v1596
    %v1629 = vunpack.c.l.bf16 %v1597
    %v1630 = vunpack.c.l.bf16 %v1598
    %v1631 = vunpack.c.l.bf16 %v1599
    %v1632 = vunpack.c.l.bf16 %v1600
    %v1633 = vunpack.c.l.bf16 %v1601
    %v1634 = vunpack.c.l.bf16 %v1602
    %v1635 = vunpack.c.l.bf16 %v1603
    %v1636 = vunpack.c.l.bf16 %v1604
    %v1637 = vunpack.c.l.bf16 %v1605
    %v1638 = vsub.f32 %v1542, %v1606
    %v1639 = vsub.f32 %v1543, %v1607
    %v1640 = vsub.f32 %v1544, %v1608
    %v1641 = vsub.f32 %v1545, %v1609
    %v1642 = vsub.f32 %v1546, %v1610
    %v1643 = vsub.f32 %v1547, %v1611
    %v1644 = vsub.f32 %v1548, %v1612
    %v1645 = vsub.f32 %v1549, %v1613
    %v1646 = vsub.f32 %v1550, %v1614
    %v1647 = vsub.f32 %v1551, %v1615
    %v1648 = vsub.f32 %v1552, %v1616
    %v1649 = vsub.f32 %v1553, %v1617
    %v1650 = vsub.f32 %v1554, %v1618
    %v1651 = vsub.f32 %v1555, %v1619
    %v1652 = vsub.f32 %v1556, %v1620
    %v1653 = vsub.f32 %v1557, %v1621
    %v1654 = vsub.f32 %v1558, %v1622
    %v1655 = vsub.f32 %v1559, %v1623
    %v1656 = vsub.f32 %v1560, %v1624
    %v1657 = vsub.f32 %v1561, %v1625
    %v1658 = vsub.f32 %v1562, %v1626
    %v1659 = vsub.f32 %v1563, %v1627
    %v1660 = vsub.f32 %v1564, %v1628
    %v1661 = vsub.f32 %v1565, %v1629
    %v1662 = vsub.f32 %v1566, %v1630
    %v1663 = vsub.f32 %v1567, %v1631
    %v1664 = vsub.f32 %v1568, %v1632
    %v1665 = vsub.f32 %v1569, %v1633
    %v1666 = vsub.f32 %v1570, %v1634
    %v1667 = vsub.f32 %v1571, %v1635
    %v1668 = vsub.f32 %v1572, %v1636
    %v1669 = vsub.f32 %v1573, %v1637
    %v1670 = vpack.c.bf16 %v1639, %v1638
    %v1671 = vpack.c.bf16 %v1641, %v1640
    %v1672 = vpack.c.bf16 %v1643, %v1642
    %v1673 = vpack.c.bf16 %v1645, %v1644
    %v1674 = vpack.c.bf16 %v1647, %v1646
    %v1675 = vpack.c.bf16 %v1649, %v1648
    %v1676 = vpack.c.bf16 %v1651, %v1650
    %v1677 = vpack.c.bf16 %v1653, %v1652
    %v1678 = vpack.c.bf16 %v1655, %v1654
    %v1679 = vpack.c.bf16 %v1657, %v1656
    %v1680 = vpack.c.bf16 %v1659, %v1658
    %v1681 = vpack.c.bf16 %v1661, %v1660
    %v1682 = vpack.c.bf16 %v1663, %v1662
    %v1683 = vpack.c.bf16 %v1665, %v1664
    %v1684 = vpack.c.bf16 %v1667, %v1666
    %v1685 = vpack.c.bf16 %v1669, %v1668
    %1686 = vmatpush.bf16.msra.mxu0 %v1677
    %1687 = vmatpush.bf16.msra.mxu0 %v1676
    %1688 = vmatpush.bf16.msra.mxu0 %v1675
    %1689 = vmatpush.bf16.msra.mxu0 %v1674
    %1690 = vmatpush.bf16.msra.mxu0 %v1673
    %1691 = vmatpush.bf16.msra.mxu0 %v1672
    %1692 = vmatpush.bf16.msra.mxu0 %v1671
    %1693 = vmatpush.bf16.msra.mxu0 %v1670
    %1694 = vmatmul.bf16.gmra.mxu0 %v994
    %v1695 = vpop.f32.mrf.mxu0
    %v1696 = vadd.f32 0.0, %v1695
    %v1697 = vpop.f32.mrf.mxu0
    %v1698 = vadd.f32 0.0, %v1697
    %1699 = vmatmul.bf16.gmra.mxu0 %v996
    %v1700 = vpop.f32.mrf.mxu0
    %v1701 = vadd.f32 0.0, %v1700
    %v1702 = vpop.f32.mrf.mxu0
    %v1703 = vadd.f32 0.0, %v1702
    %1704 = vmatmul.bf16.gmra.mxu0 %v998
    %v1705 = vpop.f32.mrf.mxu0
    %v1706 = vadd.f32 0.0, %v1705
    %v1707 = vpop.f32.mrf.mxu0
    %v1708 = vadd.f32 0.0, %v1707
    %1709 = vmatmul.bf16.gmra.mxu0 %v1000
    %v1710 = vpop.f32.mrf.mxu0
    %v1711 = vadd.f32 0.0, %v1710
    %v1712 = vpop.f32.mrf.mxu0
    %v1713 = vadd.f32 0.0, %v1712
    %1714 = vmatmul.bf16.gmra.mxu0 %v1002
    %v1715 = vpop.f32.mrf.mxu0
    %v1716 = vadd.f32 0.0, %v1715
    %v1717 = vpop.f32.mrf.mxu0
    %v1718 = vadd.f32 0.0, %v1717
    %1719 = vmatmul.bf16.gmra.mxu0 %v1004
    %v1720 = vpop.f32.mrf.mxu0
    %v1721 = vadd.f32 0.0, %v1720
    %v1722 = vpop.f32.mrf.mxu0
    %v1723 = vadd.f32 0.0, %v1722
    %1724 = vmatmul.bf16.gmra.mxu0 %v1006
    %v1725 = vpop.f32.mrf.mxu0
    %v1726 = vadd.f32 0.0, %v1725
    %v1727 = vpop.f32.mrf.mxu0
    %v1728 = vadd.f32 0.0, %v1727
    %1729 = vmatmul.bf16.gmra.mxu0 %v1008
    %v1730 = vpop.f32.mrf.mxu0
    %v1731 = vadd.f32 0.0, %v1730
    %v1732 = vpop.f32.mrf.mxu0
    %v1733 = vadd.f32 0.0, %v1732
    %1734 = vmatmul.bf16.gmra.mxu0 %v1010
    %v1735 = vpop.f32.mrf.mxu0
    %v1736 = vadd.f32 0.0, %v1735
    %v1737 = vpop.f32.mrf.mxu0
    %v1738 = vadd.f32 0.0, %v1737
    %1739 = vmatmul.bf16.gmra.mxu0 %v1012
    %v1740 = vpop.f32.mrf.mxu0
    %v1741 = vadd.f32 0.0, %v1740
    %v1742 = vpop.f32.mrf.mxu0
    %v1743 = vadd.f32 0.0, %v1742
    %1744 = vmatmul.bf16.gmra.mxu0 %v1014
    %v1745 = vpop.f32.mrf.mxu0
    %v1746 = vadd.f32 0.0, %v1745
    %v1747 = vpop.f32.mrf.mxu0
    %v1748 = vadd.f32 0.0, %v1747
    %1749 = vmatmul.bf16.gmra.mxu0 %v1016
    %v1750 = vpop.f32.mrf.mxu0
    %v1751 = vadd.f32 0.0, %v1750
    %v1752 = vpop.f32.mrf.mxu0
    %v1753 = vadd.f32 0.0, %v1752
    %1754 = vmatmul.bf16.gmra.mxu0 %v1018
    %v1755 = vpop.f32.mrf.mxu0
    %v1756 = vadd.f32 0.0, %v1755
    %v1757 = vpop.f32.mrf.mxu0
    %v1758 = vadd.f32 0.0, %v1757
    %1759 = vmatmul.bf16.gmra.mxu0 %v1020
    %v1760 = vpop.f32.mrf.mxu0
    %v1761 = vadd.f32 0.0, %v1760
    %v1762 = vpop.f32.mrf.mxu0
    %v1763 = vadd.f32 0.0, %v1762
    %1764 = vmatmul.bf16.gmra.mxu0 %v1022
    %v1765 = vpop.f32.mrf.mxu0
    %v1766 = vadd.f32 0.0, %v1765
    %v1767 = vpop.f32.mrf.mxu0
    %v1768 = vadd.f32 0.0, %v1767
    %1769 = vmatmul.bf16.gmra.mxu0 %v1024
    %v1770 = vpop.f32.mrf.mxu0
    %v1771 = vadd.f32 0.0, %v1770
    %v1772 = vpop.f32.mrf.mxu0
    %v1773 = vadd.f32 0.0, %v1772
    %1774 = vdwg.mxu0
    %1775 = vmatpush.bf16.msra.mxu0 %v1685
    %1776 = vmatpush.bf16.msra.mxu0 %v1684
    %1777 = vmatpush.bf16.msra.mxu0 %v1683
    %1778 = vmatpush.bf16.msra.mxu0 %v1682
    %1779 = vmatpush.bf16.msra.mxu0 %v1681
    %1780 = vmatpush.bf16.msra.mxu0 %v1680
    %1781 = vmatpush.bf16.msra.mxu0 %v1679
    %1782 = vmatpush.bf16.msra.mxu0 %v1678
    %1783 = vmatmul.bf16.gmra.mxu0 %v995
    %v1784 = vpop.f32.mrf.mxu0
    %v1785 = vadd.f32 %v1696, %v1784
    %v1786 = vpop.f32.mrf.mxu0
    %v1787 = vadd.f32 %v1698, %v1786
    %1788 = vmatmul.bf16.gmra.mxu0 %v997
    %v1789 = vpop.f32.mrf.mxu0
    %v1790 = vadd.f32 %v1701, %v1789
    %v1791 = vpop.f32.mrf.mxu0
    %v1792 = vadd.f32 %v1703, %v1791
    %1793 = vmatmul.bf16.gmra.mxu0 %v999
    %v1794 = vpop.f32.mrf.mxu0
    %v1795 = vadd.f32 %v1706, %v1794
    %v1796 = vpop.f32.mrf.mxu0
    %v1797 = vadd.f32 %v1708, %v1796
    %1798 = vmatmul.bf16.gmra.mxu0 %v1001
    %v1799 = vpop.f32.mrf.mxu0
    %v1800 = vadd.f32 %v1711, %v1799
    %v1801 = vpop.f32.mrf.mxu0
    %v1802 = vadd.f32 %v1713, %v1801
    %1803 = vmatmul.bf16.gmra.mxu0 %v1003
    %v1804 = vpop.f32.mrf.mxu0
    %v1805 = vadd.f32 %v1716, %v1804
    %v1806 = vpop.f32.mrf.mxu0
    %v1807 = vadd.f32 %v1718, %v1806
    %1808 = vmatmul.bf16.gmra.mxu0 %v1005
    %v1809 = vpop.f32.mrf.mxu0
    %v1810 = vadd.f32 %v1721, %v1809
    %v1811 = vpop.f32.mrf.mxu0
    %v1812 = vadd.f32 %v1723, %v1811
    %1813 = vmatmul.bf16.gmra.mxu0 %v1007
    %v1814 = vpop.f32.mrf.mxu0
    %v1815 = vadd.f32 %v1726, %v1814
    %v1816 = vpop.f32.mrf.mxu0
    %v1817 = vadd.f32 %v1728, %v1816
    %1818 = vmatmul.bf16.gmra.mxu0 %v1009
    %v1819 = vpop.f32.mrf.mxu0
    %v1820 = vadd.f32 %v1731, %v1819
    %v1821 = vpop.f32.mrf.mxu0
    %v1822 = vadd.f32 %v1733, %v1821
    %1823 = vmatmul.bf16.gmra.mxu0 %v1011
    %v1824 = vpop.f32.mrf.mxu0
    %v1825 = vadd.f32 %v1736, %v1824
    %v1826 = vpop.f32.mrf.mxu0
    %v1827 = vadd.f32 %v1738, %v1826
    %1828 = vmatmul.bf16.gmra.mxu0 %v1013
    %v1829 = vpop.f32.mrf.mxu0
    %v1830 = vadd.f32 %v1741, %v1829
    %v1831 = vpop.f32.mrf.mxu0
    %v1832 = vadd.f32 %v1743, %v1831
    %1833 = vmatmul.bf16.gmra.mxu0 %v1015
    %v1834 = vpop.f32.mrf.mxu0
    %v1835 = vadd.f32 %v1746, %v1834
    %v1836 = vpop.f32.mrf.mxu0
    %v1837 = vadd.f32 %v1748, %v1836
    %1838 = vmatmul.bf16.gmra.mxu0 %v1017
    %v1839 = vpop.f32.mrf.mxu0
    %v1840 = vadd.f32 %v1751, %v1839
    %v1841 = vpop.f32.mrf.mxu0
    %v1842 = vadd.f32 %v1753, %v1841
    %1843 = vmatmul.bf16.gmra.mxu0 %v1019
    %v1844 = vpop.f32.mrf.mxu0
    %v1845 = vadd.f32 %v1756, %v1844
    %v1846 = vpop.f32.mrf.mxu0
    %v1847 = vadd.f32 %v1758, %v1846
    %1848 = vmatmul.bf16.gmra.mxu0 %v1021
    %v1849 = vpop.f32.mrf.mxu0
    %v1850 = vadd.f32 %v1761, %v1849
    %v1851 = vpop.f32.mrf.mxu0
    %v1852 = vadd.f32 %v1763, %v1851
    %1853 = vmatmul.bf16.gmra.mxu0 %v1023
    %v1854 = vpop.f32.mrf.mxu0
    %v1855 = vadd.f32 %v1766, %v1854
    %v1856 = vpop.f32.mrf.mxu0
    %v1857 = vadd.f32 %v1768, %v1856
    %1858 = vmatmul.bf16.gmra.mxu0 %v1025
    %v1859 = vpop.f32.mrf.mxu0
    %v1860 = vadd.f32 %v1771, %v1859
    %v1861 = vpop.f32.mrf.mxu0
    %v1862 = vadd.f32 %v1773, %v1861
    %1863 = vdwg.mxu0
    %v1896 = vunpack.c.l.b16 %v1574
    %v1897 = vunpack.c.l.b16 %v1575
    %v1898 = vunpack.c.l.b16 %v1576
    %v1899 = vunpack.c.l.b16 %v1577
    %v1900 = vunpack.c.l.b16 %v1578
    %v1901 = vunpack.c.l.b16 %v1579
    %v1902 = vunpack.c.l.b16 %v1580
    %v1903 = vunpack.c.l.b16 %v1581
    %v1904 = vunpack.c.l.b16 %v1582
    %v1905 = vunpack.c.l.b16 %v1583
    %v1906 = vunpack.c.l.b16 %v1584
    %v1907 = vunpack.c.l.b16 %v1585
    %v1908 = vunpack.c.l.b16 %v1586
    %v1909 = vunpack.c.l.b16 %v1587
    %v1910 = vunpack.c.l.b16 %v1588
    %v1911 = vunpack.c.l.b16 %v1589
    %v1912 = vunpack.c.l.b16 %v1590
    %v1913 = vunpack.c.l.b16 %v1591
    %v1914 = vunpack.c.l.b16 %v1592
    %v1915 = vunpack.c.l.b16 %v1593
    %v1916 = vunpack.c.l.b16 %v1594
    %v1917 = vunpack.c.l.b16 %v1595
    %v1918 = vunpack.c.l.b16 %v1596
    %v1919 = vunpack.c.l.b16 %v1597
    %v1920 = vunpack.c.l.b16 %v1598
    %v1921 = vunpack.c.l.b16 %v1599
    %v1922 = vunpack.c.l.b16 %v1600
    %v1923 = vunpack.c.l.b16 %v1601
    %v1924 = vunpack.c.l.b16 %v1602
    %v1925 = vunpack.c.l.b16 %v1603
    %v1926 = vunpack.c.l.b16 %v1604
    %v1927 = vunpack.c.l.b16 %v1605
    %v1928 = vpack.c.b16 %v1897, %v1896
    %v1929 = vpack.c.b16 %v1899, %v1898
    %v1930 = vpack.c.b16 %v1901, %v1900
    %v1931 = vpack.c.b16 %v1903, %v1902
    %v1932 = vpack.c.b16 %v1905, %v1904
    %v1933 = vpack.c.b16 %v1907, %v1906
    %v1934 = vpack.c.b16 %v1909, %v1908
    %v1935 = vpack.c.b16 %v1911, %v1910
    %v1936 = vpack.c.b16 %v1913, %v1912
    %v1937 = vpack.c.b16 %v1915, %v1914
    %v1938 = vpack.c.b16 %v1917, %v1916
    %v1939 = vpack.c.b16 %v1919, %v1918
    %v1940 = vpack.c.b16 %v1921, %v1920
    %v1941 = vpack.c.b16 %v1923, %v1922
    %v1942 = vpack.c.b16 %v1925, %v1924
    %v1943 = vpack.c.b16 %v1927, %v1926
    %1960 = vmatpush.bf16.msra.mxu0 %v1935
    %1961 = vmatpush.bf16.msra.mxu0 %v1934
    %1962 = vmatpush.bf16.msra.mxu0 %v1933
    %1963 = vmatpush.bf16.msra.mxu0 %v1932
    %1964 = vmatpush.bf16.msra.mxu0 %v1931
    %1965 = vmatpush.bf16.msra.mxu0 %v1930
    %1966 = vmatpush.bf16.msra.mxu0 %v1929
    %1967 = vmatpush.bf16.msra.mxu0 %v1928
    %1968 = vmatmul.bf16.gmra.mxu0 %v994
    %v1969 = vpop.f32.mrf.mxu0
    %v1970 = vadd.f32 %v1785, %v1969
    %v1971 = vpop.f32.mrf.mxu0
    %v1972 = vadd.f32 %v1787, %v1971
    %1973 = vmatmul.bf16.gmra.mxu0 %v996
    %v1974 = vpop.f32.mrf.mxu0
    %v1975 = vadd.f32 %v1790, %v1974
    %v1976 = vpop.f32.mrf.mxu0
    %v1977 = vadd.f32 %v1792, %v1976
    %1978 = vmatmul.bf16.gmra.mxu0 %v998
    %v1979 = vpop.f32.mrf.mxu0
    %v1980 = vadd.f32 %v1795, %v1979
    %v1981 = vpop.f32.mrf.mxu0
    %v1982 = vadd.f32 %v1797, %v1981
    %1983 = vmatmul.bf16.gmra.mxu0 %v1000
    %v1984 = vpop.f32.mrf.mxu0
    %v1985 = vadd.f32 %v1800, %v1984
    %v1986 = vpop.f32.mrf.mxu0
    %v1987 = vadd.f32 %v1802, %v1986
    %1988 = vmatmul.bf16.gmra.mxu0 %v1002
    %v1989 = vpop.f32.mrf.mxu0
    %v1990 = vadd.f32 %v1805, %v1989
    %v1991 = vpop.f32.mrf.mxu0
    %v1992 = vadd.f32 %v1807, %v1991
    %1993 = vmatmul.bf16.gmra.mxu0 %v1004
    %v1994 = vpop.f32.mrf.mxu0
    %v1995 = vadd.f32 %v1810, %v1994
    %v1996 = vpop.f32.mrf.mxu0
    %v1997 = vadd.f32 %v1812, %v1996
    %1998 = vmatmul.bf16.gmra.mxu0 %v1006
    %v1999 = vpop.f32.mrf.mxu0
    %v2000 = vadd.f32 %v1815, %v1999
    %v2001 = vpop.f32.mrf.mxu0
    %v2002 = vadd.f32 %v1817, %v2001
    %2003 = vmatmul.bf16.gmra.mxu0 %v1008
    %v2004 = vpop.f32.mrf.mxu0
    %v2005 = vadd.f32 %v1820, %v2004
    %v2006 = vpop.f32.mrf.mxu0
    %v2007 = vadd.f32 %v1822, %v2006
    %2008 = vmatmul.bf16.gmra.mxu0 %v1010
    %v2009 = vpop.f32.mrf.mxu0
    %v2010 = vadd.f32 %v1825, %v2009
    %v2011 = vpop.f32.mrf.mxu0
    %v2012 = vadd.f32 %v1827, %v2011
    %2013 = vmatmul.bf16.gmra.mxu0 %v1012
    %v2014 = vpop.f32.mrf.mxu0
    %v2015 = vadd.f32 %v1830, %v2014
    %v2016 = vpop.f32.mrf.mxu0
    %v2017 = vadd.f32 %v1832, %v2016
    %2018 = vmatmul.bf16.gmra.mxu0 %v1014
    %v2019 = vpop.f32.mrf.mxu0
    %v2020 = vadd.f32 %v1835, %v2019
    %v2021 = vpop.f32.mrf.mxu0
    %v2022 = vadd.f32 %v1837, %v2021
    %2023 = vmatmul.bf16.gmra.mxu0 %v1016
    %v2024 = vpop.f32.mrf.mxu0
    %v2025 = vadd.f32 %v1840, %v2024
    %v2026 = vpop.f32.mrf.mxu0
    %v2027 = vadd.f32 %v1842, %v2026
    %2028 = vmatmul.bf16.gmra.mxu0 %v1018
    %v2029 = vpop.f32.mrf.mxu0
    %v2030 = vadd.f32 %v1845, %v2029
    %v2031 = vpop.f32.mrf.mxu0
    %v2032 = vadd.f32 %v1847, %v2031
    %2033 = vmatmul.bf16.gmra.mxu0 %v1020
    %v2034 = vpop.f32.mrf.mxu0
    %v2035 = vadd.f32 %v1850, %v2034
    %v2036 = vpop.f32.mrf.mxu0
    %v2037 = vadd.f32 %v1852, %v2036
    %2038 = vmatmul.bf16.gmra.mxu0 %v1022
    %v2039 = vpop.f32.mrf.mxu0
    %v2040 = vadd.f32 %v1855, %v2039
    %v2041 = vpop.f32.mrf.mxu0
    %v2042 = vadd.f32 %v1857, %v2041
    %2043 = vmatmul.bf16.gmra.mxu0 %v1024
    %v2044 = vpop.f32.mrf.mxu0
    %v2045 = vadd.f32 %v1860, %v2044
    %v2046 = vpop.f32.mrf.mxu0
    %v2047 = vadd.f32 %v1862, %v2046
    %2048 = vdwg.mxu0
    %2049 = vmatpush.bf16.msra.mxu0 %v1943
    %2050 = vmatpush.bf16.msra.mxu0 %v1942
    %2051 = vmatpush.bf16.msra.mxu0 %v1941
    %2052 = vmatpush.bf16.msra.mxu0 %v1940
    %2053 = vmatpush.bf16.msra.mxu0 %v1939
    %2054 = vmatpush.bf16.msra.mxu0 %v1938
    %2055 = vmatpush.bf16.msra.mxu0 %v1937
    %2056 = vmatpush.bf16.msra.mxu0 %v1936
    %2057 = vmatmul.bf16.gmra.mxu0 %v995
    %v2058 = vpop.f32.mrf.mxu0
    %v2059 = vadd.f32 %v1970, %v2058
    %v2060 = vpop.f32.mrf.mxu0
    %v2061 = vadd.f32 %v1972, %v2060
    %2062 = vmatmul.bf16.gmra.mxu0 %v997
    %v2063 = vpop.f32.mrf.mxu0
    %v2064 = vadd.f32 %v1975, %v2063
    %v2065 = vpop.f32.mrf.mxu0
    %v2066 = vadd.f32 %v1977, %v2065
    %2067 = vmatmul.bf16.gmra.mxu0 %v999
    %v2068 = vpop.f32.mrf.mxu0
    %v2069 = vadd.f32 %v1980, %v2068
    %v2070 = vpop.f32.mrf.mxu0
    %v2071 = vadd.f32 %v1982, %v2070
    %2072 = vmatmul.bf16.gmra.mxu0 %v1001
    %v2073 = vpop.f32.mrf.mxu0
    %v2074 = vadd.f32 %v1985, %v2073
    %v2075 = vpop.f32.mrf.mxu0
    %v2076 = vadd.f32 %v1987, %v2075
    %2077 = vmatmul.bf16.gmra.mxu0 %v1003
    %v2078 = vpop.f32.mrf.mxu0
    %v2079 = vadd.f32 %v1990, %v2078
    %v2080 = vpop.f32.mrf.mxu0
    %v2081 = vadd.f32 %v1992, %v2080
    %2082 = vmatmul.bf16.gmra.mxu0 %v1005
    %v2083 = vpop.f32.mrf.mxu0
    %v2084 = vadd.f32 %v1995, %v2083
    %v2085 = vpop.f32.mrf.mxu0
    %v2086 = vadd.f32 %v1997, %v2085
    %2087 = vmatmul.bf16.gmra.mxu0 %v1007
    %v2088 = vpop.f32.mrf.mxu0
    %v2089 = vadd.f32 %v2000, %v2088
    %v2090 = vpop.f32.mrf.mxu0
    %v2091 = vadd.f32 %v2002, %v2090
    %2092 = vmatmul.bf16.gmra.mxu0 %v1009
    %v2093 = vpop.f32.mrf.mxu0
    %v2094 = vadd.f32 %v2005, %v2093
    %v2095 = vpop.f32.mrf.mxu0
    %v2096 = vadd.f32 %v2007, %v2095
    %2097 = vmatmul.bf16.gmra.mxu0 %v1011
    %v2098 = vpop.f32.mrf.mxu0
    %v2099 = vadd.f32 %v2010, %v2098
    %v2100 = vpop.f32.mrf.mxu0
    %v2101 = vadd.f32 %v2012, %v2100
    %2102 = vmatmul.bf16.gmra.mxu0 %v1013
    %v2103 = vpop.f32.mrf.mxu0
    %v2104 = vadd.f32 %v2015, %v2103
    %v2105 = vpop.f32.mrf.mxu0
    %v2106 = vadd.f32 %v2017, %v2105
    %2107 = vmatmul.bf16.gmra.mxu0 %v1015
    %v2108 = vpop.f32.mrf.mxu0
    %v2109 = vadd.f32 %v2020, %v2108
    %v2110 = vpop.f32.mrf.mxu0
    %v2111 = vadd.f32 %v2022, %v2110
    %2112 = vmatmul.bf16.gmra.mxu0 %v1017
    %v2113 = vpop.f32.mrf.mxu0
    %v2114 = vadd.f32 %v2025, %v2113
    %v2115 = vpop.f32.mrf.mxu0
    %v2116 = vadd.f32 %v2027, %v2115
    %2117 = vmatmul.bf16.gmra.mxu0 %v1019
    %v2118 = vpop.f32.mrf.mxu0
    %v2119 = vadd.f32 %v2030, %v2118
    %v2120 = vpop.f32.mrf.mxu0
    %v2121 = vadd.f32 %v2032, %v2120
    %2122 = vmatmul.bf16.gmra.mxu0 %v1021
    %v2123 = vpop.f32.mrf.mxu0
    %v2124 = vadd.f32 %v2035, %v2123
    %v2125 = vpop.f32.mrf.mxu0
    %v2126 = vadd.f32 %v2037, %v2125
    %2127 = vmatmul.bf16.gmra.mxu0 %v1023
    %v2128 = vpop.f32.mrf.mxu0
    %v2129 = vadd.f32 %v2040, %v2128
    %v2130 = vpop.f32.mrf.mxu0
    %v2131 = vadd.f32 %v2042, %v2130
    %2132 = vmatmul.bf16.gmra.mxu0 %v1025
    %v2133 = vpop.f32.mrf.mxu0
    %v2134 = vadd.f32 %v2045, %v2133
    %v2135 = vpop.f32.mrf.mxu0
    %v2136 = vadd.f32 %v2047, %v2135
    %2137 = vdwg.mxu0
    %v2138 = vmul.f32 %v213, %v2059
    %v2139 = vmul.f32 %v218, %v2061
    %v2140 = vmul.f32 %v223, %v2064
    %v2141 = vmul.f32 %v228, %v2066
    %v2142 = vmul.f32 %v233, %v2069
    %v2143 = vmul.f32 %v238, %v2071
    %v2144 = vmul.f32 %v243, %v2074
    %v2145 = vmul.f32 %v248, %v2076
    %v2146 = vmul.f32 %v253, %v2079
    %v2147 = vmul.f32 %v258, %v2081
    %v2148 = vmul.f32 %v263, %v2084
    %v2149 = vmul.f32 %v268, %v2086
    %v2150 = vmul.f32 %v273, %v2089
    %v2151 = vmul.f32 %v278, %v2091
    %v2152 = vmul.f32 %v283, %v2094
    %v2153 = vmul.f32 %v288, %v2096
    %v2154 = vmul.f32 %v293, %v2099
    %v2155 = vmul.f32 %v298, %v2101
    %v2156 = vmul.f32 %v303, %v2104
    %v2157 = vmul.f32 %v308, %v2106
    %v2158 = vmul.f32 %v313, %v2109
    %v2159 = vmul.f32 %v318, %v2111
    %v2160 = vmul.f32 %v323, %v2114
    %v2161 = vmul.f32 %v328, %v2116
    %v2162 = vmul.f32 %v333, %v2119
    %v2163 = vmul.f32 %v338, %v2121
    %v2164 = vmul.f32 %v343, %v2124
    %v2165 = vmul.f32 %v348, %v2126
    %v2166 = vmul.f32 %v353, %v2129
    %v2167 = vmul.f32 %v358, %v2131
    %v2168 = vmul.f32 %v363, %v2134
    %v2169 = vmul.f32 %v368, %v2136
    %v2170 = vadd.f32 %v2138, %v562
    %v2171 = vadd.f32 %v2139, %v563
    %v2172 = vadd.f32 %v2140, %v564
    %v2173 = vadd.f32 %v2141, %v565
    %v2174 = vadd.f32 %v2142, %v566
    %v2175 = vadd.f32 %v2143, %v567
    %v2176 = vadd.f32 %v2144, %v568
    %v2177 = vadd.f32 %v2145, %v569
    %v2178 = vadd.f32 %v2146, %v570
    %v2179 = vadd.f32 %v2147, %v571
    %v2180 = vadd.f32 %v2148, %v572
    %v2181 = vadd.f32 %v2149, %v573
    %v2182 = vadd.f32 %v2150, %v574
    %v2183 = vadd.f32 %v2151, %v575
    %v2184 = vadd.f32 %v2152, %v576
    %v2185 = vadd.f32 %v2153, %v577
    %v2186 = vadd.f32 %v2154, %v578
    %v2187 = vadd.f32 %v2155, %v579
    %v2188 = vadd.f32 %v2156, %v580
    %v2189 = vadd.f32 %v2157, %v581
    %v2190 = vadd.f32 %v2158, %v582
    %v2191 = vadd.f32 %v2159, %v583
    %v2192 = vadd.f32 %v2160, %v584
    %v2193 = vadd.f32 %v2161, %v585
    %v2194 = vadd.f32 %v2162, %v586
    %v2195 = vadd.f32 %v2163, %v587
    %v2196 = vadd.f32 %v2164, %v588
    %v2197 = vadd.f32 %v2165, %v589
    %v2198 = vadd.f32 %v2166, %v590
    %v2199 = vadd.f32 %v2167, %v591
    %v2200 = vadd.f32 %v2168, %v592
    %v2201 = vadd.f32 %v2169, %v593
    %v2202 = vpack.c.bf16 %v2170, %v2170
    %v2203 = vpack.c.bf16 %v2171, %v2171
    %v2204 = vpack.c.bf16 %v2172, %v2172
    %v2205 = vpack.c.bf16 %v2173, %v2173
    %v2206 = vpack.c.bf16 %v2174, %v2174
    %v2207 = vpack.c.bf16 %v2175, %v2175
    %v2208 = vpack.c.bf16 %v2176, %v2176
    %v2209 = vpack.c.bf16 %v2177, %v2177
    %v2210 = vpack.c.bf16 %v2178, %v2178
    %v2211 = vpack.c.bf16 %v2179, %v2179
    %v2212 = vpack.c.bf16 %v2180, %v2180
    %v2213 = vpack.c.bf16 %v2181, %v2181
    %v2214 = vpack.c.bf16 %v2182, %v2182
    %v2215 = vpack.c.bf16 %v2183, %v2183
    %v2216 = vpack.c.bf16 %v2184, %v2184
    %v2217 = vpack.c.bf16 %v2185, %v2185
    %v2218 = vpack.c.bf16 %v2186, %v2186
    %v2219 = vpack.c.bf16 %v2187, %v2187
    %v2220 = vpack.c.bf16 %v2188, %v2188
    %v2221 = vpack.c.bf16 %v2189, %v2189
    %v2222 = vpack.c.bf16 %v2190, %v2190
    %v2223 = vpack.c.bf16 %v2191, %v2191
    %v2224 = vpack.c.bf16 %v2192, %v2192
    %v2225 = vpack.c.bf16 %v2193, %v2193
    %v2226 = vpack.c.bf16 %v2194, %v2194
    %v2227 = vpack.c.bf16 %v2195, %v2195
    %v2228 = vpack.c.bf16 %v2196, %v2196
    %v2229 = vpack.c.bf16 %v2197, %v2197
    %v2230 = vpack.c.bf16 %v2198, %v2198
    %v2231 = vpack.c.bf16 %v2199, %v2199
    %v2232 = vpack.c.bf16 %v2200, %v2200
    %v2233 = vpack.c.bf16 %v2201, %v2201
    %v2234 = vunpack.c.l.bf16 %v2202
    %v2235 = vunpack.c.l.bf16 %v2203
    %v2236 = vunpack.c.l.bf16 %v2204
    %v2237 = vunpack.c.l.bf16 %v2205
    %v2238 = vunpack.c.l.bf16 %v2206
    %v2239 = vunpack.c.l.bf16 %v2207
    %v2240 = vunpack.c.l.bf16 %v2208
    %v2241 = vunpack.c.l.bf16 %v2209
    %v2242 = vunpack.c.l.bf16 %v2210
    %v2243 = vunpack.c.l.bf16 %v2211
    %v2244 = vunpack.c.l.bf16 %v2212
    %v2245 = vunpack.c.l.bf16 %v2213
    %v2246 = vunpack.c.l.bf16 %v2214
    %v2247 = vunpack.c.l.bf16 %v2215
    %v2248 = vunpack.c.l.bf16 %v2216
    %v2249 = vunpack.c.l.bf16 %v2217
    %v2250 = vunpack.c.l.bf16 %v2218
    %v2251 = vunpack.c.l.bf16 %v2219
    %v2252 = vunpack.c.l.bf16 %v2220
    %v2253 = vunpack.c.l.bf16 %v2221
    %v2254 = vunpack.c.l.bf16 %v2222
    %v2255 = vunpack.c.l.bf16 %v2223
    %v2256 = vunpack.c.l.bf16 %v2224
    %v2257 = vunpack.c.l.bf16 %v2225
    %v2258 = vunpack.c.l.bf16 %v2226
    %v2259 = vunpack.c.l.bf16 %v2227
    %v2260 = vunpack.c.l.bf16 %v2228
    %v2261 = vunpack.c.l.bf16 %v2229
    %v2262 = vunpack.c.l.bf16 %v2230
    %v2263 = vunpack.c.l.bf16 %v2231
    %v2264 = vunpack.c.l.bf16 %v2232
    %v2265 = vunpack.c.l.bf16 %v2233
    %v2266 = vsub.f32 %v2170, %v2234
    %v2267 = vsub.f32 %v2171, %v2235
    %v2268 = vsub.f32 %v2172, %v2236
    %v2269 = vsub.f32 %v2173, %v2237
    %v2270 = vsub.f32 %v2174, %v2238
    %v2271 = vsub.f32 %v2175, %v2239
    %v2272 = vsub.f32 %v2176, %v2240
    %v2273 = vsub.f32 %v2177, %v2241
    %v2274 = vsub.f32 %v2178, %v2242
    %v2275 = vsub.f32 %v2179, %v2243
    %v2276 = vsub.f32 %v2180, %v2244
    %v2277 = vsub.f32 %v2181, %v2245
    %v2278 = vsub.f32 %v2182, %v2246
    %v2279 = vsub.f32 %v2183, %v2247
    %v2280 = vsub.f32 %v2184, %v2248
    %v2281 = vsub.f32 %v2185, %v2249
    %v2282 = vsub.f32 %v2186, %v2250
    %v2283 = vsub.f32 %v2187, %v2251
    %v2284 = vsub.f32 %v2188, %v2252
    %v2285 = vsub.f32 %v2189, %v2253
    %v2286 = vsub.f32 %v2190, %v2254
    %v2287 = vsub.f32 %v2191, %v2255
    %v2288 = vsub.f32 %v2192, %v2256
    %v2289 = vsub.f32 %v2193, %v2257
    %v2290 = vsub.f32 %v2194, %v2258
    %v2291 = vsub.f32 %v2195, %v2259
    %v2292 = vsub.f32 %v2196, %v2260
    %v2293 = vsub.f32 %v2197, %v2261
    %v2294 = vsub.f32 %v2198, %v2262
    %v2295 = vsub.f32 %v2199, %v2263
    %v2296 = vsub.f32 %v2200, %v2264
    %v2297 = vsub.f32 %v2201, %v2265
    %v2298 = vpack.c.bf16 %v2267, %v2266
    %v2299 = vpack.c.bf16 %v2269, %v2268
    %v2300 = vpack.c.bf16 %v2271, %v2270
    %v2301 = vpack.c.bf16 %v2273, %v2272
    %v2302 = vpack.c.bf16 %v2275, %v2274
    %v2303 = vpack.c.bf16 %v2277, %v2276
    %v2304 = vpack.c.bf16 %v2279, %v2278
    %v2305 = vpack.c.bf16 %v2281, %v2280
    %v2306 = vpack.c.bf16 %v2283, %v2282
    %v2307 = vpack.c.bf16 %v2285, %v2284
    %v2308 = vpack.c.bf16 %v2287, %v2286
    %v2309 = vpack.c.bf16 %v2289, %v2288
    %v2310 = vpack.c.bf16 %v2291, %v2290
    %v2311 = vpack.c.bf16 %v2293, %v2292
    %v2312 = vpack.c.bf16 %v2295, %v2294
    %v2313 = vpack.c.bf16 %v2297, %v2296
    %2314 = vmatpush.bf16.msra.mxu0 %v2305
    %2315 = vmatpush.bf16.msra.mxu0 %v2304
    %2316 = vmatpush.bf16.msra.mxu0 %v2303
    %2317 = vmatpush.bf16.msra.mxu0 %v2302
    %2318 = vmatpush.bf16.msra.mxu0 %v2301
    %2319 = vmatpush.bf16.msra.mxu0 %v2300
    %2320 = vmatpush.bf16.msra.mxu0 %v2299
    %2321 = vmatpush.bf16.msra.mxu0 %v2298
    %2322 = vmatmul.bf16.gmra.mxu0 %v994
    %v2323 = vpop.f32.mrf.mxu0
    %v2324 = vadd.f32 0.0, %v2323
    %v2325 = vpop.f32.mrf.mxu0
    %v2326 = vadd.f32 0.0, %v2325
    %2327 = vmatmul.bf16.gmra.mxu0 %v996
    %v2328 = vpop.f32.mrf.mxu0
    %v2329 = vadd.f32 0.0, %v2328
    %v2330 = vpop.f32.mrf.mxu0
    %v2331 = vadd.f32 0.0, %v2330
    %2332 = vmatmul.bf16.gmra.mxu0 %v998
    %v2333 = vpop.f32.mrf.mxu0
    %v2334 = vadd.f32 0.0, %v2333
    %v2335 = vpop.f32.mrf.mxu0
    %v2336 = vadd.f32 0.0, %v2335
    %2337 = vmatmul.bf16.gmra.mxu0 %v1000
    %v2338 = vpop.f32.mrf.mxu0
    %v2339 = vadd.f32 0.0, %v2338
    %v2340 = vpop.f32.mrf.mxu0
    %v2341 = vadd.f32 0.0, %v2340
    %2342 = vmatmul.bf16.gmra.mxu0 %v1002
    %v2343 = vpop.f32.mrf.mxu0
    %v2344 = vadd.f32 0.0, %v2343
    %v2345 = vpop.f32.mrf.mxu0
    %v2346 = vadd.f32 0.0, %v2345
    %2347 = vmatmul.bf16.gmra.mxu0 %v1004
    %v2348 = vpop.f32.mrf.mxu0
    %v2349 = vadd.f32 0.0, %v2348
    %v2350 = vpop.f32.mrf.mxu0
    %v2351 = vadd.f32 0.0, %v2350
    %2352 = vmatmul.bf16.gmra.mxu0 %v1006
    %v2353 = vpop.f32.mrf.mxu0
    %v2354 = vadd.f32 0.0, %v2353
    %v2355 = vpop.f32.mrf.mxu0
    %v2356 = vadd.f32 0.0, %v2355
    %2357 = vmatmul.bf16.gmra.mxu0 %v1008
    %v2358 = vpop.f32.mrf.mxu0
    %v2359 = vadd.f32 0.0, %v2358
    %v2360 = vpop.f32.mrf.mxu0
    %v2361 = vadd.f32 0.0, %v2360
    %2362 = vmatmul.bf16.gmra.mxu0 %v1010
    %v2363 = vpop.f32.mrf.mxu0
    %v2364 = vadd.f32 0.0, %v2363
    %v2365 = vpop.f32.mrf.mxu0
    %v2366 = vadd.f32 0.0, %v2365
    %2367 = vmatmul.bf16.gmra.mxu0 %v1012
    %v2368 = vpop.f32.mrf.mxu0
    %v2369 = vadd.f32 0.0, %v2368
    %v2370 = vpop.f32.mrf.mxu0
    %v2371 = vadd.f32 0.0, %v2370
    %2372 = vmatmul.bf16.gmra.mxu0 %v1014
    %v2373 = vpop.f32.mrf.mxu0
    %v2374 = vadd.f32 0.0, %v2373
    %v2375 = vpop.f32.mrf.mxu0
    %v2376 = vadd.f32 0.0, %v2375
    %2377 = vmatmul.bf16.gmra.mxu0 %v1016
    %v2378 = vpop.f32.mrf.mxu0
    %v2379 = vadd.f32 0.0, %v2378
    %v2380 = vpop.f32.mrf.mxu0
    %v2381 = vadd.f32 0.0, %v2380
    %2382 = vmatmul.bf16.gmra.mxu0 %v1018
    %v2383 = vpop.f32.mrf.mxu0
    %v2384 = vadd.f32 0.0, %v2383
    %v2385 = vpop.f32.mrf.mxu0
    %v2386 = vadd.f32 0.0, %v2385
    %2387 = vmatmul.bf16.gmra.mxu0 %v1020
    %v2388 = vpop.f32.mrf.mxu0
    %v2389 = vadd.f32 0.0, %v2388
    %v2390 = vpop.f32.mrf.mxu0
    %v2391 = vadd.f32 0.0, %v2390
    %2392 = vmatmul.bf16.gmra.mxu0 %v1022
    %v2393 = vpop.f32.mrf.mxu0
    %v2394 = vadd.f32 0.0, %v2393
    %v2395 = vpop.f32.mrf.mxu0
    %v2396 = vadd.f32 0.0, %v2395
    %2397 = vmatmul.bf16.gmra.mxu0 %v1024
    %v2398 = vpop.f32.mrf.mxu0
    %v2399 = vadd.f32 0.0, %v2398
    %v2400 = vpop.f32.mrf.mxu0
    %v2401 = vadd.f32 0.0, %v2400
    %2402 = vdwg.mxu0
    %2403 = vmatpush.bf16.msra.mxu0 %v2313
    %2404 = vmatpush.bf16.msra.mxu0 %v2312
    %2405 = vmatpush.bf16.msra.mxu0 %v2311
    %2406 = vmatpush.bf16.msra.mxu0 %v2310
    %2407 = vmatpush.bf16.msra.mxu0 %v2309
    %2408 = vmatpush.bf16.msra.mxu0 %v2308
    %2409 = vmatpush.bf16.msra.mxu0 %v2307
    %2410 = vmatpush.bf16.msra.mxu0 %v2306
    %2411 = vmatmul.bf16.gmra.mxu0 %v995
    %v2412 = vpop.f32.mrf.mxu0
    %v2413 = vadd.f32 %v2324, %v2412
    %v2414 = vpop.f32.mrf.mxu0
    %v2415 = vadd.f32 %v2326, %v2414
    %2416 = vmatmul.bf16.gmra.mxu0 %v997
    %v2417 = vpop.f32.mrf.mxu0
    %v2418 = vadd.f32 %v2329, %v2417
    %v2419 = vpop.f32.mrf.mxu0
    %v2420 = vadd.f32 %v2331, %v2419
    %2421 = vmatmul.bf16.gmra.mxu0 %v999
    %v2422 = vpop.f32.mrf.mxu0
    %v2423 = vadd.f32 %v2334, %v2422
    %v2424 = vpop.f32.mrf.mxu0
    %v2425 = vadd.f32 %v2336, %v2424
    %2426 = vmatmul.bf16.gmra.mxu0 %v1001
    %v2427 = vpop.f32.mrf.mxu0
    %v2428 = vadd.f32 %v2339, %v2427
    %v2429 = vpop.f32.mrf.mxu0
    %v2430 = vadd.f32 %v2341, %v2429
    %2431 = vmatmul.bf16.gmra.mxu0 %v1003
    %v2432 = vpop.f32.mrf.mxu0
    %v2433 = vadd.f32 %v2344, %v2432
    %v2434 = vpop.f32.mrf.mxu0
    %v2435 = vadd.f32 %v2346, %v2434
    %2436 = vmatmul.bf16.gmra.mxu0 %v1005
    %v2437 = vpop.f32.mrf.mxu0
    %v2438 = vadd.f32 %v2349, %v2437
    %v2439 = vpop.f32.mrf.mxu0
    %v2440 = vadd.f32 %v2351, %v2439
    %2441 = vmatmul.bf16.gmra.mxu0 %v1007
    %v2442 = vpop.f32.mrf.mxu0
    %v2443 = vadd.f32 %v2354, %v2442
    %v2444 = vpop.f32.mrf.mxu0
    %v2445 = vadd.f32 %v2356, %v2444
    %2446 = vmatmul.bf16.gmra.mxu0 %v1009
    %v2447 = vpop.f32.mrf.mxu0
    %v2448 = vadd.f32 %v2359, %v2447
    %v2449 = vpop.f32.mrf.mxu0
    %v2450 = vadd.f32 %v2361, %v2449
    %2451 = vmatmul.bf16.gmra.mxu0 %v1011
    %v2452 = vpop.f32.mrf.mxu0
    %v2453 = vadd.f32 %v2364, %v2452
    %v2454 = vpop.f32.mrf.mxu0
    %v2455 = vadd.f32 %v2366, %v2454
    %2456 = vmatmul.bf16.gmra.mxu0 %v1013
    %v2457 = vpop.f32.mrf.mxu0
    %v2458 = vadd.f32 %v2369, %v2457
    %v2459 = vpop.f32.mrf.mxu0
    %v2460 = vadd.f32 %v2371, %v2459
    %2461 = vmatmul.bf16.gmra.mxu0 %v1015
    %v2462 = vpop.f32.mrf.mxu0
    %v2463 = vadd.f32 %v2374, %v2462
    %v2464 = vpop.f32.mrf.mxu0
    %v2465 = vadd.f32 %v2376, %v2464
    %2466 = vmatmul.bf16.gmra.mxu0 %v1017
    %v2467 = vpop.f32.mrf.mxu0
    %v2468 = vadd.f32 %v2379, %v2467
    %v2469 = vpop.f32.mrf.mxu0
    %v2470 = vadd.f32 %v2381, %v2469
    %2471 = vmatmul.bf16.gmra.mxu0 %v1019
    %v2472 = vpop.f32.mrf.mxu0
    %v2473 = vadd.f32 %v2384, %v2472
    %v2474 = vpop.f32.mrf.mxu0
    %v2475 = vadd.f32 %v2386, %v2474
    %2476 = vmatmul.bf16.gmra.mxu0 %v1021
    %v2477 = vpop.f32.mrf.mxu0
    %v2478 = vadd.f32 %v2389, %v2477
    %v2479 = vpop.f32.mrf.mxu0
    %v2480 = vadd.f32 %v2391, %v2479
    %2481 = vmatmul.bf16.gmra.mxu0 %v1023
    %v2482 = vpop.f32.mrf.mxu0
    %v2483 = vadd.f32 %v2394, %v2482
    %v2484 = vpop.f32.mrf.mxu0
    %v2485 = vadd.f32 %v2396, %v2484
    %2486 = vmatmul.bf16.gmra.mxu0 %v1025
    %v2487 = vpop.f32.mrf.mxu0
    %v2488 = vadd.f32 %v2399, %v2487
    %v2489 = vpop.f32.mrf.mxu0
    %v2490 = vadd.f32 %v2401, %v2489
    %2491 = vdwg.mxu0
    %v2524 = vunpack.c.l.b16 %v2202
    %v2525 = vunpack.c.l.b16 %v2203
    %v2526 = vunpack.c.l.b16 %v2204
    %v2527 = vunpack.c.l.b16 %v2205
    %v2528 = vunpack.c.l.b16 %v2206
    %v2529 = vunpack.c.l.b16 %v2207
    %v2530 = vunpack.c.l.b16 %v2208
    %v2531 = vunpack.c.l.b16 %v2209
    %v2532 = vunpack.c.l.b16 %v2210
    %v2533 = vunpack.c.l.b16 %v2211
    %v2534 = vunpack.c.l.b16 %v2212
    %v2535 = vunpack.c.l.b16 %v2213
    %v2536 = vunpack.c.l.b16 %v2214
    %v2537 = vunpack.c.l.b16 %v2215
    %v2538 = vunpack.c.l.b16 %v2216
    %v2539 = vunpack.c.l.b16 %v2217
    %v2540 = vunpack.c.l.b16 %v2218
    %v2541 = vunpack.c.l.b16 %v2219
    %v2542 = vunpack.c.l.b16 %v2220
    %v2543 = vunpack.c.l.b16 %v2221
    %v2544 = vunpack.c.l.b16 %v2222
    %v2545 = vunpack.c.l.b16 %v2223
    %v2546 = vunpack.c.l.b16 %v2224
    %v2547 = vunpack.c.l.b16 %v2225
    %v2548 = vunpack.c.l.b16 %v2226
    %v2549 = vunpack.c.l.b16 %v2227
    %v2550 = vunpack.c.l.b16 %v2228
    %v2551 = vunpack.c.l.b16 %v2229
    %v2552 = vunpack.c.l.b16 %v2230
    %v2553 = vunpack.c.l.b16 %v2231
    %v2554 = vunpack.c.l.b16 %v2232
    %v2555 = vunpack.c.l.b16 %v2233
    %v2556 = vpack.c.b16 %v2525, %v2524
    %v2557 = vpack.c.b16 %v2527, %v2526
    %v2558 = vpack.c.b16 %v2529, %v2528
    %v2559 = vpack.c.b16 %v2531, %v2530
    %v2560 = vpack.c.b16 %v2533, %v2532
    %v2561 = vpack.c.b16 %v2535, %v2534
    %v2562 = vpack.c.b16 %v2537, %v2536
    %v2563 = vpack.c.b16 %v2539, %v2538
    %v2564 = vpack.c.b16 %v2541, %v2540
    %v2565 = vpack.c.b16 %v2543, %v2542
    %v2566 = vpack.c.b16 %v2545, %v2544
    %v2567 = vpack.c.b16 %v2547, %v2546
    %v2568 = vpack.c.b16 %v2549, %v2548
    %v2569 = vpack.c.b16 %v2551, %v2550
    %v2570 = vpack.c.b16 %v2553, %v2552
    %v2571 = vpack.c.b16 %v2555, %v2554
    %2588 = vmatpush.bf16.msra.mxu0 %v2563
    %2589 = vmatpush.bf16.msra.mxu0 %v2562
    %2590 = vmatpush.bf16.msra.mxu0 %v2561
    %2591 = vmatpush.bf16.msra.mxu0 %v2560
    %2592 = vmatpush.bf16.msra.mxu0 %v2559
    %2593 = vmatpush.bf16.msra.mxu0 %v2558
    %2594 = vmatpush.bf16.msra.mxu0 %v2557
    %2595 = vmatpush.bf16.msra.mxu0 %v2556
    %2596 = vmatmul.bf16.gmra.mxu0 %v994
    %v2597 = vpop.f32.mrf.mxu0
    %v2598 = vadd.f32 %v2413, %v2597
    %v2599 = vpop.f32.mrf.mxu0
    %v2600 = vadd.f32 %v2415, %v2599
    %2601 = vmatmul.bf16.gmra.mxu0 %v996
    %v2602 = vpop.f32.mrf.mxu0
    %v2603 = vadd.f32 %v2418, %v2602
    %v2604 = vpop.f32.mrf.mxu0
    %v2605 = vadd.f32 %v2420, %v2604
    %2606 = vmatmul.bf16.gmra.mxu0 %v998
    %v2607 = vpop.f32.mrf.mxu0
    %v2608 = vadd.f32 %v2423, %v2607
    %v2609 = vpop.f32.mrf.mxu0
    %v2610 = vadd.f32 %v2425, %v2609
    %2611 = vmatmul.bf16.gmra.mxu0 %v1000
    %v2612 = vpop.f32.mrf.mxu0
    %v2613 = vadd.f32 %v2428, %v2612
    %v2614 = vpop.f32.mrf.mxu0
    %v2615 = vadd.f32 %v2430, %v2614
    %2616 = vmatmul.bf16.gmra.mxu0 %v1002
    %v2617 = vpop.f32.mrf.mxu0
    %v2618 = vadd.f32 %v2433, %v2617
    %v2619 = vpop.f32.mrf.mxu0
    %v2620 = vadd.f32 %v2435, %v2619
    %2621 = vmatmul.bf16.gmra.mxu0 %v1004
    %v2622 = vpop.f32.mrf.mxu0
    %v2623 = vadd.f32 %v2438, %v2622
    %v2624 = vpop.f32.mrf.mxu0
    %v2625 = vadd.f32 %v2440, %v2624
    %2626 = vmatmul.bf16.gmra.mxu0 %v1006
    %v2627 = vpop.f32.mrf.mxu0
    %v2628 = vadd.f32 %v2443, %v2627
    %v2629 = vpop.f32.mrf.mxu0
    %v2630 = vadd.f32 %v2445, %v2629
    %2631 = vmatmul.bf16.gmra.mxu0 %v1008
    %v2632 = vpop.f32.mrf.mxu0
    %v2633 = vadd.f32 %v2448, %v2632
    %v2634 = vpop.f32.mrf.mxu0
    %v2635 = vadd.f32 %v2450, %v2634
    %2636 = vmatmul.bf16.gmra.mxu0 %v1010
    %v2637 = vpop.f32.mrf.mxu0
    %v2638 = vadd.f32 %v2453, %v2637
    %v2639 = vpop.f32.mrf.mxu0
    %v2640 = vadd.f32 %v2455, %v2639
    %2641 = vmatmul.bf16.gmra.mxu0 %v1012
    %v2642 = vpop.f32.mrf.mxu0
    %v2643 = vadd.f32 %v2458, %v2642
    %v2644 = vpop.f32.mrf.mxu0
    %v2645 = vadd.f32 %v2460, %v2644
    %2646 = vmatmul.bf16.gmra.mxu0 %v1014
    %v2647 = vpop.f32.mrf.mxu0
    %v2648 = vadd.f32 %v2463, %v2647
    %v2649 = vpop.f32.mrf.mxu0
    %v2650 = vadd.f32 %v2465, %v2649
    %2651 = vmatmul.bf16.gmra.mxu0 %v1016
    %v2652 = vpop.f32.mrf.mxu0
    %v2653 = vadd.f32 %v2468, %v2652
    %v2654 = vpop.f32.mrf.mxu0
    %v2655 = vadd.f32 %v2470, %v2654
    %2656 = vmatmul.bf16.gmra.mxu0 %v1018
    %v2657 = vpop.f32.mrf.mxu0
    %v2658 = vadd.f32 %v2473, %v2657
    %v2659 = vpop.f32.mrf.mxu0
    %v2660 = vadd.f32 %v2475, %v2659
    %2661 = vmatmul.bf16.gmra.mxu0 %v1020
    %v2662 = vpop.f32.mrf.mxu0
    %v2663 = vadd.f32 %v2478, %v2662
    %v2664 = vpop.f32.mrf.mxu0
    %v2665 = vadd.f32 %v2480, %v2664
    %2666 = vmatmul.bf16.gmra.mxu0 %v1022
    %v2667 = vpop.f32.mrf.mxu0
    %v2668 = vadd.f32 %v2483, %v2667
    %v2669 = vpop.f32.mrf.mxu0
    %v2670 = vadd.f32 %v2485, %v2669
    %2671 = vmatmul.bf16.gmra.mxu0 %v1024
    %v2672 = vpop.f32.mrf.mxu0
    %v2673 = vadd.f32 %v2488, %v2672
    %v2674 = vpop.f32.mrf.mxu0
    %v2675 = vadd.f32 %v2490, %v2674
    %2676 = vdwg.mxu0
    %2677 = vmatpush.bf16.msra.mxu0 %v2571
    %2678 = vmatpush.bf16.msra.mxu0 %v2570
    %2679 = vmatpush.bf16.msra.mxu0 %v2569
    %2680 = vmatpush.bf16.msra.mxu0 %v2568
    %2681 = vmatpush.bf16.msra.mxu0 %v2567
    %2682 = vmatpush.bf16.msra.mxu0 %v2566
    %2683 = vmatpush.bf16.msra.mxu0 %v2565
    %2684 = vmatpush.bf16.msra.mxu0 %v2564
    %2685 = vmatmul.bf16.gmra.mxu0 %v995
    %v2686 = vpop.f32.mrf.mxu0
    %v2687 = vadd.f32 %v2598, %v2686
    %v2688 = vpop.f32.mrf.mxu0
    %v2689 = vadd.f32 %v2600, %v2688
    %2690 = vmatmul.bf16.gmra.mxu0 %v997
    %v2691 = vpop.f32.mrf.mxu0
    %v2692 = vadd.f32 %v2603, %v2691
    %v2693 = vpop.f32.mrf.mxu0
    %v2694 = vadd.f32 %v2605, %v2693
    %2695 = vmatmul.bf16.gmra.mxu0 %v999
    %v2696 = vpop.f32.mrf.mxu0
    %v2697 = vadd.f32 %v2608, %v2696
    %v2698 = vpop.f32.mrf.mxu0
    %v2699 = vadd.f32 %v2610, %v2698
    %2700 = vmatmul.bf16.gmra.mxu0 %v1001
    %v2701 = vpop.f32.mrf.mxu0
    %v2702 = vadd.f32 %v2613, %v2701
    %v2703 = vpop.f32.mrf.mxu0
    %v2704 = vadd.f32 %v2615, %v2703
    %2705 = vmatmul.bf16.gmra.mxu0 %v1003
    %v2706 = vpop.f32.mrf.mxu0
    %v2707 = vadd.f32 %v2618, %v2706
    %v2708 = vpop.f32.mrf.mxu0
    %v2709 = vadd.f32 %v2620, %v2708
    %2710 = vmatmul.bf16.gmra.mxu0 %v1005
    %v2711 = vpop.f32.mrf.mxu0
    %v2712 = vadd.f32 %v2623, %v2711
    %v2713 = vpop.f32.mrf.mxu0
    %v2714 = vadd.f32 %v2625, %v2713
    %2715 = vmatmul.bf16.gmra.mxu0 %v1007
    %v2716 = vpop.f32.mrf.mxu0
    %v2717 = vadd.f32 %v2628, %v2716
    %v2718 = vpop.f32.mrf.mxu0
    %v2719 = vadd.f32 %v2630, %v2718
    %2720 = vmatmul.bf16.gmra.mxu0 %v1009
    %v2721 = vpop.f32.mrf.mxu0
    %v2722 = vadd.f32 %v2633, %v2721
    %v2723 = vpop.f32.mrf.mxu0
    %v2724 = vadd.f32 %v2635, %v2723
    %2725 = vmatmul.bf16.gmra.mxu0 %v1011
    %v2726 = vpop.f32.mrf.mxu0
    %v2727 = vadd.f32 %v2638, %v2726
    %v2728 = vpop.f32.mrf.mxu0
    %v2729 = vadd.f32 %v2640, %v2728
    %2730 = vmatmul.bf16.gmra.mxu0 %v1013
    %v2731 = vpop.f32.mrf.mxu0
    %v2732 = vadd.f32 %v2643, %v2731
    %v2733 = vpop.f32.mrf.mxu0
    %v2734 = vadd.f32 %v2645, %v2733
    %2735 = vmatmul.bf16.gmra.mxu0 %v1015
    %v2736 = vpop.f32.mrf.mxu0
    %v2737 = vadd.f32 %v2648, %v2736
    %v2738 = vpop.f32.mrf.mxu0
    %v2739 = vadd.f32 %v2650, %v2738
    %2740 = vmatmul.bf16.gmra.mxu0 %v1017
    %v2741 = vpop.f32.mrf.mxu0
    %v2742 = vadd.f32 %v2653, %v2741
    %v2743 = vpop.f32.mrf.mxu0
    %v2744 = vadd.f32 %v2655, %v2743
    %2745 = vmatmul.bf16.gmra.mxu0 %v1019
    %v2746 = vpop.f32.mrf.mxu0
    %v2747 = vadd.f32 %v2658, %v2746
    %v2748 = vpop.f32.mrf.mxu0
    %v2749 = vadd.f32 %v2660, %v2748
    %2750 = vmatmul.bf16.gmra.mxu0 %v1021
    %v2751 = vpop.f32.mrf.mxu0
    %v2752 = vadd.f32 %v2663, %v2751
    %v2753 = vpop.f32.mrf.mxu0
    %v2754 = vadd.f32 %v2665, %v2753
    %2755 = vmatmul.bf16.gmra.mxu0 %v1023
    %v2756 = vpop.f32.mrf.mxu0
    %v2757 = vadd.f32 %v2668, %v2756
    %v2758 = vpop.f32.mrf.mxu0
    %v2759 = vadd.f32 %v2670, %v2758
    %2760 = vmatmul.bf16.gmra.mxu0 %v1025
    %v2761 = vpop.f32.mrf.mxu0
    %v2762 = vadd.f32 %v2673, %v2761
    %v2763 = vpop.f32.mrf.mxu0
    %v2764 = vadd.f32 %v2675, %v2763
    %2765 = vdwg.mxu0
    %v2766 = vmul.f32 %v213, %v2687
    %v2767 = vmul.f32 %v218, %v2689
    %v2768 = vmul.f32 %v223, %v2692
    %v2769 = vmul.f32 %v228, %v2694
    %v2770 = vmul.f32 %v233, %v2697
    %v2771 = vmul.f32 %v238, %v2699
    %v2772 = vmul.f32 %v243, %v2702
    %v2773 = vmul.f32 %v248, %v2704
    %v2774 = vmul.f32 %v253, %v2707
    %v2775 = vmul.f32 %v258, %v2709
    %v2776 = vmul.f32 %v263, %v2712
    %v2777 = vmul.f32 %v268, %v2714
    %v2778 = vmul.f32 %v273, %v2717
    %v2779 = vmul.f32 %v278, %v2719
    %v2780 = vmul.f32 %v283, %v2722
    %v2781 = vmul.f32 %v288, %v2724
    %v2782 = vmul.f32 %v293, %v2727
    %v2783 = vmul.f32 %v298, %v2729
    %v2784 = vmul.f32 %v303, %v2732
    %v2785 = vmul.f32 %v308, %v2734
    %v2786 = vmul.f32 %v313, %v2737
    %v2787 = vmul.f32 %v318, %v2739
    %v2788 = vmul.f32 %v323, %v2742
    %v2789 = vmul.f32 %v328, %v2744
    %v2790 = vmul.f32 %v333, %v2747
    %v2791 = vmul.f32 %v338, %v2749
    %v2792 = vmul.f32 %v343, %v2752
    %v2793 = vmul.f32 %v348, %v2754
    %v2794 = vmul.f32 %v353, %v2757
    %v2795 = vmul.f32 %v358, %v2759
    %v2796 = vmul.f32 %v363, %v2762
    %v2797 = vmul.f32 %v368, %v2764
    %v2798 = vadd.f32 %v2766, %v562
    %v2799 = vadd.f32 %v2767, %v563
    %v2800 = vadd.f32 %v2768, %v564
    %v2801 = vadd.f32 %v2769, %v565
    %v2802 = vadd.f32 %v2770, %v566
    %v2803 = vadd.f32 %v2771, %v567
    %v2804 = vadd.f32 %v2772, %v568
    %v2805 = vadd.f32 %v2773, %v569
    %v2806 = vadd.f32 %v2774, %v570
    %v2807 = vadd.f32 %v2775, %v571
    %v2808 = vadd.f32 %v2776, %v572
    %v2809 = vadd.f32 %v2777, %v573
    %v2810 = vadd.f32 %v2778, %v574
    %v2811 = vadd.f32 %v2779, %v575
    %v2812 = vadd.f32 %v2780, %v576
    %v2813 = vadd.f32 %v2781, %v577
    %v2814 = vadd.f32 %v2782, %v578
    %v2815 = vadd.f32 %v2783, %v579
    %v2816 = vadd.f32 %v2784, %v580
    %v2817 = vadd.f32 %v2785, %v581
    %v2818 = vadd.f32 %v2786, %v582
    %v2819 = vadd.f32 %v2787, %v583
    %v2820 = vadd.f32 %v2788, %v584
    %v2821 = vadd.f32 %v2789, %v585
    %v2822 = vadd.f32 %v2790, %v586
    %v2823 = vadd.f32 %v2791, %v587
    %v2824 = vadd.f32 %v2792, %v588
    %v2825 = vadd.f32 %v2793, %v589
    %v2826 = vadd.f32 %v2794, %v590
    %v2827 = vadd.f32 %v2795, %v591
    %v2828 = vadd.f32 %v2796, %v592
    %v2829 = vadd.f32 %v2797, %v593
    %2831 = vset.pattern.permute.xlu0 0
    %2832 = vperm.xlu0 %2831, %v82
    %v2833 = vpop.permute.xlu0 %2832
    %2836 = vset.pattern.permute.xlu0 0
    %2837 = vperm.xlu0 %2836, %v83
    %v2838 = vpop.permute.xlu0 %2837
    %2841 = vset.pattern.permute.xlu0 0
    %2842 = vperm.xlu0 %2841, %v84
    %v2843 = vpop.permute.xlu0 %2842
    %2846 = vset.pattern.permute.xlu0 0
    %2847 = vperm.xlu0 %2846, %v85
    %v2848 = vpop.permute.xlu0 %2847
    %2851 = vset.pattern.permute.xlu0 0
    %2852 = vperm.xlu0 %2851, %v86
    %v2853 = vpop.permute.xlu0 %2852
    %2856 = vset.pattern.permute.xlu0 0
    %2857 = vperm.xlu0 %2856, %v87
    %v2858 = vpop.permute.xlu0 %2857
    %2861 = vset.pattern.permute.xlu0 0
    %2862 = vperm.xlu0 %2861, %v88
    %v2863 = vpop.permute.xlu0 %2862
    %2866 = vset.pattern.permute.xlu0 0
    %2867 = vperm.xlu0 %2866, %v89
    %v2868 = vpop.permute.xlu0 %2867
    %2871 = vset.pattern.permute.xlu0 0
    %2872 = vperm.xlu0 %2871, %v90
    %v2873 = vpop.permute.xlu0 %2872
    %2876 = vset.pattern.permute.xlu0 0
    %2877 = vperm.xlu0 %2876, %v91
    %v2878 = vpop.permute.xlu0 %2877
    %2881 = vset.pattern.permute.xlu0 0
    %2882 = vperm.xlu0 %2881, %v92
    %v2883 = vpop.permute.xlu0 %2882
    %2886 = vset.pattern.permute.xlu0 0
    %2887 = vperm.xlu0 %2886, %v93
    %v2888 = vpop.permute.xlu0 %2887
    %2891 = vset.pattern.permute.xlu0 0
    %2892 = vperm.xlu0 %2891, %v94
    %v2893 = vpop.permute.xlu0 %2892
    %2896 = vset.pattern.permute.xlu0 0
    %2897 = vperm.xlu0 %2896, %v95
    %v2898 = vpop.permute.xlu0 %2897
    %2901 = vset.pattern.permute.xlu0 0
    %2902 = vperm.xlu0 %2901, %v96
    %v2903 = vpop.permute.xlu0 %2902
    %2906 = vset.pattern.permute.xlu0 0
    %2907 = vperm.xlu0 %2906, %v97
    %v2908 = vpop.permute.xlu0 %2907
    %2911 = vset.pattern.permute.xlu0 0
    %2912 = vperm.xlu0 %2911, %v98
    %v2913 = vpop.permute.xlu0 %2912
    %2916 = vset.pattern.permute.xlu0 0
    %2917 = vperm.xlu0 %2916, %v99
    %v2918 = vpop.permute.xlu0 %2917
    %2921 = vset.pattern.permute.xlu0 0
    %2922 = vperm.xlu0 %2921, %v100
    %v2923 = vpop.permute.xlu0 %2922
    %2926 = vset.pattern.permute.xlu0 0
    %2927 = vperm.xlu0 %2926, %v101
    %v2928 = vpop.permute.xlu0 %2927
    %2931 = vset.pattern.permute.xlu0 0
    %2932 = vperm.xlu0 %2931, %v102
    %v2933 = vpop.permute.xlu0 %2932
    %2936 = vset.pattern.permute.xlu0 0
    %2937 = vperm.xlu0 %2936, %v103
    %v2938 = vpop.permute.xlu0 %2937
    %2941 = vset.pattern.permute.xlu0 0
    %2942 = vperm.xlu0 %2941, %v104
    %v2943 = vpop.permute.xlu0 %2942
    %2946 = vset.pattern.permute.xlu0 0
    %2947 = vperm.xlu0 %2946, %v105
    %v2948 = vpop.permute.xlu0 %2947
    %2951 = vset.pattern.permute.xlu0 0
    %2952 = vperm.xlu0 %2951, %v106
    %v2953 = vpop.permute.xlu0 %2952
    %2956 = vset.pattern.permute.xlu0 0
    %2957 = vperm.xlu0 %2956, %v107
    %v2958 = vpop.permute.xlu0 %2957
    %2961 = vset.pattern.permute.xlu0 0
    %2962 = vperm.xlu0 %2961, %v108
    %v2963 = vpop.permute.xlu0 %2962
    %2966 = vset.pattern.permute.xlu0 0
    %2967 = vperm.xlu0 %2966, %v109
    %v2968 = vpop.permute.xlu0 %2967
    %2971 = vset.pattern.permute.xlu0 0
    %2972 = vperm.xlu0 %2971, %v110
    %v2973 = vpop.permute.xlu0 %2972
    %2976 = vset.pattern.permute.xlu0 0
    %2977 = vperm.xlu0 %2976, %v111
    %v2978 = vpop.permute.xlu0 %2977
    %2981 = vset.pattern.permute.xlu0 0
    %2982 = vperm.xlu0 %2981, %v112
    %v2983 = vpop.permute.xlu0 %2982
    %2986 = vset.pattern.permute.xlu0 0
    %2987 = vperm.xlu0 %2986, %v113
    %v2988 = vpop.permute.xlu0 %2987
    %v2990 = vmul.f32 %v2798, %v2833
    %v2991 = vmul.f32 %v2799, %v2838
    %v2992 = vmul.f32 %v2800, %v2843
    %v2993 = vmul.f32 %v2801, %v2848
    %v2994 = vmul.f32 %v2802, %v2853
    %v2995 = vmul.f32 %v2803, %v2858
    %v2996 = vmul.f32 %v2804, %v2863
    %v2997 = vmul.f32 %v2805, %v2868
    %v2998 = vmul.f32 %v2806, %v2873
    %v2999 = vmul.f32 %v2807, %v2878
    %v3000 = vmul.f32 %v2808, %v2883
    %v3001 = vmul.f32 %v2809, %v2888
    %v3002 = vmul.f32 %v2810, %v2893
    %v3003 = vmul.f32 %v2811, %v2898
    %v3004 = vmul.f32 %v2812, %v2903
    %v3005 = vmul.f32 %v2813, %v2908
    %v3006 = vmul.f32 %v2814, %v2913
    %v3007 = vmul.f32 %v2815, %v2918
    %v3008 = vmul.f32 %v2816, %v2923
    %v3009 = vmul.f32 %v2817, %v2928
    %v3010 = vmul.f32 %v2818, %v2933
    %v3011 = vmul.f32 %v2819, %v2938
    %v3012 = vmul.f32 %v2820, %v2943
    %v3013 = vmul.f32 %v2821, %v2948
    %v3014 = vmul.f32 %v2822, %v2953
    %v3015 = vmul.f32 %v2823, %v2958
    %v3016 = vmul.f32 %v2824, %v2963
    %v3017 = vmul.f32 %v2825, %v2968
    %v3018 = vmul.f32 %v2826, %v2973
    %v3019 = vmul.f32 %v2827, %v2978
    %v3020 = vmul.f32 %v2828, %v2983
    %v3021 = vmul.f32 %v2829, %v2988
    %3022 = vst [vmem:[#allocation2] sm:$0xff] %v2990
    %3023 = vst [vmem:[#allocation2 + $0x8] sm:$0xff] %v2991
    %3024 = vst [vmem:[#allocation2 + $0x10] sm:$0xff] %v2992
    %3025 = vst [vmem:[#allocation2 + $0x18] sm:$0xff] %v2993
    %3026 = vst [vmem:[#allocation2 + $0x20] sm:$0xff] %v2994
    %3027 = vst [vmem:[#allocation2 + $0x28] sm:$0xff] %v2995
    %3028 = vst [vmem:[#allocation2 + $0x30] sm:$0xff] %v2996
    %3029 = vst [vmem:[#allocation2 + $0x38] sm:$0xff] %v2997
    %3030 = vst [vmem:[#allocation2 + $0x40] sm:$0xff] %v2998
    %3031 = vst [vmem:[#allocation2 + $0x48] sm:$0xff] %v2999
    %3032 = vst [vmem:[#allocation2 + $0x50] sm:$0xff] %v3000
    %3033 = vst [vmem:[#allocation2 + $0x58] sm:$0xff] %v3001
    %3034 = vst [vmem:[#allocation2 + $0x60] sm:$0xff] %v3002
    %3035 = vst [vmem:[#allocation2 + $0x68] sm:$0xff] %v3003
    %3036 = vst [vmem:[#allocation2 + $0x70] sm:$0xff] %v3004
    %3037 = vst [vmem:[#allocation2 + $0x78] sm:$0xff] %v3005
    %3038 = vst [vmem:[#allocation2 + $0x80] sm:$0xff] %v3006
    %3039 = vst [vmem:[#allocation2 + $0x88] sm:$0xff] %v3007
    %3040 = vst [vmem:[#allocation2 + $0x90] sm:$0xff] %v3008
    %3041 = vst [vmem:[#allocation2 + $0x98] sm:$0xff] %v3009
    %3042 = vst [vmem:[#allocation2 + $0xa0] sm:$0xff] %v3010
    %3043 = vst [vmem:[#allocation2 + $0xa8] sm:$0xff] %v3011
    %3044 = vst [vmem:[#allocation2 + $0xb0] sm:$0xff] %v3012
    %3045 = vst [vmem:[#allocation2 + $0xb8] sm:$0xff] %v3013
    %3046 = vst [vmem:[#allocation2 + $0xc0] sm:$0xff] %v3014
    %3047 = vst [vmem:[#allocation2 + $0xc8] sm:$0xff] %v3015
    %3048 = vst [vmem:[#allocation2 + $0xd0] sm:$0xff] %v3016
    %3049 = vst [vmem:[#allocation2 + $0xd8] sm:$0xff] %v3017
    %3050 = vst [vmem:[#allocation2 + $0xe0] sm:$0xff] %v3018
    %3051 = vst [vmem:[#allocation2 + $0xe8] sm:$0xff] %v3019
    %3052 = vst [vmem:[#allocation2 + $0xf0] sm:$0xff] %v3020
    %3053 = vst [vmem:[#allocation2 + $0xf8] sm:$0xff] %v3021
    // Predicated region
    $region18: #{tpu_custom_call.1} parent=1 // pred_check
      _
    $region19: #{tpu_custom_call.1} parent=1 // pred_check_branch
      %3055 = sbr.rel (0) target = $region21
    $region20: #{tpu_custom_call.1} parent=1 // pred_region
      %3057 = vsyncadd [#allocation3], 0
      %s3058 = sshll.u32 [#allocation2], 4
      %s3059 = int_to_ptr.vmem [resolvable:$true] %s3058
      %s3060 = sshll.u32 %s4, 4
      %s3061 = int_to_ptr.hbm [resolvable:$true] %s3060
      %3066 = dma.vmem_to_hbm [thread:$0]  %s3059, 4096, %s3061, [#allocation3], 128, 128, 8
    $region21: #{tpu_custom_call.1} parent=1 // pred_fallthru
      _
    // Predicated region
    $region22: #{tpu_custom_call.1} parent=1 // pred_check
      _
    $region23: #{tpu_custom_call.1} parent=1 // pred_check_branch
      %3068 = sbr.rel (0) target = $region25
    $region24: #{tpu_custom_call.1} parent=1 // pred_region
      %3070 = dma.done [#allocation3], 4096
    $region25: #{tpu_custom_call.1} parent=1 // pred_fallthru
      _
    %3071 = vsyncpa [#allocation3], 1

</llo_original>
